<compile_context>
chip_gen: v7x
topology: tpu7x:2x2x1
jax: 0.10.0
libtpu: 0.0.40
codegen_flags: <defaults>
</compile_context>

<pallas_src>
import functools

import jax
import jax.numpy as jnp
from jax import lax
from jax.experimental import pallas as pl
from jax.experimental.pallas import tpu as pltpu


# --------------------------- geometry planning -------------------------------
def _round_up(x, m):
    return ((x + m - 1) // m) * m


def _plan(T, C, W, AR):
    """Geometry for the fused ResBlock kernel (tap packing + aligned padding)."""
    assert (AR * (W - 1)) % 2 == 0, "need 'same' padding (AR*(W-1) must be even)"
    pad = AR * (W - 1) // 2
    # pack g taps along the contraction dim so K = g*C is ~256 (MXU width)
    g = max(1, min(W, 256 // C))
    G = -(-W // g)                                # number of packed tap groups
    Wp = G * g                                    # taps after zero-padding
    pad_al = _round_up(pad, 16) if pad else 0     # aligned interior offset (bf16 packing)
    right = pad + (Wp - W) * AR                   # right halo incl. zero-padded taps
    Tp = _round_up(pad_al + T + right, 16)        # padded-buffer rows
    base = pad_al - pad                           # read offset of tap 0
    return dict(pad=pad, g=g, G=G, Wp=Wp, pad_al=pad_al, Tp=Tp, base=base)


# ------------------------------ Pallas kernel --------------------------------
def _make_resblock_kernel(T, C, plan, AR):
    g, G = plan['g'], plan['G']
    pad_al, Tp, base = plan['pad_al'], plan['Tp'], plan['base']

    def kernel(x_ref, s1_ref, t1_ref, w1_ref, b1_ref,
               s2_ref, t2_ref, w2_ref, b2_ref, o_ref, padbuf):
        x = x_ref[...].astype(jnp.float32)                          # (T, C)

        # Zero only the halo rows, once per invocation (the interior rows are
        # always fully overwritten before being read).
        if pad_al > 0:
            padbuf[0:pad_al, :] = jnp.zeros((pad_al, C), padbuf.dtype)
        if Tp > pad_al + T:
            padbuf[pad_al + T:Tp, :] = jnp.zeros((Tp - pad_al - T, C), padbuf.dtype)

        def dilated_conv(act_f32, w_ref, b_ref):
            # 'same' dilated conv as G matmuls with K = g*C (taps packed along K).
            padbuf[pad_al:pad_al + T, :] = act_f32.astype(padbuf.dtype)  # aligned store
            acc = jnp.broadcast_to(b_ref[...], (T, C)).astype(jnp.float32)
            for j in range(G):                                       # static group loop
                o0 = base + j * g * AR
                slab = jnp.concatenate(
                    [padbuf[o0 + i * AR:o0 + i * AR + T, :] for i in range(g)],
                    axis=-1)                                          # (T, g*C) bf16
                acc = acc + jnp.dot(slab, w_ref[j],
                                    preferred_element_type=jnp.float32)
            return acc

        a1 = jnp.maximum(x * s1_ref[...] + t1_ref[...], 0.0)         # BN1 (folded) + ReLU
        mid = dilated_conv(a1, w1_ref, b1_ref)                       # conv1 (stays in vregs)
        a2 = jnp.maximum(mid * s2_ref[...] + t2_ref[...], 0.0)       # BN2 (folded) + ReLU
        out = dilated_conv(a2, w2_ref, b2_ref)                       # conv2
        o_ref[...] = (out + x).astype(o_ref.dtype)                   # residual

    return kernel


@functools.lru_cache(maxsize=None)
def _resblock_call(N, T, C, W, AR):
    plan = _plan(T, C, W, AR)
    g, G, Tp = plan['g'], plan['G'], plan['Tp']
    kernel = _make_resblock_kernel(T, C, plan, AR)
    vec = lambda: pl.BlockSpec((1, C), lambda n: (0, 0))
    wsp = lambda: pl.BlockSpec((G, g * C, C), lambda n: (0, 0, 0))
    return pl.pallas_call(
        kernel,
        out_shape=jax.ShapeDtypeStruct((N, T, C), jnp.float32),
        grid=(N,),
        in_specs=[pl.BlockSpec((None, T, C), lambda n: (n, 0, 0)),
                  vec(), vec(), wsp(), vec(),
                  vec(), vec(), wsp(), vec()],
        out_specs=pl.BlockSpec((None, T, C), lambda n: (n, 0, 0)),
        scratch_shapes=[pltpu.VMEM((Tp, C), jnp.bfloat16)],
        compiler_params=pltpu.CompilerParams(dimension_semantics=("parallel",)),
    )


def _pack_taps(w, g):
    """(W, Cin, Cout) -> (G, g*Cin, Cout) bf16, zero-padding to G*g taps."""
    Wt, Cin, Cout = w.shape
    G = -(-Wt // g)
    if G * g > Wt:
        w = jnp.concatenate(
            [w, jnp.zeros((G * g - Wt, Cin, Cout), w.dtype)], axis=0)
    return w.reshape(G, g * Cin, Cout).astype(jnp.bfloat16)


def resblock_forward(x_ncl, p, W, AR):
    """ResBlock forward.  x_ncl: (N, C, T) float32 in PyTorch NCL layout."""
    N, C, T = x_ncl.shape
    plan = _plan(T, C, W, AR)
    x = jnp.transpose(x_ncl, (0, 2, 1)).astype(jnp.float32)          # (N, T, C)
    w1 = _pack_taps(p['w1'], plan['g'])
    w2 = _pack_taps(p['w2'], plan['g'])
    out = _resblock_call(N, T, C, W, AR)(
        x, p['s1'], p['t1'], w1, p['b1'], p['s2'], p['t2'], w2, p['b2'])
    return jnp.transpose(out, (0, 2, 1))                             # back to NCL


# ---------------------------- parameter init ---------------------------------
def init_resblock(seed, C, W):
    key = jax.random.PRNGKey(seed)
    ks = iter(jax.random.split(key, 16))
    nrm = lambda shape, std: jax.random.normal(next(ks), shape, jnp.float32) * std

    def bn_folded():
        gamma = 1.0 + nrm((C,), 0.05)
        beta = nrm((C,), 0.05)
        mean = nrm((C,), 0.05)
        var = 1.0 + jnp.abs(nrm((C,), 0.05))
        scale = gamma * lax.rsqrt(var + 1e-5)
        shift = beta - mean * scale
        return scale.reshape(1, C), shift.reshape(1, C)

    s1, t1 = bn_folded()
    s2, t2 = bn_folded()
    std = (C * W) ** -0.5
    return {
        's1': s1, 't1': t1,
        'w1': nrm((W, C, C), std).astype(jnp.bfloat16), 'b1': nrm((1, C), 0.01),
        's2': s2, 't2': t2,
        'w2': nrm((W, C, C), std).astype(jnp.bfloat16), 'b2': nrm((1, C), 0.01),
    }


# ---------------------------- pure-JAX reference ------------------------------
def resblock_ref(x_ncl, p, W, AR):
    """Reference in f32 (matmul operands rounded to bf16 to match the kernel)."""
    pad = AR * (W - 1) // 2
    x = jnp.transpose(x_ncl, (0, 2, 1)).astype(jnp.float32)          # (N, T, C)
    N, T, C = x.shape

    def dconv(a, w, b):
        a = a.astype(jnp.bfloat16).astype(jnp.float32)
        wf = w.astype(jnp.float32)
        ap = jnp.pad(a, ((0, 0), (pad, pad), (0, 0)))
        acc = jnp.broadcast_to(b, (N, T, C)).astype(jnp.float32)
        for k in range(W):
            acc = acc + jnp.einsum('ntc,cd->ntd', ap[:, k * AR:k * AR + T, :],
                                   wf[k], precision=lax.Precision.HIGHEST)
        return acc

    a1 = jnp.maximum(x * p['s1'] + p['t1'], 0.0)
    mid = dconv(a1, p['w1'], p['b1'])
    a2 = jnp.maximum(mid * p['s2'] + p['t2'], 0.0)
    out = dconv(a2, p['w2'], p['b2'])
    return jnp.transpose(out + x, (0, 2, 1))


# ---------------------------------- main --------------------------------------
if __name__ == "__main__":
    N, C, T = 2, 128, 64                       # small test shapes (NCL: batch, L, seq)
    configs = [(11, 1), (11, 4), (21, 10)]     # (W, AR) SpliceAI-style settings
    key = jax.random.PRNGKey(0)

    for idx, (W, AR) in enumerate(configs):
        params = init_resblock(idx, C, W)
        x = jax.random.normal(jax.random.fold_in(key, idx), (N, C, T), jnp.float32)

        out = jax.block_until_ready(resblock_forward(x, params, W, AR))
        ref = resblock_ref(x, params, W, AR)

        assert out.shape == (N, C, T), (out.shape, (N, C, T))
        assert bool(jnp.all(jnp.isfinite(out)))
        rel_err = float(jnp.max(jnp.abs(out - ref)) / (jnp.max(jnp.abs(ref)) + 1e-6))
        assert rel_err < 1e-2, (W, AR, rel_err)

    print("KERNEL_OK")
</pallas_src>

<mosaic_0001>
module attributes {stable_mosaic.version = 11 : i64} {
  func.func @kernel(%arg0: i32, %arg1: memref<1x64x128xf32, #tpu.memory_space<vmem>>, %arg2: memref<1x128xf32, #tpu.memory_space<vmem>>, %arg3: memref<1x128xf32, #tpu.memory_space<vmem>>, %arg4: memref<6x256x128xbf16, #tpu.memory_space<vmem>>, %arg5: memref<1x128xf32, #tpu.memory_space<vmem>>, %arg6: memref<1x128xf32, #tpu.memory_space<vmem>>, %arg7: memref<1x128xf32, #tpu.memory_space<vmem>>, %arg8: memref<6x256x128xbf16, #tpu.memory_space<vmem>>, %arg9: memref<1x128xf32, #tpu.memory_space<vmem>>, %arg10: memref<1x64x128xf32, #tpu.memory_space<vmem>>, %arg11: memref<96x128xbf16, #tpu.memory_space<vmem>>) attributes {dimension_semantics = [#tpu.dimension_semantics<parallel>], iteration_bounds = array<i64: 2>, scalar_prefetch = 0 : i64, scratch_operands = 1 : i64, tpu.core_type = #tpu.core_type<tc>, window_params = [{transform_indices = @transform_0, window_bounds = array<i64: 1, 64, 128>}, {pipeline_mode = #tpu.pipeline_mode<synchronous>, transform_indices = @transform_1, window_bounds = array<i64: 1, 128>}, {pipeline_mode = #tpu.pipeline_mode<synchronous>, transform_indices = @transform_2, window_bounds = array<i64: 1, 128>}, {pipeline_mode = #tpu.pipeline_mode<synchronous>, transform_indices = @transform_3, window_bounds = array<i64: 6, 256, 128>}, {pipeline_mode = #tpu.pipeline_mode<synchronous>, transform_indices = @transform_4, window_bounds = array<i64: 1, 128>}, {pipeline_mode = #tpu.pipeline_mode<synchronous>, transform_indices = @transform_5, window_bounds = array<i64: 1, 128>}, {pipeline_mode = #tpu.pipeline_mode<synchronous>, transform_indices = @transform_6, window_bounds = array<i64: 1, 128>}, {pipeline_mode = #tpu.pipeline_mode<synchronous>, transform_indices = @transform_7, window_bounds = array<i64: 6, 256, 128>}, {pipeline_mode = #tpu.pipeline_mode<synchronous>, transform_indices = @transform_8, window_bounds = array<i64: 1, 128>}, {transform_indices = @transform_9, window_bounds = array<i64: 1, 64, 128>}]} {
    %c0 = arith.constant 0 : index
    %c0_0 = arith.constant 0 : index
    %c0_1 = arith.constant 0 : index
    %0 = vector.load %arg1[%c0, %c0_0, %c0_1] : memref<1x64x128xf32, #tpu.memory_space<vmem>>, vector<1x64x128xf32>
    %1 = vector.shape_cast %0 : vector<1x64x128xf32> to vector<64x128xf32>
    %cst = arith.constant 0.000000e+00 : bf16
    %2 = vector.broadcast %cst : bf16 to vector<16x128xbf16>
    %c0_2 = arith.constant 0 : index
    %c0_3 = arith.constant 0 : index
    %3 = vector.load %arg11[%c0_2, %c0_3] : memref<96x128xbf16, #tpu.memory_space<vmem>>, vector<16x128xbf16>
    tpu.vector_store %arg11[%c0_2, %c0_3], %2 {strides = array<i32>} : memref<96x128xbf16, #tpu.memory_space<vmem>>, vector<16x128xbf16>,
    %cst_4 = arith.constant 0.000000e+00 : bf16
    %4 = vector.broadcast %cst_4 : bf16 to vector<16x128xbf16>
    %c80 = arith.constant 80 : index
    %c0_5 = arith.constant 0 : index
    %5 = vector.load %arg11[%c80, %c0_5] : memref<96x128xbf16, #tpu.memory_space<vmem>>, vector<16x128xbf16>
    tpu.vector_store %arg11[%c80, %c0_5], %4 {strides = array<i32>} : memref<96x128xbf16, #tpu.memory_space<vmem>>, vector<16x128xbf16>,
    %c0_6 = arith.constant 0 : index
    %c0_7 = arith.constant 0 : index
    %6 = vector.load %arg2[%c0_6, %c0_7] : memref<1x128xf32, #tpu.memory_space<vmem>>, vector<1x128xf32>
    %7 = vector.broadcast %6 : vector<1x128xf32> to vector<64x128xf32>
    %8 = arith.mulf %1, %7 : vector<64x128xf32>
    %c0_8 = arith.constant 0 : index
    %c0_9 = arith.constant 0 : index
    %9 = vector.load %arg3[%c0_8, %c0_9] : memref<1x128xf32, #tpu.memory_space<vmem>>, vector<1x128xf32>
    %10 = vector.broadcast %9 : vector<1x128xf32> to vector<64x128xf32>
    %11 = arith.addf %8, %10 : vector<64x128xf32>
    %cst_10 = arith.constant 0.000000e+00 : f32
    %12 = vector.broadcast %cst_10 : f32 to vector<64x128xf32>
    %13 = arith.maximumf %11, %12 : vector<64x128xf32>
    %14 = arith.truncf %13 : vector<64x128xf32> to vector<64x128xbf16>
    %c16 = arith.constant 16 : index
    %c0_11 = arith.constant 0 : index
    %15 = vector.load %arg11[%c16, %c0_11] : memref<96x128xbf16, #tpu.memory_space<vmem>>, vector<64x128xbf16>
    tpu.vector_store %arg11[%c16, %c0_11], %14 {strides = array<i32>} : memref<96x128xbf16, #tpu.memory_space<vmem>>, vector<64x128xbf16>,
    %c0_12 = arith.constant 0 : index
    %c0_13 = arith.constant 0 : index
    %16 = vector.load %arg5[%c0_12, %c0_13] : memref<1x128xf32, #tpu.memory_space<vmem>>, vector<1x128xf32>
    %17 = vector.shape_cast %16 : vector<1x128xf32> to vector<1x128xf32>
    %18 = vector.broadcast %17 : vector<1x128xf32> to vector<64x128xf32>
    %c11 = arith.constant 11 : index
    %c0_14 = arith.constant 0 : index
    %19 = vector.load %arg11[%c11, %c0_14] : memref<96x128xbf16, #tpu.memory_space<vmem>>, vector<64x128xbf16>
    %c12 = arith.constant 12 : index
    %c0_15 = arith.constant 0 : index
    %20 = vector.load %arg11[%c12, %c0_15] : memref<96x128xbf16, #tpu.memory_space<vmem>>, vector<64x128xbf16>
    %21 = tpu.concatenate %19, %20 in 1 : vector<64x128xbf16>, vector<64x128xbf16> -> vector<64x256xbf16>
    %c0_16 = arith.constant 0 : index
    %c0_17 = arith.constant 0 : index
    %c0_18 = arith.constant 0 : index
    %22 = vector.load %arg4[%c0_16, %c0_17, %c0_18] : memref<6x256x128xbf16, #tpu.memory_space<vmem>>, vector<1x256x128xbf16>
    %23 = vector.shape_cast %22 : vector<1x256x128xbf16> to vector<256x128xbf16>
    %cst_19 = arith.constant dense<0.000000e+00> : vector<64x128xf32>
    %24 = tpu.matmul %21, %23, %cst_19 {dimension_numbers = #tpu.dot_dimension_numbers<[1], [0], [0], [1], [0, 0, 1, 1], [], []>} : vector<64x256xbf16>, vector<256x128xbf16>, vector<64x128xf32> -> vector<64x128xf32>
    %25 = arith.addf %18, %24 : vector<64x128xf32>
    %c13 = arith.constant 13 : index
    %c0_20 = arith.constant 0 : index
    %26 = vector.load %arg11[%c13, %c0_20] : memref<96x128xbf16, #tpu.memory_space<vmem>>, vector<64x128xbf16>
    %c14 = arith.constant 14 : index
    %c0_21 = arith.constant 0 : index
    %27 = vector.load %arg11[%c14, %c0_21] : memref<96x128xbf16, #tpu.memory_space<vmem>>, vector<64x128xbf16>
    %28 = tpu.concatenate %26, %27 in 1 : vector<64x128xbf16>, vector<64x128xbf16> -> vector<64x256xbf16>
    %c1 = arith.constant 1 : index
    %c0_22 = arith.constant 0 : index
    %c0_23 = arith.constant 0 : index
    %29 = vector.load %arg4[%c1, %c0_22, %c0_23] : memref<6x256x128xbf16, #tpu.memory_space<vmem>>, vector<1x256x128xbf16>
    %30 = vector.shape_cast %29 : vector<1x256x128xbf16> to vector<256x128xbf16>
    %cst_24 = arith.constant dense<0.000000e+00> : vector<64x128xf32>
    %31 = tpu.matmul %28, %30, %cst_24 {dimension_numbers = #tpu.dot_dimension_numbers<[1], [0], [0], [1], [0, 0, 1, 1], [], []>} : vector<64x256xbf16>, vector<256x128xbf16>, vector<64x128xf32> -> vector<64x128xf32>
    %32 = arith.addf %25, %31 : vector<64x128xf32>
    %c15 = arith.constant 15 : index
    %c0_25 = arith.constant 0 : index
    %33 = vector.load %arg11[%c15, %c0_25] : memref<96x128xbf16, #tpu.memory_space<vmem>>, vector<64x128xbf16>
    %c16_26 = arith.constant 16 : index
    %c0_27 = arith.constant 0 : index
    %34 = vector.load %arg11[%c16_26, %c0_27] : memref<96x128xbf16, #tpu.memory_space<vmem>>, vector<64x128xbf16>
    %35 = tpu.concatenate %33, %34 in 1 : vector<64x128xbf16>, vector<64x128xbf16> -> vector<64x256xbf16>
    %c2 = arith.constant 2 : index
    %c0_28 = arith.constant 0 : index
    %c0_29 = arith.constant 0 : index
    %36 = vector.load %arg4[%c2, %c0_28, %c0_29] : memref<6x256x128xbf16, #tpu.memory_space<vmem>>, vector<1x256x128xbf16>
    %37 = vector.shape_cast %36 : vector<1x256x128xbf16> to vector<256x128xbf16>
    %cst_30 = arith.constant dense<0.000000e+00> : vector<64x128xf32>
    %38 = tpu.matmul %35, %37, %cst_30 {dimension_numbers = #tpu.dot_dimension_numbers<[1], [0], [0], [1], [0, 0, 1, 1], [], []>} : vector<64x256xbf16>, vector<256x128xbf16>, vector<64x128xf32> -> vector<64x128xf32>
    %39 = arith.addf %32, %38 : vector<64x128xf32>
    %c17 = arith.constant 17 : index
    %c0_31 = arith.constant 0 : index
    %40 = vector.load %arg11[%c17, %c0_31] : memref<96x128xbf16, #tpu.memory_space<vmem>>, vector<64x128xbf16>
    %c18 = arith.constant 18 : index
    %c0_32 = arith.constant 0 : index
    %41 = vector.load %arg11[%c18, %c0_32] : memref<96x128xbf16, #tpu.memory_space<vmem>>, vector<64x128xbf16>
    %42 = tpu.concatenate %40, %41 in 1 : vector<64x128xbf16>, vector<64x128xbf16> -> vector<64x256xbf16>
    %c3 = arith.constant 3 : index
    %c0_33 = arith.constant 0 : index
    %c0_34 = arith.constant 0 : index
    %43 = vector.load %arg4[%c3, %c0_33, %c0_34] : memref<6x256x128xbf16, #tpu.memory_space<vmem>>, vector<1x256x128xbf16>
    %44 = vector.shape_cast %43 : vector<1x256x128xbf16> to vector<256x128xbf16>
    %cst_35 = arith.constant dense<0.000000e+00> : vector<64x128xf32>
    %45 = tpu.matmul %42, %44, %cst_35 {dimension_numbers = #tpu.dot_dimension_numbers<[1], [0], [0], [1], [0, 0, 1, 1], [], []>} : vector<64x256xbf16>, vector<256x128xbf16>, vector<64x128xf32> -> vector<64x128xf32>
    %46 = arith.addf %39, %45 : vector<64x128xf32>
    %c19 = arith.constant 19 : index
    %c0_36 = arith.constant 0 : index
    %47 = vector.load %arg11[%c19, %c0_36] : memref<96x128xbf16, #tpu.memory_space<vmem>>, vector<64x128xbf16>
    %c20 = arith.constant 20 : index
    %c0_37 = arith.constant 0 : index
    %48 = vector.load %arg11[%c20, %c0_37] : memref<96x128xbf16, #tpu.memory_space<vmem>>, vector<64x128xbf16>
    %49 = tpu.concatenate %47, %48 in 1 : vector<64x128xbf16>, vector<64x128xbf16> -> vector<64x256xbf16>
    %c4 = arith.constant 4 : index
    %c0_38 = arith.constant 0 : index
    %c0_39 = arith.constant 0 : index
    %50 = vector.load %arg4[%c4, %c0_38, %c0_39] : memref<6x256x128xbf16, #tpu.memory_space<vmem>>, vector<1x256x128xbf16>
    %51 = vector.shape_cast %50 : vector<1x256x128xbf16> to vector<256x128xbf16>
    %cst_40 = arith.constant dense<0.000000e+00> : vector<64x128xf32>
    %52 = tpu.matmul %49, %51, %cst_40 {dimension_numbers = #tpu.dot_dimension_numbers<[1], [0], [0], [1], [0, 0, 1, 1], [], []>} : vector<64x256xbf16>, vector<256x128xbf16>, vector<64x128xf32> -> vector<64x128xf32>
    %53 = arith.addf %46, %52 : vector<64x128xf32>
    %c21 = arith.constant 21 : index
    %c0_41 = arith.constant 0 : index
    %54 = vector.load %arg11[%c21, %c0_41] : memref<96x128xbf16, #tpu.memory_space<vmem>>, vector<64x128xbf16>
    %c22 = arith.constant 22 : index
    %c0_42 = arith.constant 0 : index
    %55 = vector.load %arg11[%c22, %c0_42] : memref<96x128xbf16, #tpu.memory_space<vmem>>, vector<64x128xbf16>
    %56 = tpu.concatenate %54, %55 in 1 : vector<64x128xbf16>, vector<64x128xbf16> -> vector<64x256xbf16>
    %c5 = arith.constant 5 : index
    %c0_43 = arith.constant 0 : index
    %c0_44 = arith.constant 0 : index
    %57 = vector.load %arg4[%c5, %c0_43, %c0_44] : memref<6x256x128xbf16, #tpu.memory_space<vmem>>, vector<1x256x128xbf16>
    %58 = vector.shape_cast %57 : vector<1x256x128xbf16> to vector<256x128xbf16>
    %cst_45 = arith.constant dense<0.000000e+00> : vector<64x128xf32>
    %59 = tpu.matmul %56, %58, %cst_45 {dimension_numbers = #tpu.dot_dimension_numbers<[1], [0], [0], [1], [0, 0, 1, 1], [], []>} : vector<64x256xbf16>, vector<256x128xbf16>, vector<64x128xf32> -> vector<64x128xf32>
    %60 = arith.addf %53, %59 : vector<64x128xf32>
    %c0_46 = arith.constant 0 : index
    %c0_47 = arith.constant 0 : index
    %61 = vector.load %arg6[%c0_46, %c0_47] : memref<1x128xf32, #tpu.memory_space<vmem>>, vector<1x128xf32>
    %62 = vector.broadcast %61 : vector<1x128xf32> to vector<64x128xf32>
    %63 = arith.mulf %60, %62 : vector<64x128xf32>
    %c0_48 = arith.constant 0 : index
    %c0_49 = arith.constant 0 : index
    %64 = vector.load %arg7[%c0_48, %c0_49] : memref<1x128xf32, #tpu.memory_space<vmem>>, vector<1x128xf32>
    %65 = vector.broadcast %64 : vector<1x128xf32> to vector<64x128xf32>
    %66 = arith.addf %63, %65 : vector<64x128xf32>
    %cst_50 = arith.constant 0.000000e+00 : f32
    %67 = vector.broadcast %cst_50 : f32 to vector<64x128xf32>
    %68 = arith.maximumf %66, %67 : vector<64x128xf32>
    %69 = arith.truncf %68 : vector<64x128xf32> to vector<64x128xbf16>
    %c16_51 = arith.constant 16 : index
    %c0_52 = arith.constant 0 : index
    %70 = vector.load %arg11[%c16_51, %c0_52] : memref<96x128xbf16, #tpu.memory_space<vmem>>, vector<64x128xbf16>
    tpu.vector_store %arg11[%c16_51, %c0_52], %69 {strides = array<i32>} : memref<96x128xbf16, #tpu.memory_space<vmem>>, vector<64x128xbf16>,
    %c0_53 = arith.constant 0 : index
    %c0_54 = arith.constant 0 : index
    %71 = vector.load %arg9[%c0_53, %c0_54] : memref<1x128xf32, #tpu.memory_space<vmem>>, vector<1x128xf32>
    %72 = vector.shape_cast %71 : vector<1x128xf32> to vector<1x128xf32>
    %73 = vector.broadcast %72 : vector<1x128xf32> to vector<64x128xf32>
    %c11_55 = arith.constant 11 : index
    %c0_56 = arith.constant 0 : index
    %74 = vector.load %arg11[%c11_55, %c0_56] : memref<96x128xbf16, #tpu.memory_space<vmem>>, vector<64x128xbf16>
    %c12_57 = arith.constant 12 : index
    %c0_58 = arith.constant 0 : index
    %75 = vector.load %arg11[%c12_57, %c0_58] : memref<96x128xbf16, #tpu.memory_space<vmem>>, vector<64x128xbf16>
    %76 = tpu.concatenate %74, %75 in 1 : vector<64x128xbf16>, vector<64x128xbf16> -> vector<64x256xbf16>
    %c0_59 = arith.constant 0 : index
    %c0_60 = arith.constant 0 : index
    %c0_61 = arith.constant 0 : index
    %77 = vector.load %arg8[%c0_59, %c0_60, %c0_61] : memref<6x256x128xbf16, #tpu.memory_space<vmem>>, vector<1x256x128xbf16>
    %78 = vector.shape_cast %77 : vector<1x256x128xbf16> to vector<256x128xbf16>
    %cst_62 = arith.constant dense<0.000000e+00> : vector<64x128xf32>
    %79 = tpu.matmul %76, %78, %cst_62 {dimension_numbers = #tpu.dot_dimension_numbers<[1], [0], [0], [1], [0, 0, 1, 1], [], []>} : vector<64x256xbf16>, vector<256x128xbf16>, vector<64x128xf32> -> vector<64x128xf32>
    %80 = arith.addf %73, %79 : vector<64x128xf32>
    %c13_63 = arith.constant 13 : index
    %c0_64 = arith.constant 0 : index
    %81 = vector.load %arg11[%c13_63, %c0_64] : memref<96x128xbf16, #tpu.memory_space<vmem>>, vector<64x128xbf16>
    %c14_65 = arith.constant 14 : index
    %c0_66 = arith.constant 0 : index
    %82 = vector.load %arg11[%c14_65, %c0_66] : memref<96x128xbf16, #tpu.memory_space<vmem>>, vector<64x128xbf16>
    %83 = tpu.concatenate %81, %82 in 1 : vector<64x128xbf16>, vector<64x128xbf16> -> vector<64x256xbf16>
    %c1_67 = arith.constant 1 : index
    %c0_68 = arith.constant 0 : index
    %c0_69 = arith.constant 0 : index
    %84 = vector.load %arg8[%c1_67, %c0_68, %c0_69] : memref<6x256x128xbf16, #tpu.memory_space<vmem>>, vector<1x256x128xbf16>
    %85 = vector.shape_cast %84 : vector<1x256x128xbf16> to vector<256x128xbf16>
    %cst_70 = arith.constant dense<0.000000e+00> : vector<64x128xf32>
    %86 = tpu.matmul %83, %85, %cst_70 {dimension_numbers = #tpu.dot_dimension_numbers<[1], [0], [0], [1], [0, 0, 1, 1], [], []>} : vector<64x256xbf16>, vector<256x128xbf16>, vector<64x128xf32> -> vector<64x128xf32>
    %87 = arith.addf %80, %86 : vector<64x128xf32>
    %c15_71 = arith.constant 15 : index
    %c0_72 = arith.constant 0 : index
    %88 = vector.load %arg11[%c15_71, %c0_72] : memref<96x128xbf16, #tpu.memory_space<vmem>>, vector<64x128xbf16>
    %c16_73 = arith.constant 16 : index
    %c0_74 = arith.constant 0 : index
    %89 = vector.load %arg11[%c16_73, %c0_74] : memref<96x128xbf16, #tpu.memory_space<vmem>>, vector<64x128xbf16>
    %90 = tpu.concatenate %88, %89 in 1 : vector<64x128xbf16>, vector<64x128xbf16> -> vector<64x256xbf16>
    %c2_75 = arith.constant 2 : index
    %c0_76 = arith.constant 0 : index
    %c0_77 = arith.constant 0 : index
    %91 = vector.load %arg8[%c2_75, %c0_76, %c0_77] : memref<6x256x128xbf16, #tpu.memory_space<vmem>>, vector<1x256x128xbf16>
    %92 = vector.shape_cast %91 : vector<1x256x128xbf16> to vector<256x128xbf16>
    %cst_78 = arith.constant dense<0.000000e+00> : vector<64x128xf32>
    %93 = tpu.matmul %90, %92, %cst_78 {dimension_numbers = #tpu.dot_dimension_numbers<[1], [0], [0], [1], [0, 0, 1, 1], [], []>} : vector<64x256xbf16>, vector<256x128xbf16>, vector<64x128xf32> -> vector<64x128xf32>
    %94 = arith.addf %87, %93 : vector<64x128xf32>
    %c17_79 = arith.constant 17 : index
    %c0_80 = arith.constant 0 : index
    %95 = vector.load %arg11[%c17_79, %c0_80] : memref<96x128xbf16, #tpu.memory_space<vmem>>, vector<64x128xbf16>
    %c18_81 = arith.constant 18 : index
    %c0_82 = arith.constant 0 : index
    %96 = vector.load %arg11[%c18_81, %c0_82] : memref<96x128xbf16, #tpu.memory_space<vmem>>, vector<64x128xbf16>
    %97 = tpu.concatenate %95, %96 in 1 : vector<64x128xbf16>, vector<64x128xbf16> -> vector<64x256xbf16>
    %c3_83 = arith.constant 3 : index
    %c0_84 = arith.constant 0 : index
    %c0_85 = arith.constant 0 : index
    %98 = vector.load %arg8[%c3_83, %c0_84, %c0_85] : memref<6x256x128xbf16, #tpu.memory_space<vmem>>, vector<1x256x128xbf16>
    %99 = vector.shape_cast %98 : vector<1x256x128xbf16> to vector<256x128xbf16>
    %cst_86 = arith.constant dense<0.000000e+00> : vector<64x128xf32>
    %100 = tpu.matmul %97, %99, %cst_86 {dimension_numbers = #tpu.dot_dimension_numbers<[1], [0], [0], [1], [0, 0, 1, 1], [], []>} : vector<64x256xbf16>, vector<256x128xbf16>, vector<64x128xf32> -> vector<64x128xf32>
    %101 = arith.addf %94, %100 : vector<64x128xf32>
    %c19_87 = arith.constant 19 : index
    %c0_88 = arith.constant 0 : index
    %102 = vector.load %arg11[%c19_87, %c0_88] : memref<96x128xbf16, #tpu.memory_space<vmem>>, vector<64x128xbf16>
    %c20_89 = arith.constant 20 : index
    %c0_90 = arith.constant 0 : index
    %103 = vector.load %arg11[%c20_89, %c0_90] : memref<96x128xbf16, #tpu.memory_space<vmem>>, vector<64x128xbf16>
    %104 = tpu.concatenate %102, %103 in 1 : vector<64x128xbf16>, vector<64x128xbf16> -> vector<64x256xbf16>
    %c4_91 = arith.constant 4 : index
    %c0_92 = arith.constant 0 : index
    %c0_93 = arith.constant 0 : index
    %105 = vector.load %arg8[%c4_91, %c0_92, %c0_93] : memref<6x256x128xbf16, #tpu.memory_space<vmem>>, vector<1x256x128xbf16>
    %106 = vector.shape_cast %105 : vector<1x256x128xbf16> to vector<256x128xbf16>
    %cst_94 = arith.constant dense<0.000000e+00> : vector<64x128xf32>
    %107 = tpu.matmul %104, %106, %cst_94 {dimension_numbers = #tpu.dot_dimension_numbers<[1], [0], [0], [1], [0, 0, 1, 1], [], []>} : vector<64x256xbf16>, vector<256x128xbf16>, vector<64x128xf32> -> vector<64x128xf32>
    %108 = arith.addf %101, %107 : vector<64x128xf32>
    %c21_95 = arith.constant 21 : index
    %c0_96 = arith.constant 0 : index
    %109 = vector.load %arg11[%c21_95, %c0_96] : memref<96x128xbf16, #tpu.memory_space<vmem>>, vector<64x128xbf16>
    %c22_97 = arith.constant 22 : index
    %c0_98 = arith.constant 0 : index
    %110 = vector.load %arg11[%c22_97, %c0_98] : memref<96x128xbf16, #tpu.memory_space<vmem>>, vector<64x128xbf16>
    %111 = tpu.concatenate %109, %110 in 1 : vector<64x128xbf16>, vector<64x128xbf16> -> vector<64x256xbf16>
    %c5_99 = arith.constant 5 : index
    %c0_100 = arith.constant 0 : index
    %c0_101 = arith.constant 0 : index
    %112 = vector.load %arg8[%c5_99, %c0_100, %c0_101] : memref<6x256x128xbf16, #tpu.memory_space<vmem>>, vector<1x256x128xbf16>
    %113 = vector.shape_cast %112 : vector<1x256x128xbf16> to vector<256x128xbf16>
    %cst_102 = arith.constant dense<0.000000e+00> : vector<64x128xf32>
    %114 = tpu.matmul %111, %113, %cst_102 {dimension_numbers = #tpu.dot_dimension_numbers<[1], [0], [0], [1], [0, 0, 1, 1], [], []>} : vector<64x256xbf16>, vector<256x128xbf16>, vector<64x128xf32> -> vector<64x128xf32>
    %115 = arith.addf %108, %114 : vector<64x128xf32>
    %116 = arith.addf %115, %1 : vector<64x128xf32>
    %c0_103 = arith.constant 0 : index
    %c0_104 = arith.constant 0 : index
    %c0_105 = arith.constant 0 : index
    %117 = vector.load %arg10[%c0_103, %c0_104, %c0_105] : memref<1x64x128xf32, #tpu.memory_space<vmem>>, vector<1x64x128xf32>
    %118 = vector.shape_cast %117 : vector<1x64x128xf32> to vector<64x128xf32>
    %119 = vector.shape_cast %116 : vector<64x128xf32> to vector<1x64x128xf32>
    tpu.vector_store %arg10[%c0_103, %c0_104, %c0_105], %119 {strides = array<i32>} : memref<1x64x128xf32, #tpu.memory_space<vmem>>, vector<1x64x128xf32>,
    return
  }
  func.func @transform_0(%arg0: i32) -> (i32, i32, i32) {
    %c0_i32 = arith.constant 0 : i32
    %c0_i32_0 = arith.constant 0 : i32
    %c0_i32_1 = arith.constant 0 : i32
    return %arg0, %c0_i32, %c0_i32_0 : i32, i32, i32
  }
  func.func @transform_1(%arg0: i32) -> (i32, i32) {
    %c0_i32 = arith.constant 0 : i32
    %c0_i32_0 = arith.constant 0 : i32
    %c0_i32_1 = arith.constant 0 : i32
    return %c0_i32, %c0_i32_0 : i32, i32
  }
  func.func @transform_2(%arg0: i32) -> (i32, i32) {
    %c0_i32 = arith.constant 0 : i32
    %c0_i32_0 = arith.constant 0 : i32
    %c0_i32_1 = arith.constant 0 : i32
    return %c0_i32, %c0_i32_0 : i32, i32
  }
  func.func @transform_3(%arg0: i32) -> (i32, i32, i32) {
    %c0_i32 = arith.constant 0 : i32
    %c0_i32_0 = arith.constant 0 : i32
    %c0_i32_1 = arith.constant 0 : i32
    %c0_i32_2 = arith.constant 0 : i32
    return %c0_i32, %c0_i32_0, %c0_i32_1 : i32, i32, i32
  }
  func.func @transform_4(%arg0: i32) -> (i32, i32) {
    %c0_i32 = arith.constant 0 : i32
    %c0_i32_0 = arith.constant 0 : i32
    %c0_i32_1 = arith.constant 0 : i32
    return %c0_i32, %c0_i32_0 : i32, i32
  }
  func.func @transform_5(%arg0: i32) -> (i32, i32) {
    %c0_i32 = arith.constant 0 : i32
    %c0_i32_0 = arith.constant 0 : i32
    %c0_i32_1 = arith.constant 0 : i32
    return %c0_i32, %c0_i32_0 : i32, i32
  }
  func.func @transform_6(%arg0: i32) -> (i32, i32) {
    %c0_i32 = arith.constant 0 : i32
    %c0_i32_0 = arith.constant 0 : i32
    %c0_i32_1 = arith.constant 0 : i32
    return %c0_i32, %c0_i32_0 : i32, i32
  }
  func.func @transform_7(%arg0: i32) -> (i32, i32, i32) {
    %c0_i32 = arith.constant 0 : i32
    %c0_i32_0 = arith.constant 0 : i32
    %c0_i32_1 = arith.constant 0 : i32
    %c0_i32_2 = arith.constant 0 : i32
    return %c0_i32, %c0_i32_0, %c0_i32_1 : i32, i32, i32
  }
  func.func @transform_8(%arg0: i32) -> (i32, i32) {
    %c0_i32 = arith.constant 0 : i32
    %c0_i32_0 = arith.constant 0 : i32
    %c0_i32_1 = arith.constant 0 : i32
    return %c0_i32, %c0_i32_0 : i32, i32
  }
  func.func @transform_9(%arg0: i32) -> (i32, i32, i32) {
    %c0_i32 = arith.constant 0 : i32
    %c0_i32_0 = arith.constant 0 : i32
    %c0_i32_1 = arith.constant 0 : i32
    return %arg0, %c0_i32, %c0_i32_0 : i32, i32, i32
  }
}

</mosaic_0001>

<llo_original>
// kernel: tpu_custom_call.1
$region0: #{tpu_custom_call.1}
  #allocation0 [shape = 'u32[]', space=smem, size = 0x4, offset = 0x4, fixed_abs, tag = 'smem constant byte address 0x4 - core index']
  #allocation1 [shape = 'u32[144,128]{1,0:T(1,128)}', space=vmem, size = 0x12000, scoped, tag = 'internal scratch']
  #allocation2 [shape = 'bf16[96,128]{1,0:T(16,128)(2,1)}', space=vmem, size = 0x6000, scoped, tag = 'scratch operand']
  %s0 = inlined_call_operand.hbm [shape: f32[2,64,128], index: 0, kind: input, shape index: {}]
  %s1 = inlined_call_operand.vmem [shape: f32[1,128], index: 1, kind: input, shape index: {}]
  %s2 = inlined_call_operand.vmem [shape: f32[1,128], index: 2, kind: input, shape index: {}]
  %s3 = inlined_call_operand.hbm [shape: bf16[6,256,128], index: 3, kind: input, shape index: {}]
  %s4 = inlined_call_operand.vmem [shape: f32[1,128], index: 4, kind: input, shape index: {}]
  %s5 = inlined_call_operand.vmem [shape: f32[1,128], index: 5, kind: input, shape index: {}]
  %s6 = inlined_call_operand.vmem [shape: f32[1,128], index: 6, kind: input, shape index: {}]
  %s7 = inlined_call_operand.hbm [shape: bf16[6,256,128], index: 7, kind: input, shape index: {}]
  %s8 = inlined_call_operand.vmem [shape: f32[1,128], index: 8, kind: input, shape index: {}]
  %s9 = inlined_call_operand.hbm [shape: f32[2,64,128], index: 9, kind: output, shape index: {}]
  %s10 = sld [smem:[#allocation0]]
  $region81: #{tpu_custom_call.1} parent=0
    _
  %s12 = ssub.s32 1, %s10
  %s13 = scalar_select 0, %s12, %s10
  $region1: #{tpu_custom_call.1} parent=0
    #allocation3 [shape = 'u8[65536]{0}', space=vmem, size = 0x10000, scoped, tag = 'input window, operand 0']
    #allocation4 [shape = 's32[2]{0}', space=sflag, size = 0x8, scoped, tag = 'scoped memory for tpu_custom_call.1']
    #allocation5 [shape = 's32[2]{0}', space=sflag, size = 0x8, scoped, tag = 'scoped memory for tpu_custom_call.1']
    #allocation6 [shape = 'u8[393216]{0}', space=vmem, size = 0x60000, scoped, tag = 'input window, operand 3, single buffered']
    #allocation7 [shape = 's32[1]{0}', space=sflag, size = 0x4, scoped, tag = 'scoped memory for tpu_custom_call.1']
    #allocation8 [shape = 'u8[393216]{0}', space=vmem, size = 0x60000, scoped, tag = 'input window, operand 7, single buffered']
    #allocation9 [shape = 'u8[65536]{0}', space=vmem, size = 0x10000, scoped, tag = 'output window, operand 0']
    %14 = vsyncpa [#allocation4], 0
    %s15 = scalar_lea.sflag [#allocation4], 1
    %16 = vsyncpa %s15, 0
    %17 = vsyncpa [#allocation7], 0
    %18 = vsyncpa [#allocation5], 0
    %s19 = scalar_lea.sflag [#allocation5], 1
    %20 = vsyncpa %s19, 0
    loop: start=0, step=1, limit=4
    $region2: #{tpu_custom_call.1} parent=1 // loop_pre_header
      _
    $region3: #{tpu_custom_call.1} parent=1 // loop_header
      %s22 = sphi 0, %s26
      %p23 = scmp.ge.s32.totalorder %s22, 4
      %s32 = sphi 0, %s34
      %s35 = sphi 0, %s32
      %s36 = sphi 0, %s35
      %s52 = sphi 0, %s36
      %s56 = sphi 0, %s56
      %s58 = sphi 0, %s56
      %s59 = sphi 0, %s58
      %s73 = sphi 0, %s59
      %s77 = sphi 0, %s77
      %s79 = sphi 0, %s77
      %s80 = sphi 0, %s79
      %s94 = sphi 0, %s80
      %s98 = sphi 0, %s98
      %s100 = sphi 0, %s98
      %s101 = sphi 0, %s100
      %s115 = sphi 0, %s101
      %s119 = sphi 0, %s119
      %s121 = sphi 0, %s119
      %s122 = sphi 0, %s121
      %s136 = sphi 0, %s122
      %s140 = sphi 0, %s140
      %s142 = sphi 0, %s140
      %s143 = sphi 0, %s142
      %s157 = sphi 0, %s143
      %s161 = sphi 0, %s161
      %s163 = sphi 0, %s161
      %s164 = sphi 0, %s163
      %s178 = sphi 0, %s164
      %s182 = sphi 0, %s182
      %s184 = sphi 0, %s182
      %s185 = sphi 0, %s184
      %s199 = sphi 0, %s185
      %s203 = sphi 0, %s203
      %s205 = sphi 0, %s203
      %s206 = sphi 0, %s205
      %s220 = sphi 0, %s206
      %s226 = sphi 0, %s228
      %s229 = sphi 0, %s226
      %s230 = sphi 0, %s229
      %s246 = sphi 0, %s230
    $region4: #{tpu_custom_call.1} parent=1 // loop_header_branch
      %25 = sbr.rel (%p23) target = $region8
    $region5: #{tpu_custom_call.1} parent=1 // loop_body
      %s27 = ssub.s32 %s22, 1
      %s28 = ssub.s32 %s22, 2
      %s29 = sadd.s32 %s22, 1
      %s30 = ssub.s32 %s22, %s29
      %p31 = scmp.eq.s32.totalorder %s30, 0
      %s33 = sadd.s32 %s32, 1
      %s34 = scalar_select %p31, %s32, %s33
      %p37 = pneg %p31
      %p38 = scmp.eq.s32.totalorder %s22, 1
      %p39 = por %p37, %p38
      %p40 = scmp.ne.s32.totalorder %s32, %s35
      %p41 = scmp.eq.s32.totalorder %s22, 0
      %p42 = por %p40, %p41
      %p43 = scmp.ne.s32.totalorder %s32, %s35
      %p44 = scmp.eq.s32.totalorder %s27, 1
      %p45 = por %p43, %p44
      %p46 = scmp.ne.s32.totalorder %s35, %s36
      %p47 = scmp.eq.s32.totalorder %s27, 0
      %p48 = por %p46, %p47
      %p49 = scmp.ne.s32.totalorder %s35, %s36
      %p50 = scmp.eq.s32.totalorder %s28, 1
      %p51 = por %p49, %p50
      %p53 = scmp.ne.s32.totalorder %s36, %s52
      %p54 = scmp.eq.s32.totalorder %s28, 0
      %p55 = por %p53, %p54
      %s57 = sadd.s32 %s56, 1
      %p60 = scmp.eq.s32.totalorder %s22, 1
      %p61 = scmp.ne.s32.totalorder %s56, %s58
      %p62 = scmp.eq.s32.totalorder %s22, 0
      %p63 = por %p61, %p62
      %p64 = scmp.ne.s32.totalorder %s56, %s58
      %p65 = scmp.eq.s32.totalorder %s27, 1
      %p66 = por %p64, %p65
      %p67 = scmp.ne.s32.totalorder %s58, %s59
      %p68 = scmp.eq.s32.totalorder %s27, 0
      %p69 = por %p67, %p68
      %p70 = scmp.ne.s32.totalorder %s58, %s59
      %p71 = scmp.eq.s32.totalorder %s28, 1
      %p72 = por %p70, %p71
      %p74 = scmp.ne.s32.totalorder %s59, %s73
      %p75 = scmp.eq.s32.totalorder %s28, 0
      %p76 = por %p74, %p75
      %s78 = sadd.s32 %s77, 1
      %p81 = scmp.eq.s32.totalorder %s22, 1
      %p82 = scmp.ne.s32.totalorder %s77, %s79
      %p83 = scmp.eq.s32.totalorder %s22, 0
      %p84 = por %p82, %p83
      %p85 = scmp.ne.s32.totalorder %s77, %s79
      %p86 = scmp.eq.s32.totalorder %s27, 1
      %p87 = por %p85, %p86
      %p88 = scmp.ne.s32.totalorder %s79, %s80
      %p89 = scmp.eq.s32.totalorder %s27, 0
      %p90 = por %p88, %p89
      %p91 = scmp.ne.s32.totalorder %s79, %s80
      %p92 = scmp.eq.s32.totalorder %s28, 1
      %p93 = por %p91, %p92
      %p95 = scmp.ne.s32.totalorder %s80, %s94
      %p96 = scmp.eq.s32.totalorder %s28, 0
      %p97 = por %p95, %p96
      %s99 = sadd.s32 %s98, 1
      %p102 = scmp.eq.s32.totalorder %s22, 1
      %p103 = scmp.ne.s32.totalorder %s98, %s100
      %p104 = scmp.eq.s32.totalorder %s22, 0
      %p105 = por %p103, %p104
      %p106 = scmp.ne.s32.totalorder %s98, %s100
      %p107 = scmp.eq.s32.totalorder %s27, 1
      %p108 = por %p106, %p107
      %p109 = scmp.ne.s32.totalorder %s100, %s101
      %p110 = scmp.eq.s32.totalorder %s27, 0
      %p111 = por %p109, %p110
      %p112 = scmp.ne.s32.totalorder %s100, %s101
      %p113 = scmp.eq.s32.totalorder %s28, 1
      %p114 = por %p112, %p113
      %p116 = scmp.ne.s32.totalorder %s101, %s115
      %p117 = scmp.eq.s32.totalorder %s28, 0
      %p118 = por %p116, %p117
      %s120 = sadd.s32 %s119, 1
      %p123 = scmp.eq.s32.totalorder %s22, 1
      %p124 = scmp.ne.s32.totalorder %s119, %s121
      %p125 = scmp.eq.s32.totalorder %s22, 0
      %p126 = por %p124, %p125
      %p127 = scmp.ne.s32.totalorder %s119, %s121
      %p128 = scmp.eq.s32.totalorder %s27, 1
      %p129 = por %p127, %p128
      %p130 = scmp.ne.s32.totalorder %s121, %s122
      %p131 = scmp.eq.s32.totalorder %s27, 0
      %p132 = por %p130, %p131
      %p133 = scmp.ne.s32.totalorder %s121, %s122
      %p134 = scmp.eq.s32.totalorder %s28, 1
      %p135 = por %p133, %p134
      %p137 = scmp.ne.s32.totalorder %s122, %s136
      %p138 = scmp.eq.s32.totalorder %s28, 0
      %p139 = por %p137, %p138
      %s141 = sadd.s32 %s140, 1
      %p144 = scmp.eq.s32.totalorder %s22, 1
      %p145 = scmp.ne.s32.totalorder %s140, %s142
      %p146 = scmp.eq.s32.totalorder %s22, 0
      %p147 = por %p145, %p146
      %p148 = scmp.ne.s32.totalorder %s140, %s142
      %p149 = scmp.eq.s32.totalorder %s27, 1
      %p150 = por %p148, %p149
      %p151 = scmp.ne.s32.totalorder %s142, %s143
      %p152 = scmp.eq.s32.totalorder %s27, 0
      %p153 = por %p151, %p152
      %p154 = scmp.ne.s32.totalorder %s142, %s143
      %p155 = scmp.eq.s32.totalorder %s28, 1
      %p156 = por %p154, %p155
      %p158 = scmp.ne.s32.totalorder %s143, %s157
      %p159 = scmp.eq.s32.totalorder %s28, 0
      %p160 = por %p158, %p159
      %s162 = sadd.s32 %s161, 1
      %p165 = scmp.eq.s32.totalorder %s22, 1
      %p166 = scmp.ne.s32.totalorder %s161, %s163
      %p167 = scmp.eq.s32.totalorder %s22, 0
      %p168 = por %p166, %p167
      %p169 = scmp.ne.s32.totalorder %s161, %s163
      %p170 = scmp.eq.s32.totalorder %s27, 1
      %p171 = por %p169, %p170
      %p172 = scmp.ne.s32.totalorder %s163, %s164
      %p173 = scmp.eq.s32.totalorder %s27, 0
      %p174 = por %p172, %p173
      %p175 = scmp.ne.s32.totalorder %s163, %s164
      %p176 = scmp.eq.s32.totalorder %s28, 1
      %p177 = por %p175, %p176
      %p179 = scmp.ne.s32.totalorder %s164, %s178
      %p180 = scmp.eq.s32.totalorder %s28, 0
      %p181 = por %p179, %p180
      %s183 = sadd.s32 %s182, 1
      %p186 = scmp.eq.s32.totalorder %s22, 1
      %p187 = scmp.ne.s32.totalorder %s182, %s184
      %p188 = scmp.eq.s32.totalorder %s22, 0
      %p189 = por %p187, %p188
      %p190 = scmp.ne.s32.totalorder %s182, %s184
      %p191 = scmp.eq.s32.totalorder %s27, 1
      %p192 = por %p190, %p191
      %p193 = scmp.ne.s32.totalorder %s184, %s185
      %p194 = scmp.eq.s32.totalorder %s27, 0
      %p195 = por %p193, %p194
      %p196 = scmp.ne.s32.totalorder %s184, %s185
      %p197 = scmp.eq.s32.totalorder %s28, 1
      %p198 = por %p196, %p197
      %p200 = scmp.ne.s32.totalorder %s185, %s199
      %p201 = scmp.eq.s32.totalorder %s28, 0
      %p202 = por %p200, %p201
      %s204 = sadd.s32 %s203, 1
      %p207 = scmp.eq.s32.totalorder %s22, 1
      %p208 = scmp.ne.s32.totalorder %s203, %s205
      %p209 = scmp.eq.s32.totalorder %s22, 0
      %p210 = por %p208, %p209
      %p211 = scmp.ne.s32.totalorder %s203, %s205
      %p212 = scmp.eq.s32.totalorder %s27, 1
      %p213 = por %p211, %p212
      %p214 = scmp.ne.s32.totalorder %s205, %s206
      %p215 = scmp.eq.s32.totalorder %s27, 0
      %p216 = por %p214, %p215
      %p217 = scmp.ne.s32.totalorder %s205, %s206
      %p218 = scmp.eq.s32.totalorder %s28, 1
      %p219 = por %p217, %p218
      %p221 = scmp.ne.s32.totalorder %s206, %s220
      %p222 = scmp.eq.s32.totalorder %s28, 0
      %p223 = por %p221, %p222
      %s224 = ssub.s32 %s22, %s29
      %p225 = scmp.eq.s32.totalorder %s224, 0
      %s227 = sadd.s32 %s226, 1
      %s228 = scalar_select %p225, %s226, %s227
      %p231 = pneg %p225
      %p232 = scmp.eq.s32.totalorder %s22, 1
      %p233 = por %p231, %p232
      %p234 = scmp.ne.s32.totalorder %s226, %s229
      %p235 = scmp.eq.s32.totalorder %s22, 0
      %p236 = por %p234, %p235
      %p237 = scmp.ne.s32.totalorder %s226, %s229
      %p238 = scmp.eq.s32.totalorder %s27, 1
      %p239 = por %p237, %p238
      %p240 = scmp.ne.s32.totalorder %s229, %s230
      %p241 = scmp.eq.s32.totalorder %s27, 0
      %p242 = por %p240, %p241
      %p243 = scmp.ne.s32.totalorder %s229, %s230
      %p244 = scmp.eq.s32.totalorder %s28, 1
      %p245 = por %p243, %p244
      %p247 = scmp.ne.s32.totalorder %s230, %s246
      %p248 = scmp.eq.s32.totalorder %s28, 0
      %p249 = por %p247, %p248
      %p250 = scmp.le.s32.totalorder 1, %s22
      %p251 = scmp.lt.s32.totalorder %s22, 3
      %p252 = pnand %p250, %p251
      %p253 = pneg %p252
      // Predicated region
      $region9: #{tpu_custom_call.1} parent=5 // pred_check
        _
      $region10: #{tpu_custom_call.1} parent=5 // pred_check_branch
        %255 = sbr.rel (%p252) target = $region12
      $region11: #{tpu_custom_call.1} parent=5 // pred_region
        %s256 = ssub.s32 %s22, 1
        // Predicated region
        $region13: #{tpu_custom_call.1} parent=11 // pred_check
          %p257 = pneg %p69
        $region14: #{tpu_custom_call.1} parent=11 // pred_check_branch
          %259 = sbr.rel (%p257) target = $region16
        $region15: #{tpu_custom_call.1} parent=11 // pred_region
          _
        $region16: #{tpu_custom_call.1} parent=11 // pred_fallthru
          _
        // Predicated region
        $region17: #{tpu_custom_call.1} parent=11 // pred_check
          %p260 = pneg %p90
        $region18: #{tpu_custom_call.1} parent=11 // pred_check_branch
          %262 = sbr.rel (%p260) target = $region20
        $region19: #{tpu_custom_call.1} parent=11 // pred_region
          _
        $region20: #{tpu_custom_call.1} parent=11 // pred_fallthru
          _
        // Predicated region
        $region21: #{tpu_custom_call.1} parent=11 // pred_check
          %p263 = pneg %p111
        $region22: #{tpu_custom_call.1} parent=11 // pred_check_branch
          %265 = sbr.rel (%p263) target = $region24
        $region23: #{tpu_custom_call.1} parent=11 // pred_region
          %s267 = ssub.s32 12288, 12288
          %268 = vsyncadd [#allocation7], %s267
          %s269 = sshll.u32 [#allocation6], 4
          %s270 = int_to_ptr.vmem [resolvable:$true] %s269
          %275 = dma.hbm_to_vmem [thread:$0]  %s3, 12288, %s270, [#allocation7], 64, 64, 4
        $region24: #{tpu_custom_call.1} parent=11 // pred_fallthru
          _
        // Predicated region
        $region25: #{tpu_custom_call.1} parent=11 // pred_check
          %p276 = pneg %p132
        $region26: #{tpu_custom_call.1} parent=11 // pred_check_branch
          %278 = sbr.rel (%p276) target = $region28
        $region27: #{tpu_custom_call.1} parent=11 // pred_region
          _
        $region28: #{tpu_custom_call.1} parent=11 // pred_fallthru
          _
        // Predicated region
        $region29: #{tpu_custom_call.1} parent=11 // pred_check
          %p279 = pneg %p153
        $region30: #{tpu_custom_call.1} parent=11 // pred_check_branch
          %281 = sbr.rel (%p279) target = $region32
        $region31: #{tpu_custom_call.1} parent=11 // pred_region
          _
        $region32: #{tpu_custom_call.1} parent=11 // pred_fallthru
          _
        // Predicated region
        $region33: #{tpu_custom_call.1} parent=11 // pred_check
          %p282 = pneg %p174
        $region34: #{tpu_custom_call.1} parent=11 // pred_check_branch
          %284 = sbr.rel (%p282) target = $region36
        $region35: #{tpu_custom_call.1} parent=11 // pred_region
          _
        $region36: #{tpu_custom_call.1} parent=11 // pred_fallthru
          _
        // Predicated region
        $region37: #{tpu_custom_call.1} parent=11 // pred_check
          %p285 = pneg %p195
        $region38: #{tpu_custom_call.1} parent=11 // pred_check_branch
          %287 = sbr.rel (%p285) target = $region40
        $region39: #{tpu_custom_call.1} parent=11 // pred_region
          %s289 = ssub.s32 12288, 12288
          %290 = vsyncadd [#allocation7], %s289
          %s291 = sshll.u32 [#allocation8], 4
          %s292 = int_to_ptr.vmem [resolvable:$true] %s291
          %297 = dma.hbm_to_vmem [thread:$0]  %s7, 12288, %s292, [#allocation7], 64, 64, 4
        $region40: #{tpu_custom_call.1} parent=11 // pred_fallthru
          _
        // Predicated region
        $region41: #{tpu_custom_call.1} parent=11 // pred_check
          %p298 = pneg %p216
        $region42: #{tpu_custom_call.1} parent=11 // pred_check_branch
          %300 = sbr.rel (%p298) target = $region44
        $region43: #{tpu_custom_call.1} parent=11 // pred_region
          _
        $region44: #{tpu_custom_call.1} parent=11 // pred_fallthru
          _
      $region12: #{tpu_custom_call.1} parent=5 // pred_fallthru
        _
      %p301 = scmp.lt.s32.totalorder %s22, 2
      // Predicated region
      $region45: #{tpu_custom_call.1} parent=5 // pred_check
        %p302 = pneg %p301
      $region46: #{tpu_custom_call.1} parent=5 // pred_check_branch
        %304 = sbr.rel (%p302) target = $region48
      $region47: #{tpu_custom_call.1} parent=5 // pred_region
        // Predicated region
        $region49: #{tpu_custom_call.1} parent=47 // pred_check
          %p305 = pneg %p42
        $region50: #{tpu_custom_call.1} parent=47 // pred_check_branch
          %307 = sbr.rel (%p305) target = $region52
        $region51: #{tpu_custom_call.1} parent=47 // pred_region
          %s308 = sand.u32 %s32, 1
          %s309 = scalar_lea.sflag [#allocation4], %s308
          %s310 = sand.u32 %s32, 1
          %s311 = smul.addr %s310, 64
          %s312 = scalar_lea.vmem [#allocation3], %s311
          %s314 = ssub.s32 1024, 1024
          %315 = vsyncadd %s309, %s314
          %s316 = smul.addr %s22, 8
          %s317 = smul.addr %s316, 128
          %s318 = scalar_lea.hbm %s0, %s317
          %s319 = sshll.u32 %s312, 4
          %s320 = int_to_ptr.vmem [resolvable:$true] %s319
          %325 = dma.hbm_to_vmem [thread:$0]  %s318, 1024, %s320, %s309, 128, 128, 8
        $region52: #{tpu_custom_call.1} parent=47 // pred_fallthru
          _
      $region48: #{tpu_custom_call.1} parent=5 // pred_fallthru
        _
      %p326 = scmp.le.s32.totalorder 1, %s22
      %p327 = scmp.lt.s32.totalorder %s22, 3
      %p328 = pnand %p326, %p327
      %p329 = pneg %p328
      // Predicated region
      $region53: #{tpu_custom_call.1} parent=5 // pred_check
        _
      $region54: #{tpu_custom_call.1} parent=5 // pred_check_branch
        %331 = sbr.rel (%p328) target = $region56
      $region55: #{tpu_custom_call.1} parent=5 // pred_region
        %s332 = ssub.s32 %s22, 1
        %s333 = sand.u32 %s35, 1
        %s334 = scalar_lea.sflag [#allocation4], %s333
        %s335 = sand.u32 %s35, 1
        %s336 = smul.addr %s335, 64
        %s337 = scalar_lea.vmem [#allocation3], %s336
        // Predicated region
        $region57: #{tpu_custom_call.1} parent=55 // pred_check
          %p338 = pneg %p48
        $region58: #{tpu_custom_call.1} parent=55 // pred_check_branch
          %340 = sbr.rel (%p338) target = $region60
        $region59: #{tpu_custom_call.1} parent=55 // pred_region
          %341 = dma.done %s334, 1024
        $region60: #{tpu_custom_call.1} parent=55 // pred_fallthru
          _
        // Predicated region
        $region61: #{tpu_custom_call.1} parent=55 // pred_check
          %p342 = pneg %p111
        $region62: #{tpu_custom_call.1} parent=55 // pred_check_branch
          %344 = sbr.rel (%p342) target = $region64
        $region63: #{tpu_custom_call.1} parent=55 // pred_region
          %345 = dma.done [#allocation7], 12288
        $region64: #{tpu_custom_call.1} parent=55 // pred_fallthru
          _
        // Predicated region
        $region65: #{tpu_custom_call.1} parent=55 // pred_check
          %p346 = pneg %p195
        $region66: #{tpu_custom_call.1} parent=55 // pred_check_branch
          %348 = sbr.rel (%p346) target = $region68
        $region67: #{tpu_custom_call.1} parent=55 // pred_region
          %349 = dma.done [#allocation7], 12288
        $region68: #{tpu_custom_call.1} parent=55 // pred_fallthru
          _
        %s350 = sand.u32 %s35, 1
        %s351 = scalar_lea.sflag [#allocation4], %s350
        %s352 = sand.u32 %s35, 1
        %s353 = smul.addr %s352, 64
        %s354 = scalar_lea.vmem [#allocation3], %s353
        %p355 = pneg %p48
        %p356 = pneg %p45
        %p357 = pneg %p69
        %p358 = pneg %p66
        %p359 = pneg %p90
        %p360 = pneg %p87
        %p361 = pneg %p111
        %p362 = pneg %p108
        %p363 = pneg %p132
        %p364 = pneg %p129
        %p365 = pneg %p153
        %p366 = pneg %p150
        %p367 = pneg %p174
        %p368 = pneg %p171
        %p369 = pneg %p195
        %p370 = pneg %p192
        %p371 = pneg %p216
        %p372 = pneg %p213
        %p373 = pneg %p242
        %p374 = pneg %p239
        %s375 = sand.u32 %s229, 1
        %s376 = scalar_lea.sflag [#allocation5], %s375
        %s377 = sand.u32 %s229, 1
        %s378 = smul.addr %s377, 64
        %s379 = scalar_lea.vmem [#allocation9], %s378
        %v381 = vld [vmem:[%s337] sm:$0xff]
        %v382 = vld [vmem:[%s337 + $0x8] sm:$0xff]
        %v383 = vld [vmem:[%s337 + $0x10] sm:$0xff]
        %v384 = vld [vmem:[%s337 + $0x18] sm:$0xff]
        %v385 = vld [vmem:[%s337 + $0x20] sm:$0xff]
        %v386 = vld [vmem:[%s337 + $0x28] sm:$0xff]
        %v387 = vld [vmem:[%s337 + $0x30] sm:$0xff]
        %v388 = vld [vmem:[%s337 + $0x38] sm:$0xff]
        %389 = vst [vmem:[#allocation2] sm:$0xff] 0
        %390 = vst [vmem:[#allocation2 + $0x28] sm:$0xff] 0
        %v391 = vld [vmem:[%s1] sm:$0x1]
        %v393 = vlaneseq
        %v394 = vshrl.u32 %v393, 7
        %v395 = vsub.s32 0, %v394
        %v396 = vrot.slane %v391, %v395
        %v398 = vmul.f32 %v381, %v396
        %v399 = vmul.f32 %v382, %v396
        %v400 = vmul.f32 %v383, %v396
        %v401 = vmul.f32 %v384, %v396
        %v402 = vmul.f32 %v385, %v396
        %v403 = vmul.f32 %v386, %v396
        %v404 = vmul.f32 %v387, %v396
        %v405 = vmul.f32 %v388, %v396
        %v406 = vld [vmem:[%s2] sm:$0x1]
        %v408 = vlaneseq
        %v409 = vshrl.u32 %v408, 7
        %v410 = vsub.s32 0, %v409
        %v411 = vrot.slane %v406, %v410
        %v413 = vadd.f32 %v398, %v411
        %v414 = vadd.f32 %v399, %v411
        %v415 = vadd.f32 %v400, %v411
        %v416 = vadd.f32 %v401, %v411
        %v417 = vadd.f32 %v402, %v411
        %v418 = vadd.f32 %v403, %v411
        %v419 = vadd.f32 %v404, %v411
        %v420 = vadd.f32 %v405, %v411
        %v421 = vmax.f32 %v413, 0.0
        %v422 = vmax.f32 %v414, 0.0
        %v423 = vmax.f32 %v415, 0.0
        %v424 = vmax.f32 %v416, 0.0
        %v425 = vmax.f32 %v417, 0.0
        %v426 = vmax.f32 %v418, 0.0
        %v427 = vmax.f32 %v419, 0.0
        %v428 = vmax.f32 %v420, 0.0
        %v429 = vpack.c.bf16 %v422, %v421
        %v430 = vpack.c.bf16 %v424, %v423
        %v431 = vpack.c.bf16 %v426, %v425
        %v432 = vpack.c.bf16 %v428, %v427
        %433 = vst [vmem:[#allocation2 + $0x8] sm:$0xff] %v429
        %434 = vst [vmem:[#allocation2 + $0x10] sm:$0xff] %v430
        %435 = vst [vmem:[#allocation2 + $0x18] sm:$0xff] %v431
        %436 = vst [vmem:[#allocation2 + $0x20] sm:$0xff] %v432
        %v437 = vld [vmem:[%s4] sm:$0x1]
        %v439 = vlaneseq
        %v440 = vshrl.u32 %v439, 7
        %v441 = vsub.s32 0, %v440
        %v442 = vrot.slane %v437, %v441
        %v444 = vld [vmem:[#allocation2] sm:$0xe0]
        %v445 = vld [vmem:[#allocation2 + $0x8] sm:$0xff]
        %v446 = vld [vmem:[#allocation2 + $0x10] sm:$0xff]
        %v447 = vld [vmem:[#allocation2 + $0x18] sm:$0xff]
        %v448 = vld [vmem:[#allocation2 + $0x20] sm:$0x3f]
        %v449 = vld [vmem:[#allocation2] sm:$0xc0]
        %vm450 = vsmask.f32 7424
        %v452 = vshrl.u32 %v449, 16
        %v454 = vshll.u32 %v449, 16
        %v456 = vrot.slane %v454, 1
        %v457 = vor.u32 %v452, %v456
        %v459 = vshll.u32 %v445, 16
        %v461 = vrot.slane %v459, 1
        %v462 = vsel %vm450, %v457, %v461
        %v463 = vshrl.u32 %v445, 16
        %v465 = vor.u32 %v463, %v461
        %v467 = vshll.u32 %v446, 16
        %v469 = vrot.slane %v467, 1
        %v470 = vsel %vm450, %v465, %v469
        %v471 = vshrl.u32 %v446, 16
        %v473 = vor.u32 %v471, %v469
        %v475 = vshll.u32 %v447, 16
        %v477 = vrot.slane %v475, 1
        %v478 = vsel %vm450, %v473, %v477
        %v479 = vshrl.u32 %v447, 16
        %v481 = vor.u32 %v479, %v477
        %v483 = vshll.u32 %v448, 16
        %v485 = vrot.slane %v483, 1
        %v486 = vsel %vm450, %v481, %v485
        %v487 = vshrl.u32 %v448, 16
        %v489 = vor.u32 %v487, %v485
        %v490 = vld [vmem:[#allocation6] sm:$0xf]
        %v491 = vld [vmem:[#allocation6 + $0x4] sm:$0xf]
        %v492 = vld [vmem:[#allocation6 + $0x8] sm:$0xf]
        %v493 = vld [vmem:[#allocation6 + $0xc] sm:$0xf]
        %v494 = vld [vmem:[#allocation6 + $0x10] sm:$0xf]
        %v495 = vld [vmem:[#allocation6 + $0x14] sm:$0xf]
        %v496 = vld [vmem:[#allocation6 + $0x18] sm:$0xf]
        %v497 = vld [vmem:[#allocation6 + $0x1c] sm:$0xf]
        %v498 = vld [vmem:[#allocation6 + $0x20] sm:$0xf]
        %v499 = vld [vmem:[#allocation6 + $0x24] sm:$0xf]
        %v500 = vld [vmem:[#allocation6 + $0x28] sm:$0xf]
        %v501 = vld [vmem:[#allocation6 + $0x2c] sm:$0xf]
        %v502 = vld [vmem:[#allocation6 + $0x30] sm:$0xf]
        %v503 = vld [vmem:[#allocation6 + $0x34] sm:$0xf]
        %v504 = vld [vmem:[#allocation6 + $0x38] sm:$0xf]
        %v505 = vld [vmem:[#allocation6 + $0x3c] sm:$0xf]
        %v506 = vld [vmem:[#allocation6 + $0x40] sm:$0xf]
        %v507 = vld [vmem:[#allocation6 + $0x44] sm:$0xf]
        %v508 = vld [vmem:[#allocation6 + $0x48] sm:$0xf]
        %v509 = vld [vmem:[#allocation6 + $0x4c] sm:$0xf]
        %v510 = vld [vmem:[#allocation6 + $0x50] sm:$0xf]
        %v511 = vld [vmem:[#allocation6 + $0x54] sm:$0xf]
        %v512 = vld [vmem:[#allocation6 + $0x58] sm:$0xf]
        %v513 = vld [vmem:[#allocation6 + $0x5c] sm:$0xf]
        %v514 = vld [vmem:[#allocation6 + $0x60] sm:$0xf]
        %v515 = vld [vmem:[#allocation6 + $0x64] sm:$0xf]
        %v516 = vld [vmem:[#allocation6 + $0x68] sm:$0xf]
        %v517 = vld [vmem:[#allocation6 + $0x6c] sm:$0xf]
        %v518 = vld [vmem:[#allocation6 + $0x70] sm:$0xf]
        %v519 = vld [vmem:[#allocation6 + $0x74] sm:$0xf]
        %v520 = vld [vmem:[#allocation6 + $0x78] sm:$0xf]
        %v521 = vld [vmem:[#allocation6 + $0x7c] sm:$0xf]
        %vm522 = vsmask.f32 2304
        %v524 = vshrl.u32 %v444, 16
        %v526 = vrot.slane %v524, 5
        %v527 = vshll.u32 %v444, 16
        %v529 = vrot.slane %v527, 6
        %v530 = vor.u32 %v526, %v529
        %v531 = vrot.slane %v463, 5
        %v532 = vrot.slane %v459, 6
        %v533 = vor.u32 %v531, %v532
        %v534 = vsel %vm522, %v530, %v533
        %v536 = vshrl.u32 %v462, 16
        %v538 = vrot.slane %v536, 5
        %v539 = vshll.u32 %v462, 16
        %v541 = vrot.slane %v539, 6
        %v542 = vor.u32 %v538, %v541
        %v544 = vshrl.u32 %v470, 16
        %v546 = vrot.slane %v544, 5
        %v547 = vshll.u32 %v470, 16
        %v549 = vrot.slane %v547, 6
        %v550 = vor.u32 %v546, %v549
        %v551 = vsel %vm522, %v542, %v550
        %v552 = vrot.slane %v471, 5
        %v553 = vrot.slane %v467, 6
        %v554 = vor.u32 %v552, %v553
        %v555 = vsel %vm522, %v533, %v554
        %v557 = vshrl.u32 %v478, 16
        %v559 = vrot.slane %v557, 5
        %v560 = vshll.u32 %v478, 16
        %v562 = vrot.slane %v560, 6
        %v563 = vor.u32 %v559, %v562
        %v564 = vsel %vm522, %v550, %v563
        %v565 = vrot.slane %v479, 5
        %v566 = vrot.slane %v475, 6
        %v567 = vor.u32 %v565, %v566
        %v568 = vsel %vm522, %v554, %v567
        %v570 = vshrl.u32 %v486, 16
        %v572 = vrot.slane %v570, 5
        %v573 = vshll.u32 %v486, 16
        %v575 = vrot.slane %v573, 6
        %v576 = vor.u32 %v572, %v575
        %v577 = vsel %vm522, %v563, %v576
        %v578 = vrot.slane %v487, 5
        %v579 = vrot.slane %v483, 6
        %v580 = vor.u32 %v578, %v579
        %v581 = vsel %vm522, %v567, %v580
        %v583 = vshrl.u32 %v489, 16
        %v585 = vrot.slane %v583, 5
        %v586 = vshll.u32 %v489, 16
        %v588 = vrot.slane %v586, 6
        %v589 = vor.u32 %v585, %v588
        %v590 = vsel %vm522, %v576, %v589
        %v631 = vunpack.c.l.b16 %v490
        %v632 = vunpack.c.l.b16 %v491
        %v633 = vunpack.c.l.b16 %v492
        %v634 = vunpack.c.l.b16 %v493
        %v635 = vunpack.c.l.b16 %v494
        %v636 = vunpack.c.l.b16 %v495
        %v637 = vunpack.c.l.b16 %v496
        %v638 = vunpack.c.l.b16 %v497
        %v639 = vunpack.c.l.b16 %v498
        %v640 = vunpack.c.l.b16 %v499
        %v641 = vunpack.c.l.b16 %v500
        %v642 = vunpack.c.l.b16 %v501
        %v643 = vunpack.c.l.b16 %v502
        %v644 = vunpack.c.l.b16 %v503
        %v645 = vunpack.c.l.b16 %v504
        %v646 = vunpack.c.l.b16 %v505
        %v647 = vunpack.c.l.b16 %v506
        %v648 = vunpack.c.l.b16 %v507
        %v649 = vunpack.c.l.b16 %v508
        %v650 = vunpack.c.l.b16 %v509
        %v651 = vunpack.c.l.b16 %v510
        %v652 = vunpack.c.l.b16 %v511
        %v653 = vunpack.c.l.b16 %v512
        %v654 = vunpack.c.l.b16 %v513
        %v655 = vunpack.c.l.b16 %v514
        %v656 = vunpack.c.l.b16 %v515
        %v657 = vunpack.c.l.b16 %v516
        %v658 = vunpack.c.l.b16 %v517
        %v659 = vunpack.c.l.b16 %v518
        %v660 = vunpack.c.l.b16 %v519
        %v661 = vunpack.c.l.b16 %v520
        %v662 = vunpack.c.l.b16 %v521
        %v663 = vpack.c.b16 %v632, %v631
        %v664 = vpack.c.b16 %v634, %v633
        %v665 = vpack.c.b16 %v636, %v635
        %v666 = vpack.c.b16 %v638, %v637
        %v667 = vpack.c.b16 %v640, %v639
        %v668 = vpack.c.b16 %v642, %v641
        %v669 = vpack.c.b16 %v644, %v643
        %v670 = vpack.c.b16 %v646, %v645
        %v671 = vpack.c.b16 %v648, %v647
        %v672 = vpack.c.b16 %v650, %v649
        %v673 = vpack.c.b16 %v652, %v651
        %v674 = vpack.c.b16 %v654, %v653
        %v675 = vpack.c.b16 %v656, %v655
        %v676 = vpack.c.b16 %v658, %v657
        %v677 = vpack.c.b16 %v660, %v659
        %v678 = vpack.c.b16 %v662, %v661
        %695 = vmatprep.subr.bf16.mxu0 0
        %696 = vmatpush1.bf16.msra.mxu0 %v663
        %697 = vmatprep.subr.bf16.mxu0 0
        %698 = vmatpush1.bf16.msra.mxu0 %v664
        %699 = vmatprep.subr.bf16.mxu0 0
        %700 = vmatpush1.bf16.msra.mxu0 %v665
        %701 = vmatprep.subr.bf16.mxu0 0
        %702 = vmatpush1.bf16.msra.mxu0 %v666
        %703 = vmatprep.subr.bf16.mxu0 0
        %704 = vmatpush1.bf16.msra.mxu0 %v667
        %705 = vmatprep.subr.bf16.mxu0 0
        %706 = vmatpush1.bf16.msra.mxu0 %v668
        %707 = vmatprep.subr.bf16.mxu0 0
        %708 = vmatpush1.bf16.msra.mxu0 %v669
        %709 = vmatprep.subr.bf16.mxu0 0
        %710 = vmatpush1.bf16.msra.mxu0 %v670
        %711 = vmatprep.subr.bf16.mxu0 0
        %712 = vmatpush1.bf16.msra.mxu0 %v671
        %713 = vmatprep.subr.bf16.mxu0 0
        %714 = vmatpush1.bf16.msra.mxu0 %v672
        %715 = vmatprep.subr.bf16.mxu0 0
        %716 = vmatpush1.bf16.msra.mxu0 %v673
        %717 = vmatprep.subr.bf16.mxu0 0
        %718 = vmatpush1.bf16.msra.mxu0 %v674
        %719 = vmatprep.subr.bf16.mxu0 0
        %720 = vmatpush1.bf16.msra.mxu0 %v675
        %721 = vmatprep.subr.bf16.mxu0 0
        %722 = vmatpush1.bf16.msra.mxu0 %v676
        %723 = vmatprep.subr.bf16.mxu0 0
        %724 = vmatpush1.bf16.msra.mxu0 %v677
        %725 = vmatprep.subr.bf16.mxu0 0
        %726 = vmatpush1.bf16.msra.mxu0 %v678
        %727 = vmatprep.mubr.bf16.mxu0 %v551
        %728 = vmatmul.mubr.bf16.gmra.mrb[0].mxu0 %v534
        %v729 = vpop.f32.mrb[0].mxu0
        %v730 = vadd.f32 0.0, %v729
        %v731 = vpop.f32.mrb[0].mxu0
        %v732 = vpop.f32.mrb[0].mxu0
        %v733 = vadd.f32 0.0, %v732
        %v734 = vpop.f32.mrb[0].mxu0
        %735 = vmatprep.mubr.bf16.mxu0 %v564
        %736 = vmatmul.mubr.bf16.gmra.mrb[0].mxu0 %v555
        %v737 = vpop.f32.mrb[0].mxu0
        %v738 = vadd.f32 0.0, %v737
        %v739 = vpop.f32.mrb[0].mxu0
        %v740 = vpop.f32.mrb[0].mxu0
        %v741 = vadd.f32 0.0, %v740
        %v742 = vpop.f32.mrb[0].mxu0
        %743 = vmatprep.mubr.bf16.mxu0 %v577
        %744 = vmatmul.mubr.bf16.gmra.mrb[0].mxu0 %v568
        %v745 = vpop.f32.mrb[0].mxu0
        %v746 = vadd.f32 0.0, %v745
        %v747 = vpop.f32.mrb[0].mxu0
        %v748 = vpop.f32.mrb[0].mxu0
        %v749 = vadd.f32 0.0, %v748
        %v750 = vpop.f32.mrb[0].mxu0
        %751 = vmatprep.mubr.bf16.mxu0 %v590
        %752 = vmatmul.mubr.bf16.gmra.mrb[0].mxu0 %v581
        %v753 = vpop.f32.mrb[0].mxu0
        %v754 = vadd.f32 0.0, %v753
        %v755 = vpop.f32.mrb[0].mxu0
        %v756 = vpop.f32.mrb[0].mxu0
        %v757 = vadd.f32 0.0, %v756
        %v758 = vpop.f32.mrb[0].mxu0
        %759 = vdwg.mxu0
        %v760 = vadd.f32 %v442, %v730
        %v761 = vadd.f32 %v442, %v733
        %v762 = vadd.f32 %v442, %v738
        %v763 = vadd.f32 %v442, %v741
        %v764 = vadd.f32 %v442, %v746
        %v765 = vadd.f32 %v442, %v749
        %v766 = vadd.f32 %v442, %v754
        %v767 = vadd.f32 %v442, %v757
        %v768 = vld [vmem:[#allocation2 + $0x20] sm:$0x7f]
        %v769 = vld [vmem:[#allocation2] sm:$0x80]
        %v771 = vshrl.u32 %v769, 16
        %v773 = vshll.u32 %v769, 16
        %v775 = vrot.slane %v773, 1
        %v776 = vor.u32 %v771, %v775
        %v777 = vsel %vm450, %v776, %v461
        %v779 = vshll.u32 %v768, 16
        %v781 = vrot.slane %v779, 1
        %v782 = vsel %vm450, %v481, %v781
        %v783 = vshrl.u32 %v768, 16
        %v785 = vor.u32 %v783, %v781
        %s786 = scalar_lea.vmem [#allocation6], 128
        %v787 = vld [vmem:[%s786] sm:$0xf]
        %v788 = vld [vmem:[%s786 + $0x4] sm:$0xf]
        %v789 = vld [vmem:[%s786 + $0x8] sm:$0xf]
        %v790 = vld [vmem:[%s786 + $0xc] sm:$0xf]
        %v791 = vld [vmem:[%s786 + $0x10] sm:$0xf]
        %v792 = vld [vmem:[%s786 + $0x14] sm:$0xf]
        %v793 = vld [vmem:[%s786 + $0x18] sm:$0xf]
        %v794 = vld [vmem:[%s786 + $0x1c] sm:$0xf]
        %v795 = vld [vmem:[%s786 + $0x20] sm:$0xf]
        %v796 = vld [vmem:[%s786 + $0x24] sm:$0xf]
        %v797 = vld [vmem:[%s786 + $0x28] sm:$0xf]
        %v798 = vld [vmem:[%s786 + $0x2c] sm:$0xf]
        %v799 = vld [vmem:[%s786 + $0x30] sm:$0xf]
        %v800 = vld [vmem:[%s786 + $0x34] sm:$0xf]
        %v801 = vld [vmem:[%s786 + $0x38] sm:$0xf]
        %v802 = vld [vmem:[%s786 + $0x3c] sm:$0xf]
        %v803 = vld [vmem:[%s786 + $0x40] sm:$0xf]
        %v804 = vld [vmem:[%s786 + $0x44] sm:$0xf]
        %v805 = vld [vmem:[%s786 + $0x48] sm:$0xf]
        %v806 = vld [vmem:[%s786 + $0x4c] sm:$0xf]
        %v807 = vld [vmem:[%s786 + $0x50] sm:$0xf]
        %v808 = vld [vmem:[%s786 + $0x54] sm:$0xf]
        %v809 = vld [vmem:[%s786 + $0x58] sm:$0xf]
        %v810 = vld [vmem:[%s786 + $0x5c] sm:$0xf]
        %v811 = vld [vmem:[%s786 + $0x60] sm:$0xf]
        %v812 = vld [vmem:[%s786 + $0x64] sm:$0xf]
        %v813 = vld [vmem:[%s786 + $0x68] sm:$0xf]
        %v814 = vld [vmem:[%s786 + $0x6c] sm:$0xf]
        %v815 = vld [vmem:[%s786 + $0x70] sm:$0xf]
        %v816 = vld [vmem:[%s786 + $0x74] sm:$0xf]
        %v817 = vld [vmem:[%s786 + $0x78] sm:$0xf]
        %v818 = vld [vmem:[%s786 + $0x7c] sm:$0xf]
        %vm819 = vsmask.f32 1280
        %v820 = vrot.slane %v452, 6
        %v821 = vrot.slane %v454, 7
        %v822 = vor.u32 %v820, %v821
        %v823 = vrot.slane %v463, 6
        %v824 = vrot.slane %v459, 7
        %v825 = vor.u32 %v823, %v824
        %v826 = vsel %vm819, %v822, %v825
        %v828 = vshrl.u32 %v777, 16
        %v830 = vrot.slane %v828, 6
        %v831 = vshll.u32 %v777, 16
        %v833 = vrot.slane %v831, 7
        %v834 = vor.u32 %v830, %v833
        %v835 = vrot.slane %v544, 6
        %v836 = vrot.slane %v547, 7
        %v837 = vor.u32 %v835, %v836
        %v838 = vsel %vm819, %v834, %v837
        %v839 = vrot.slane %v471, 6
        %v840 = vrot.slane %v467, 7
        %v841 = vor.u32 %v839, %v840
        %v842 = vsel %vm819, %v825, %v841
        %v843 = vrot.slane %v557, 6
        %v844 = vrot.slane %v560, 7
        %v845 = vor.u32 %v843, %v844
        %v846 = vsel %vm819, %v837, %v845
        %v847 = vrot.slane %v479, 6
        %v848 = vrot.slane %v475, 7
        %v849 = vor.u32 %v847, %v848
        %v850 = vsel %vm819, %v841, %v849
        %v852 = vshrl.u32 %v782, 16
        %v854 = vrot.slane %v852, 6
        %v855 = vshll.u32 %v782, 16
        %v857 = vrot.slane %v855, 7
        %v858 = vor.u32 %v854, %v857
        %v859 = vsel %vm819, %v845, %v858
        %v860 = vrot.slane %v783, 6
        %v861 = vrot.slane %v779, 7
        %v862 = vor.u32 %v860, %v861
        %v863 = vsel %vm819, %v849, %v862
        %v865 = vshrl.u32 %v785, 16
        %v867 = vrot.slane %v865, 6
        %v868 = vshll.u32 %v785, 16
        %v870 = vrot.slane %v868, 7
        %v871 = vor.u32 %v867, %v870
        %v872 = vsel %vm819, %v858, %v871
        %v913 = vunpack.c.l.b16 %v787
        %v914 = vunpack.c.l.b16 %v788
        %v915 = vunpack.c.l.b16 %v789
        %v916 = vunpack.c.l.b16 %v790
        %v917 = vunpack.c.l.b16 %v791
        %v918 = vunpack.c.l.b16 %v792
        %v919 = vunpack.c.l.b16 %v793
        %v920 = vunpack.c.l.b16 %v794
        %v921 = vunpack.c.l.b16 %v795
        %v922 = vunpack.c.l.b16 %v796
        %v923 = vunpack.c.l.b16 %v797
        %v924 = vunpack.c.l.b16 %v798
        %v925 = vunpack.c.l.b16 %v799
        %v926 = vunpack.c.l.b16 %v800
        %v927 = vunpack.c.l.b16 %v801
        %v928 = vunpack.c.l.b16 %v802
        %v929 = vunpack.c.l.b16 %v803
        %v930 = vunpack.c.l.b16 %v804
        %v931 = vunpack.c.l.b16 %v805
        %v932 = vunpack.c.l.b16 %v806
        %v933 = vunpack.c.l.b16 %v807
        %v934 = vunpack.c.l.b16 %v808
        %v935 = vunpack.c.l.b16 %v809
        %v936 = vunpack.c.l.b16 %v810
        %v937 = vunpack.c.l.b16 %v811
        %v938 = vunpack.c.l.b16 %v812
        %v939 = vunpack.c.l.b16 %v813
        %v940 = vunpack.c.l.b16 %v814
        %v941 = vunpack.c.l.b16 %v815
        %v942 = vunpack.c.l.b16 %v816
        %v943 = vunpack.c.l.b16 %v817
        %v944 = vunpack.c.l.b16 %v818
        %v945 = vpack.c.b16 %v914, %v913
        %v946 = vpack.c.b16 %v916, %v915
        %v947 = vpack.c.b16 %v918, %v917
        %v948 = vpack.c.b16 %v920, %v919
        %v949 = vpack.c.b16 %v922, %v921
        %v950 = vpack.c.b16 %v924, %v923
        %v951 = vpack.c.b16 %v926, %v925
        %v952 = vpack.c.b16 %v928, %v927
        %v953 = vpack.c.b16 %v930, %v929
        %v954 = vpack.c.b16 %v932, %v931
        %v955 = vpack.c.b16 %v934, %v933
        %v956 = vpack.c.b16 %v936, %v935
        %v957 = vpack.c.b16 %v938, %v937
        %v958 = vpack.c.b16 %v940, %v939
        %v959 = vpack.c.b16 %v942, %v941
        %v960 = vpack.c.b16 %v944, %v943
        %977 = vmatprep.subr.bf16.mxu0 0
        %978 = vmatpush1.bf16.msra.mxu0 %v945
        %979 = vmatprep.subr.bf16.mxu0 0
        %980 = vmatpush1.bf16.msra.mxu0 %v946
        %981 = vmatprep.subr.bf16.mxu0 0
        %982 = vmatpush1.bf16.msra.mxu0 %v947
        %983 = vmatprep.subr.bf16.mxu0 0
        %984 = vmatpush1.bf16.msra.mxu0 %v948
        %985 = vmatprep.subr.bf16.mxu0 0
        %986 = vmatpush1.bf16.msra.mxu0 %v949
        %987 = vmatprep.subr.bf16.mxu0 0
        %988 = vmatpush1.bf16.msra.mxu0 %v950
        %989 = vmatprep.subr.bf16.mxu0 0
        %990 = vmatpush1.bf16.msra.mxu0 %v951
        %991 = vmatprep.subr.bf16.mxu0 0
        %992 = vmatpush1.bf16.msra.mxu0 %v952
        %993 = vmatprep.subr.bf16.mxu0 0
        %994 = vmatpush1.bf16.msra.mxu0 %v953
        %995 = vmatprep.subr.bf16.mxu0 0
        %996 = vmatpush1.bf16.msra.mxu0 %v954
        %997 = vmatprep.subr.bf16.mxu0 0
        %998 = vmatpush1.bf16.msra.mxu0 %v955
        %999 = vmatprep.subr.bf16.mxu0 0
        %1000 = vmatpush1.bf16.msra.mxu0 %v956
        %1001 = vmatprep.subr.bf16.mxu0 0
        %1002 = vmatpush1.bf16.msra.mxu0 %v957
        %1003 = vmatprep.subr.bf16.mxu0 0
        %1004 = vmatpush1.bf16.msra.mxu0 %v958
        %1005 = vmatprep.subr.bf16.mxu0 0
        %1006 = vmatpush1.bf16.msra.mxu0 %v959
        %1007 = vmatprep.subr.bf16.mxu0 0
        %1008 = vmatpush1.bf16.msra.mxu0 %v960
        %1009 = vmatprep.mubr.bf16.mxu0 %v838
        %1010 = vmatmul.mubr.bf16.gmra.mrb[0].mxu0 %v826
        %v1011 = vpop.f32.mrb[0].mxu0
        %v1012 = vadd.f32 0.0, %v1011
        %v1013 = vpop.f32.mrb[0].mxu0
        %v1014 = vpop.f32.mrb[0].mxu0
        %v1015 = vadd.f32 0.0, %v1014
        %v1016 = vpop.f32.mrb[0].mxu0
        %1017 = vmatprep.mubr.bf16.mxu0 %v846
        %1018 = vmatmul.mubr.bf16.gmra.mrb[0].mxu0 %v842
        %v1019 = vpop.f32.mrb[0].mxu0
        %v1020 = vadd.f32 0.0, %v1019
        %v1021 = vpop.f32.mrb[0].mxu0
        %v1022 = vpop.f32.mrb[0].mxu0
        %v1023 = vadd.f32 0.0, %v1022
        %v1024 = vpop.f32.mrb[0].mxu0
        %1025 = vmatprep.mubr.bf16.mxu0 %v859
        %1026 = vmatmul.mubr.bf16.gmra.mrb[0].mxu0 %v850
        %v1027 = vpop.f32.mrb[0].mxu0
        %v1028 = vadd.f32 0.0, %v1027
        %v1029 = vpop.f32.mrb[0].mxu0
        %v1030 = vpop.f32.mrb[0].mxu0
        %v1031 = vadd.f32 0.0, %v1030
        %v1032 = vpop.f32.mrb[0].mxu0
        %1033 = vmatprep.mubr.bf16.mxu0 %v872
        %1034 = vmatmul.mubr.bf16.gmra.mrb[0].mxu0 %v863
        %v1035 = vpop.f32.mrb[0].mxu0
        %v1036 = vadd.f32 0.0, %v1035
        %v1037 = vpop.f32.mrb[0].mxu0
        %v1038 = vpop.f32.mrb[0].mxu0
        %v1039 = vadd.f32 0.0, %v1038
        %v1040 = vpop.f32.mrb[0].mxu0
        %1041 = vdwg.mxu0
        %v1042 = vadd.f32 %v760, %v1012
        %v1043 = vadd.f32 %v761, %v1015
        %v1044 = vadd.f32 %v762, %v1020
        %v1045 = vadd.f32 %v763, %v1023
        %v1046 = vadd.f32 %v764, %v1028
        %v1047 = vadd.f32 %v765, %v1031
        %v1048 = vadd.f32 %v766, %v1036
        %v1049 = vadd.f32 %v767, %v1039
        %v1050 = vld [vmem:[#allocation2 + $0x20] sm:$0xff]
        %v1052 = vshll.u32 %v1050, 16
        %v1054 = vrot.slane %v1052, 1
        %v1055 = vsel %vm450, %v481, %v1054
        %v1056 = vshrl.u32 %v1050, 16
        %v1058 = vor.u32 %v1056, %v1054
        %s1059 = scalar_lea.vmem [#allocation6], 256
        %v1060 = vld [vmem:[%s1059] sm:$0xf]
        %v1061 = vld [vmem:[%s1059 + $0x4] sm:$0xf]
        %v1062 = vld [vmem:[%s1059 + $0x8] sm:$0xf]
        %v1063 = vld [vmem:[%s1059 + $0xc] sm:$0xf]
        %v1064 = vld [vmem:[%s1059 + $0x10] sm:$0xf]
        %v1065 = vld [vmem:[%s1059 + $0x14] sm:$0xf]
        %v1066 = vld [vmem:[%s1059 + $0x18] sm:$0xf]
        %v1067 = vld [vmem:[%s1059 + $0x1c] sm:$0xf]
        %v1068 = vld [vmem:[%s1059 + $0x20] sm:$0xf]
        %v1069 = vld [vmem:[%s1059 + $0x24] sm:$0xf]
        %v1070 = vld [vmem:[%s1059 + $0x28] sm:$0xf]
        %v1071 = vld [vmem:[%s1059 + $0x2c] sm:$0xf]
        %v1072 = vld [vmem:[%s1059 + $0x30] sm:$0xf]
        %v1073 = vld [vmem:[%s1059 + $0x34] sm:$0xf]
        %v1074 = vld [vmem:[%s1059 + $0x38] sm:$0xf]
        %v1075 = vld [vmem:[%s1059 + $0x3c] sm:$0xf]
        %v1076 = vld [vmem:[%s1059 + $0x40] sm:$0xf]
        %v1077 = vld [vmem:[%s1059 + $0x44] sm:$0xf]
        %v1078 = vld [vmem:[%s1059 + $0x48] sm:$0xf]
        %v1079 = vld [vmem:[%s1059 + $0x4c] sm:$0xf]
        %v1080 = vld [vmem:[%s1059 + $0x50] sm:$0xf]
        %v1081 = vld [vmem:[%s1059 + $0x54] sm:$0xf]
        %v1082 = vld [vmem:[%s1059 + $0x58] sm:$0xf]
        %v1083 = vld [vmem:[%s1059 + $0x5c] sm:$0xf]
        %v1084 = vld [vmem:[%s1059 + $0x60] sm:$0xf]
        %v1085 = vld [vmem:[%s1059 + $0x64] sm:$0xf]
        %v1086 = vld [vmem:[%s1059 + $0x68] sm:$0xf]
        %v1087 = vld [vmem:[%s1059 + $0x6c] sm:$0xf]
        %v1088 = vld [vmem:[%s1059 + $0x70] sm:$0xf]
        %v1089 = vld [vmem:[%s1059 + $0x74] sm:$0xf]
        %v1090 = vld [vmem:[%s1059 + $0x78] sm:$0xf]
        %v1091 = vld [vmem:[%s1059 + $0x7c] sm:$0xf]
        %vm1092 = vsmask.f32 256
        %v1093 = vrot.slane %v771, 7
        %v1094 = vrot.slane %v463, 7
        %v1095 = vor.u32 %v1094, %v459
        %v1096 = vsel %vm1092, %v1093, %v1095
        %v1098 = vshrl.u32 %v461, 16
        %v1100 = vrot.slane %v1098, 7
        %v1101 = vrot.slane %v544, 7
        %v1102 = vor.u32 %v1101, %v547
        %v1103 = vsel %vm1092, %v1100, %v1102
        %v1104 = vrot.slane %v471, 7
        %v1105 = vor.u32 %v1104, %v467
        %v1106 = vsel %vm1092, %v1094, %v1105
        %v1107 = vrot.slane %v557, 7
        %v1108 = vor.u32 %v1107, %v560
        %v1109 = vsel %vm1092, %v1101, %v1108
        %v1110 = vrot.slane %v479, 7
        %v1111 = vor.u32 %v1110, %v475
        %v1112 = vsel %vm1092, %v1104, %v1111
        %v1114 = vshrl.u32 %v1055, 16
        %v1116 = vrot.slane %v1114, 7
        %v1117 = vshll.u32 %v1055, 16
        %v1119 = vor.u32 %v1116, %v1117
        %v1120 = vsel %vm1092, %v1107, %v1119
        %v1121 = vrot.slane %v1056, 7
        %v1122 = vor.u32 %v1121, %v1052
        %v1123 = vsel %vm1092, %v1110, %v1122
        %v1125 = vshrl.u32 %v1058, 16
        %v1127 = vrot.slane %v1125, 7
        %v1128 = vshll.u32 %v1058, 16
        %v1130 = vor.u32 %v1127, %v1128
        %v1131 = vsel %vm1092, %v1116, %v1130
        %v1172 = vunpack.c.l.b16 %v1060
        %v1173 = vunpack.c.l.b16 %v1061
        %v1174 = vunpack.c.l.b16 %v1062
        %v1175 = vunpack.c.l.b16 %v1063
        %v1176 = vunpack.c.l.b16 %v1064
        %v1177 = vunpack.c.l.b16 %v1065
        %v1178 = vunpack.c.l.b16 %v1066
        %v1179 = vunpack.c.l.b16 %v1067
        %v1180 = vunpack.c.l.b16 %v1068
        %v1181 = vunpack.c.l.b16 %v1069
        %v1182 = vunpack.c.l.b16 %v1070
        %v1183 = vunpack.c.l.b16 %v1071
        %v1184 = vunpack.c.l.b16 %v1072
        %v1185 = vunpack.c.l.b16 %v1073
        %v1186 = vunpack.c.l.b16 %v1074
        %v1187 = vunpack.c.l.b16 %v1075
        %v1188 = vunpack.c.l.b16 %v1076
        %v1189 = vunpack.c.l.b16 %v1077
        %v1190 = vunpack.c.l.b16 %v1078
        %v1191 = vunpack.c.l.b16 %v1079
        %v1192 = vunpack.c.l.b16 %v1080
        %v1193 = vunpack.c.l.b16 %v1081
        %v1194 = vunpack.c.l.b16 %v1082
        %v1195 = vunpack.c.l.b16 %v1083
        %v1196 = vunpack.c.l.b16 %v1084
        %v1197 = vunpack.c.l.b16 %v1085
        %v1198 = vunpack.c.l.b16 %v1086
        %v1199 = vunpack.c.l.b16 %v1087
        %v1200 = vunpack.c.l.b16 %v1088
        %v1201 = vunpack.c.l.b16 %v1089
        %v1202 = vunpack.c.l.b16 %v1090
        %v1203 = vunpack.c.l.b16 %v1091
        %v1204 = vpack.c.b16 %v1173, %v1172
        %v1205 = vpack.c.b16 %v1175, %v1174
        %v1206 = vpack.c.b16 %v1177, %v1176
        %v1207 = vpack.c.b16 %v1179, %v1178
        %v1208 = vpack.c.b16 %v1181, %v1180
        %v1209 = vpack.c.b16 %v1183, %v1182
        %v1210 = vpack.c.b16 %v1185, %v1184
        %v1211 = vpack.c.b16 %v1187, %v1186
        %v1212 = vpack.c.b16 %v1189, %v1188
        %v1213 = vpack.c.b16 %v1191, %v1190
        %v1214 = vpack.c.b16 %v1193, %v1192
        %v1215 = vpack.c.b16 %v1195, %v1194
        %v1216 = vpack.c.b16 %v1197, %v1196
        %v1217 = vpack.c.b16 %v1199, %v1198
        %v1218 = vpack.c.b16 %v1201, %v1200
        %v1219 = vpack.c.b16 %v1203, %v1202
        %1236 = vmatprep.subr.bf16.mxu0 0
        %1237 = vmatpush1.bf16.msra.mxu0 %v1204
        %1238 = vmatprep.subr.bf16.mxu0 0
        %1239 = vmatpush1.bf16.msra.mxu0 %v1205
        %1240 = vmatprep.subr.bf16.mxu0 0
        %1241 = vmatpush1.bf16.msra.mxu0 %v1206
        %1242 = vmatprep.subr.bf16.mxu0 0
        %1243 = vmatpush1.bf16.msra.mxu0 %v1207
        %1244 = vmatprep.subr.bf16.mxu0 0
        %1245 = vmatpush1.bf16.msra.mxu0 %v1208
        %1246 = vmatprep.subr.bf16.mxu0 0
        %1247 = vmatpush1.bf16.msra.mxu0 %v1209
        %1248 = vmatprep.subr.bf16.mxu0 0
        %1249 = vmatpush1.bf16.msra.mxu0 %v1210
        %1250 = vmatprep.subr.bf16.mxu0 0
        %1251 = vmatpush1.bf16.msra.mxu0 %v1211
        %1252 = vmatprep.subr.bf16.mxu0 0
        %1253 = vmatpush1.bf16.msra.mxu0 %v1212
        %1254 = vmatprep.subr.bf16.mxu0 0
        %1255 = vmatpush1.bf16.msra.mxu0 %v1213
        %1256 = vmatprep.subr.bf16.mxu0 0
        %1257 = vmatpush1.bf16.msra.mxu0 %v1214
        %1258 = vmatprep.subr.bf16.mxu0 0
        %1259 = vmatpush1.bf16.msra.mxu0 %v1215
        %1260 = vmatprep.subr.bf16.mxu0 0
        %1261 = vmatpush1.bf16.msra.mxu0 %v1216
        %1262 = vmatprep.subr.bf16.mxu0 0
        %1263 = vmatpush1.bf16.msra.mxu0 %v1217
        %1264 = vmatprep.subr.bf16.mxu0 0
        %1265 = vmatpush1.bf16.msra.mxu0 %v1218
        %1266 = vmatprep.subr.bf16.mxu0 0
        %1267 = vmatpush1.bf16.msra.mxu0 %v1219
        %1268 = vmatprep.mubr.bf16.mxu0 %v1103
        %1269 = vmatmul.mubr.bf16.gmra.mrb[0].mxu0 %v1096
        %v1270 = vpop.f32.mrb[0].mxu0
        %v1271 = vadd.f32 0.0, %v1270
        %v1272 = vpop.f32.mrb[0].mxu0
        %v1273 = vpop.f32.mrb[0].mxu0
        %v1274 = vadd.f32 0.0, %v1273
        %v1275 = vpop.f32.mrb[0].mxu0
        %1276 = vmatprep.mubr.bf16.mxu0 %v1109
        %1277 = vmatmul.mubr.bf16.gmra.mrb[0].mxu0 %v1106
        %v1278 = vpop.f32.mrb[0].mxu0
        %v1279 = vadd.f32 0.0, %v1278
        %v1280 = vpop.f32.mrb[0].mxu0
        %v1281 = vpop.f32.mrb[0].mxu0
        %v1282 = vadd.f32 0.0, %v1281
        %v1283 = vpop.f32.mrb[0].mxu0
        %1284 = vmatprep.mubr.bf16.mxu0 %v1120
        %1285 = vmatmul.mubr.bf16.gmra.mrb[0].mxu0 %v1112
        %v1286 = vpop.f32.mrb[0].mxu0
        %v1287 = vadd.f32 0.0, %v1286
        %v1288 = vpop.f32.mrb[0].mxu0
        %v1289 = vpop.f32.mrb[0].mxu0
        %v1290 = vadd.f32 0.0, %v1289
        %v1291 = vpop.f32.mrb[0].mxu0
        %1292 = vmatprep.mubr.bf16.mxu0 %v1131
        %1293 = vmatmul.mubr.bf16.gmra.mrb[0].mxu0 %v1123
        %v1294 = vpop.f32.mrb[0].mxu0
        %v1295 = vadd.f32 0.0, %v1294
        %v1296 = vpop.f32.mrb[0].mxu0
        %v1297 = vpop.f32.mrb[0].mxu0
        %v1298 = vadd.f32 0.0, %v1297
        %v1299 = vpop.f32.mrb[0].mxu0
        %1300 = vdwg.mxu0
        %v1301 = vadd.f32 %v1042, %v1271
        %v1302 = vadd.f32 %v1043, %v1274
        %v1303 = vadd.f32 %v1044, %v1279
        %v1304 = vadd.f32 %v1045, %v1282
        %v1305 = vadd.f32 %v1046, %v1287
        %v1306 = vadd.f32 %v1047, %v1290
        %v1307 = vadd.f32 %v1048, %v1295
        %v1308 = vadd.f32 %v1049, %v1298
        %v1309 = vld [vmem:[#allocation2 + $0x8] sm:$0xff]
        %v1310 = vld [vmem:[#allocation2 + $0x10] sm:$0xff]
        %v1311 = vld [vmem:[#allocation2 + $0x18] sm:$0xff]
        %v1312 = vld [vmem:[#allocation2 + $0x20] sm:$0xff]
        %v1313 = vld [vmem:[#allocation2 + $0x28] sm:$0x1]
        %v1314 = vld [vmem:[#allocation2 + $0x8] sm:$0xfe]
        %v1316 = vshrl.u32 %v1314, 16
        %v1318 = vshll.u32 %v1314, 16
        %v1320 = vrot.slane %v1318, 1
        %v1321 = vor.u32 %v1316, %v1320
        %v1323 = vshll.u32 %v1310, 16
        %v1325 = vrot.slane %v1323, 1
        %v1326 = vsel %vm450, %v1321, %v1325
        %v1327 = vshrl.u32 %v1310, 16
        %v1329 = vor.u32 %v1327, %v1325
        %v1331 = vshll.u32 %v1311, 16
        %v1333 = vrot.slane %v1331, 1
        %v1334 = vsel %vm450, %v1329, %v1333
        %v1335 = vshrl.u32 %v1311, 16
        %v1337 = vor.u32 %v1335, %v1333
        %v1339 = vshll.u32 %v1312, 16
        %v1341 = vrot.slane %v1339, 1
        %v1342 = vsel %vm450, %v1337, %v1341
        %v1343 = vshrl.u32 %v1312, 16
        %v1345 = vor.u32 %v1343, %v1341
        %v1347 = vshll.u32 %v1313, 16
        %v1349 = vrot.slane %v1347, 1
        %v1350 = vsel %vm450, %v1345, %v1349
        %v1351 = vshrl.u32 %v1313, 16
        %s1353 = scalar_lea.vmem [#allocation6], 384
        %v1354 = vld [vmem:[%s1353] sm:$0xf]
        %v1355 = vld [vmem:[%s1353 + $0x4] sm:$0xf]
        %v1356 = vld [vmem:[%s1353 + $0x8] sm:$0xf]
        %v1357 = vld [vmem:[%s1353 + $0xc] sm:$0xf]
        %v1358 = vld [vmem:[%s1353 + $0x10] sm:$0xf]
        %v1359 = vld [vmem:[%s1353 + $0x14] sm:$0xf]
        %v1360 = vld [vmem:[%s1353 + $0x18] sm:$0xf]
        %v1361 = vld [vmem:[%s1353 + $0x1c] sm:$0xf]
        %v1362 = vld [vmem:[%s1353 + $0x20] sm:$0xf]
        %v1363 = vld [vmem:[%s1353 + $0x24] sm:$0xf]
        %v1364 = vld [vmem:[%s1353 + $0x28] sm:$0xf]
        %v1365 = vld [vmem:[%s1353 + $0x2c] sm:$0xf]
        %v1366 = vld [vmem:[%s1353 + $0x30] sm:$0xf]
        %v1367 = vld [vmem:[%s1353 + $0x34] sm:$0xf]
        %v1368 = vld [vmem:[%s1353 + $0x38] sm:$0xf]
        %v1369 = vld [vmem:[%s1353 + $0x3c] sm:$0xf]
        %v1370 = vld [vmem:[%s1353 + $0x40] sm:$0xf]
        %v1371 = vld [vmem:[%s1353 + $0x44] sm:$0xf]
        %v1372 = vld [vmem:[%s1353 + $0x48] sm:$0xf]
        %v1373 = vld [vmem:[%s1353 + $0x4c] sm:$0xf]
        %v1374 = vld [vmem:[%s1353 + $0x50] sm:$0xf]
        %v1375 = vld [vmem:[%s1353 + $0x54] sm:$0xf]
        %v1376 = vld [vmem:[%s1353 + $0x58] sm:$0xf]
        %v1377 = vld [vmem:[%s1353 + $0x5c] sm:$0xf]
        %v1378 = vld [vmem:[%s1353 + $0x60] sm:$0xf]
        %v1379 = vld [vmem:[%s1353 + $0x64] sm:$0xf]
        %v1380 = vld [vmem:[%s1353 + $0x68] sm:$0xf]
        %v1381 = vld [vmem:[%s1353 + $0x6c] sm:$0xf]
        %v1382 = vld [vmem:[%s1353 + $0x70] sm:$0xf]
        %v1383 = vld [vmem:[%s1353 + $0x74] sm:$0xf]
        %v1384 = vld [vmem:[%s1353 + $0x78] sm:$0xf]
        %v1385 = vld [vmem:[%s1353 + $0x7c] sm:$0xf]
        %v1387 = vshrl.u32 %v1309, 16
        %v1389 = vshll.u32 %v1309, 16
        %v1391 = vrot.slane %v1389, 1
        %v1392 = vor.u32 %v1387, %v1391
        %v1393 = vsel %vm450, %v1392, %v1325
        %v1395 = vshrl.u32 %v1326, 16
        %v1397 = vshll.u32 %v1326, 16
        %v1399 = vrot.slane %v1397, 1
        %v1400 = vor.u32 %v1395, %v1399
        %v1402 = vshll.u32 %v1334, 16
        %v1404 = vrot.slane %v1402, 1
        %v1405 = vsel %vm450, %v1400, %v1404
        %v1406 = vshrl.u32 %v1334, 16
        %v1408 = vor.u32 %v1406, %v1404
        %v1410 = vshll.u32 %v1342, 16
        %v1412 = vrot.slane %v1410, 1
        %v1413 = vsel %vm450, %v1408, %v1412
        %v1414 = vshrl.u32 %v1342, 16
        %v1416 = vor.u32 %v1414, %v1412
        %v1418 = vshll.u32 %v1350, 16
        %v1420 = vrot.slane %v1418, 1
        %v1421 = vsel %vm450, %v1416, %v1420
        %v1422 = vshrl.u32 %v1350, 16
        %v1424 = vor.u32 %v1422, %v1420
        %v1426 = vshll.u32 %v1351, 16
        %v1428 = vrot.slane %v1426, 1
        %v1429 = vsel %vm450, %v1424, %v1428
        %v1470 = vunpack.c.l.b16 %v1354
        %v1471 = vunpack.c.l.b16 %v1355
        %v1472 = vunpack.c.l.b16 %v1356
        %v1473 = vunpack.c.l.b16 %v1357
        %v1474 = vunpack.c.l.b16 %v1358
        %v1475 = vunpack.c.l.b16 %v1359
        %v1476 = vunpack.c.l.b16 %v1360
        %v1477 = vunpack.c.l.b16 %v1361
        %v1478 = vunpack.c.l.b16 %v1362
        %v1479 = vunpack.c.l.b16 %v1363
        %v1480 = vunpack.c.l.b16 %v1364
        %v1481 = vunpack.c.l.b16 %v1365
        %v1482 = vunpack.c.l.b16 %v1366
        %v1483 = vunpack.c.l.b16 %v1367
        %v1484 = vunpack.c.l.b16 %v1368
        %v1485 = vunpack.c.l.b16 %v1369
        %v1486 = vunpack.c.l.b16 %v1370
        %v1487 = vunpack.c.l.b16 %v1371
        %v1488 = vunpack.c.l.b16 %v1372
        %v1489 = vunpack.c.l.b16 %v1373
        %v1490 = vunpack.c.l.b16 %v1374
        %v1491 = vunpack.c.l.b16 %v1375
        %v1492 = vunpack.c.l.b16 %v1376
        %v1493 = vunpack.c.l.b16 %v1377
        %v1494 = vunpack.c.l.b16 %v1378
        %v1495 = vunpack.c.l.b16 %v1379
        %v1496 = vunpack.c.l.b16 %v1380
        %v1497 = vunpack.c.l.b16 %v1381
        %v1498 = vunpack.c.l.b16 %v1382
        %v1499 = vunpack.c.l.b16 %v1383
        %v1500 = vunpack.c.l.b16 %v1384
        %v1501 = vunpack.c.l.b16 %v1385
        %v1502 = vpack.c.b16 %v1471, %v1470
        %v1503 = vpack.c.b16 %v1473, %v1472
        %v1504 = vpack.c.b16 %v1475, %v1474
        %v1505 = vpack.c.b16 %v1477, %v1476
        %v1506 = vpack.c.b16 %v1479, %v1478
        %v1507 = vpack.c.b16 %v1481, %v1480
        %v1508 = vpack.c.b16 %v1483, %v1482
        %v1509 = vpack.c.b16 %v1485, %v1484
        %v1510 = vpack.c.b16 %v1487, %v1486
        %v1511 = vpack.c.b16 %v1489, %v1488
        %v1512 = vpack.c.b16 %v1491, %v1490
        %v1513 = vpack.c.b16 %v1493, %v1492
        %v1514 = vpack.c.b16 %v1495, %v1494
        %v1515 = vpack.c.b16 %v1497, %v1496
        %v1516 = vpack.c.b16 %v1499, %v1498
        %v1517 = vpack.c.b16 %v1501, %v1500
        %1534 = vmatprep.subr.bf16.mxu0 0
        %1535 = vmatpush1.bf16.msra.mxu0 %v1502
        %1536 = vmatprep.subr.bf16.mxu0 0
        %1537 = vmatpush1.bf16.msra.mxu0 %v1503
        %1538 = vmatprep.subr.bf16.mxu0 0
        %1539 = vmatpush1.bf16.msra.mxu0 %v1504
        %1540 = vmatprep.subr.bf16.mxu0 0
        %1541 = vmatpush1.bf16.msra.mxu0 %v1505
        %1542 = vmatprep.subr.bf16.mxu0 0
        %1543 = vmatpush1.bf16.msra.mxu0 %v1506
        %1544 = vmatprep.subr.bf16.mxu0 0
        %1545 = vmatpush1.bf16.msra.mxu0 %v1507
        %1546 = vmatprep.subr.bf16.mxu0 0
        %1547 = vmatpush1.bf16.msra.mxu0 %v1508
        %1548 = vmatprep.subr.bf16.mxu0 0
        %1549 = vmatpush1.bf16.msra.mxu0 %v1509
        %1550 = vmatprep.subr.bf16.mxu0 0
        %1551 = vmatpush1.bf16.msra.mxu0 %v1510
        %1552 = vmatprep.subr.bf16.mxu0 0
        %1553 = vmatpush1.bf16.msra.mxu0 %v1511
        %1554 = vmatprep.subr.bf16.mxu0 0
        %1555 = vmatpush1.bf16.msra.mxu0 %v1512
        %1556 = vmatprep.subr.bf16.mxu0 0
        %1557 = vmatpush1.bf16.msra.mxu0 %v1513
        %1558 = vmatprep.subr.bf16.mxu0 0
        %1559 = vmatpush1.bf16.msra.mxu0 %v1514
        %1560 = vmatprep.subr.bf16.mxu0 0
        %1561 = vmatpush1.bf16.msra.mxu0 %v1515
        %1562 = vmatprep.subr.bf16.mxu0 0
        %1563 = vmatpush1.bf16.msra.mxu0 %v1516
        %1564 = vmatprep.subr.bf16.mxu0 0
        %1565 = vmatpush1.bf16.msra.mxu0 %v1517
        %1566 = vmatprep.mubr.bf16.mxu0 %v1405
        %1567 = vmatmul.mubr.bf16.gmra.mrb[0].mxu0 %v1393
        %v1568 = vpop.f32.mrb[0].mxu0
        %v1569 = vadd.f32 0.0, %v1568
        %v1570 = vpop.f32.mrb[0].mxu0
        %v1571 = vpop.f32.mrb[0].mxu0
        %v1572 = vadd.f32 0.0, %v1571
        %v1573 = vpop.f32.mrb[0].mxu0
        %1574 = vmatprep.mubr.bf16.mxu0 %v1413
        %1575 = vmatmul.mubr.bf16.gmra.mrb[0].mxu0 %v1334
        %v1576 = vpop.f32.mrb[0].mxu0
        %v1577 = vadd.f32 0.0, %v1576
        %v1578 = vpop.f32.mrb[0].mxu0
        %v1579 = vpop.f32.mrb[0].mxu0
        %v1580 = vadd.f32 0.0, %v1579
        %v1581 = vpop.f32.mrb[0].mxu0
        %1582 = vmatprep.mubr.bf16.mxu0 %v1421
        %1583 = vmatmul.mubr.bf16.gmra.mrb[0].mxu0 %v1342
        %v1584 = vpop.f32.mrb[0].mxu0
        %v1585 = vadd.f32 0.0, %v1584
        %v1586 = vpop.f32.mrb[0].mxu0
        %v1587 = vpop.f32.mrb[0].mxu0
        %v1588 = vadd.f32 0.0, %v1587
        %v1589 = vpop.f32.mrb[0].mxu0
        %1590 = vmatprep.mubr.bf16.mxu0 %v1429
        %1591 = vmatmul.mubr.bf16.gmra.mrb[0].mxu0 %v1350
        %v1592 = vpop.f32.mrb[0].mxu0
        %v1593 = vadd.f32 0.0, %v1592
        %v1594 = vpop.f32.mrb[0].mxu0
        %v1595 = vpop.f32.mrb[0].mxu0
        %v1596 = vadd.f32 0.0, %v1595
        %v1597 = vpop.f32.mrb[0].mxu0
        %1598 = vdwg.mxu0
        %v1599 = vadd.f32 %v1301, %v1569
        %v1600 = vadd.f32 %v1302, %v1572
        %v1601 = vadd.f32 %v1303, %v1577
        %v1602 = vadd.f32 %v1304, %v1580
        %v1603 = vadd.f32 %v1305, %v1585
        %v1604 = vadd.f32 %v1306, %v1588
        %v1605 = vadd.f32 %v1307, %v1593
        %v1606 = vadd.f32 %v1308, %v1596
        %v1607 = vld [vmem:[#allocation2 + $0x28] sm:$0x3]
        %v1608 = vld [vmem:[#allocation2 + $0x8] sm:$0xfc]
        %v1610 = vshrl.u32 %v1608, 16
        %v1612 = vshll.u32 %v1608, 16
        %v1614 = vrot.slane %v1612, 1
        %v1615 = vor.u32 %v1610, %v1614
        %v1616 = vsel %vm450, %v1615, %v1325
        %v1618 = vshll.u32 %v1607, 16
        %v1620 = vrot.slane %v1618, 1
        %v1621 = vsel %vm450, %v1345, %v1620
        %v1622 = vshrl.u32 %v1607, 16
        %v1624 = vor.u32 %v1622, %v1620
        %s1625 = scalar_lea.vmem [#allocation6], 512
        %v1626 = vld [vmem:[%s1625] sm:$0xf]
        %v1627 = vld [vmem:[%s1625 + $0x4] sm:$0xf]
        %v1628 = vld [vmem:[%s1625 + $0x8] sm:$0xf]
        %v1629 = vld [vmem:[%s1625 + $0xc] sm:$0xf]
        %v1630 = vld [vmem:[%s1625 + $0x10] sm:$0xf]
        %v1631 = vld [vmem:[%s1625 + $0x14] sm:$0xf]
        %v1632 = vld [vmem:[%s1625 + $0x18] sm:$0xf]
        %v1633 = vld [vmem:[%s1625 + $0x1c] sm:$0xf]
        %v1634 = vld [vmem:[%s1625 + $0x20] sm:$0xf]
        %v1635 = vld [vmem:[%s1625 + $0x24] sm:$0xf]
        %v1636 = vld [vmem:[%s1625 + $0x28] sm:$0xf]
        %v1637 = vld [vmem:[%s1625 + $0x2c] sm:$0xf]
        %v1638 = vld [vmem:[%s1625 + $0x30] sm:$0xf]
        %v1639 = vld [vmem:[%s1625 + $0x34] sm:$0xf]
        %v1640 = vld [vmem:[%s1625 + $0x38] sm:$0xf]
        %v1641 = vld [vmem:[%s1625 + $0x3c] sm:$0xf]
        %v1642 = vld [vmem:[%s1625 + $0x40] sm:$0xf]
        %v1643 = vld [vmem:[%s1625 + $0x44] sm:$0xf]
        %v1644 = vld [vmem:[%s1625 + $0x48] sm:$0xf]
        %v1645 = vld [vmem:[%s1625 + $0x4c] sm:$0xf]
        %v1646 = vld [vmem:[%s1625 + $0x50] sm:$0xf]
        %v1647 = vld [vmem:[%s1625 + $0x54] sm:$0xf]
        %v1648 = vld [vmem:[%s1625 + $0x58] sm:$0xf]
        %v1649 = vld [vmem:[%s1625 + $0x5c] sm:$0xf]
        %v1650 = vld [vmem:[%s1625 + $0x60] sm:$0xf]
        %v1651 = vld [vmem:[%s1625 + $0x64] sm:$0xf]
        %v1652 = vld [vmem:[%s1625 + $0x68] sm:$0xf]
        %v1653 = vld [vmem:[%s1625 + $0x6c] sm:$0xf]
        %v1654 = vld [vmem:[%s1625 + $0x70] sm:$0xf]
        %v1655 = vld [vmem:[%s1625 + $0x74] sm:$0xf]
        %v1656 = vld [vmem:[%s1625 + $0x78] sm:$0xf]
        %v1657 = vld [vmem:[%s1625 + $0x7c] sm:$0xf]
        %vm1658 = vsmask.f32 6400
        %v1659 = vrot.slane %v1316, 1
        %v1660 = vrot.slane %v1318, 2
        %v1661 = vor.u32 %v1659, %v1660
        %v1662 = vrot.slane %v1327, 1
        %v1663 = vrot.slane %v1323, 2
        %v1664 = vor.u32 %v1662, %v1663
        %v1665 = vsel %vm1658, %v1661, %v1664
        %v1667 = vshrl.u32 %v1616, 16
        %v1669 = vrot.slane %v1667, 1
        %v1670 = vshll.u32 %v1616, 16
        %v1672 = vrot.slane %v1670, 2
        %v1673 = vor.u32 %v1669, %v1672
        %v1674 = vrot.slane %v1406, 1
        %v1675 = vrot.slane %v1402, 2
        %v1676 = vor.u32 %v1674, %v1675
        %v1677 = vsel %vm1658, %v1673, %v1676
        %v1678 = vrot.slane %v1335, 1
        %v1679 = vrot.slane %v1331, 2
        %v1680 = vor.u32 %v1678, %v1679
        %v1681 = vsel %vm1658, %v1664, %v1680
        %v1682 = vrot.slane %v1414, 1
        %v1683 = vrot.slane %v1410, 2
        %v1684 = vor.u32 %v1682, %v1683
        %v1685 = vsel %vm1658, %v1676, %v1684
        %v1686 = vrot.slane %v1343, 1
        %v1687 = vrot.slane %v1339, 2
        %v1688 = vor.u32 %v1686, %v1687
        %v1689 = vsel %vm1658, %v1680, %v1688
        %v1691 = vshrl.u32 %v1621, 16
        %v1693 = vrot.slane %v1691, 1
        %v1694 = vshll.u32 %v1621, 16
        %v1696 = vrot.slane %v1694, 2
        %v1697 = vor.u32 %v1693, %v1696
        %v1698 = vsel %vm1658, %v1684, %v1697
        %v1699 = vrot.slane %v1622, 1
        %v1700 = vrot.slane %v1618, 2
        %v1701 = vor.u32 %v1699, %v1700
        %v1702 = vsel %vm1658, %v1688, %v1701
        %v1704 = vshrl.u32 %v1624, 16
        %v1706 = vrot.slane %v1704, 1
        %v1707 = vshll.u32 %v1624, 16
        %v1709 = vrot.slane %v1707, 2
        %v1710 = vor.u32 %v1706, %v1709
        %v1711 = vsel %vm1658, %v1697, %v1710
        %v1752 = vunpack.c.l.b16 %v1626
        %v1753 = vunpack.c.l.b16 %v1627
        %v1754 = vunpack.c.l.b16 %v1628
        %v1755 = vunpack.c.l.b16 %v1629
        %v1756 = vunpack.c.l.b16 %v1630
        %v1757 = vunpack.c.l.b16 %v1631
        %v1758 = vunpack.c.l.b16 %v1632
        %v1759 = vunpack.c.l.b16 %v1633
        %v1760 = vunpack.c.l.b16 %v1634
        %v1761 = vunpack.c.l.b16 %v1635
        %v1762 = vunpack.c.l.b16 %v1636
        %v1763 = vunpack.c.l.b16 %v1637
        %v1764 = vunpack.c.l.b16 %v1638
        %v1765 = vunpack.c.l.b16 %v1639
        %v1766 = vunpack.c.l.b16 %v1640
        %v1767 = vunpack.c.l.b16 %v1641
        %v1768 = vunpack.c.l.b16 %v1642
        %v1769 = vunpack.c.l.b16 %v1643
        %v1770 = vunpack.c.l.b16 %v1644
        %v1771 = vunpack.c.l.b16 %v1645
        %v1772 = vunpack.c.l.b16 %v1646
        %v1773 = vunpack.c.l.b16 %v1647
        %v1774 = vunpack.c.l.b16 %v1648
        %v1775 = vunpack.c.l.b16 %v1649
        %v1776 = vunpack.c.l.b16 %v1650
        %v1777 = vunpack.c.l.b16 %v1651
        %v1778 = vunpack.c.l.b16 %v1652
        %v1779 = vunpack.c.l.b16 %v1653
        %v1780 = vunpack.c.l.b16 %v1654
        %v1781 = vunpack.c.l.b16 %v1655
        %v1782 = vunpack.c.l.b16 %v1656
        %v1783 = vunpack.c.l.b16 %v1657
        %v1784 = vpack.c.b16 %v1753, %v1752
        %v1785 = vpack.c.b16 %v1755, %v1754
        %v1786 = vpack.c.b16 %v1757, %v1756
        %v1787 = vpack.c.b16 %v1759, %v1758
        %v1788 = vpack.c.b16 %v1761, %v1760
        %v1789 = vpack.c.b16 %v1763, %v1762
        %v1790 = vpack.c.b16 %v1765, %v1764
        %v1791 = vpack.c.b16 %v1767, %v1766
        %v1792 = vpack.c.b16 %v1769, %v1768
        %v1793 = vpack.c.b16 %v1771, %v1770
        %v1794 = vpack.c.b16 %v1773, %v1772
        %v1795 = vpack.c.b16 %v1775, %v1774
        %v1796 = vpack.c.b16 %v1777, %v1776
        %v1797 = vpack.c.b16 %v1779, %v1778
        %v1798 = vpack.c.b16 %v1781, %v1780
        %v1799 = vpack.c.b16 %v1783, %v1782
        %1816 = vmatprep.subr.bf16.mxu0 0
        %1817 = vmatpush1.bf16.msra.mxu0 %v1784
        %1818 = vmatprep.subr.bf16.mxu0 0
        %1819 = vmatpush1.bf16.msra.mxu0 %v1785
        %1820 = vmatprep.subr.bf16.mxu0 0
        %1821 = vmatpush1.bf16.msra.mxu0 %v1786
        %1822 = vmatprep.subr.bf16.mxu0 0
        %1823 = vmatpush1.bf16.msra.mxu0 %v1787
        %1824 = vmatprep.subr.bf16.mxu0 0
        %1825 = vmatpush1.bf16.msra.mxu0 %v1788
        %1826 = vmatprep.subr.bf16.mxu0 0
        %1827 = vmatpush1.bf16.msra.mxu0 %v1789
        %1828 = vmatprep.subr.bf16.mxu0 0
        %1829 = vmatpush1.bf16.msra.mxu0 %v1790
        %1830 = vmatprep.subr.bf16.mxu0 0
        %1831 = vmatpush1.bf16.msra.mxu0 %v1791
        %1832 = vmatprep.subr.bf16.mxu0 0
        %1833 = vmatpush1.bf16.msra.mxu0 %v1792
        %1834 = vmatprep.subr.bf16.mxu0 0
        %1835 = vmatpush1.bf16.msra.mxu0 %v1793
        %1836 = vmatprep.subr.bf16.mxu0 0
        %1837 = vmatpush1.bf16.msra.mxu0 %v1794
        %1838 = vmatprep.subr.bf16.mxu0 0
        %1839 = vmatpush1.bf16.msra.mxu0 %v1795
        %1840 = vmatprep.subr.bf16.mxu0 0
        %1841 = vmatpush1.bf16.msra.mxu0 %v1796
        %1842 = vmatprep.subr.bf16.mxu0 0
        %1843 = vmatpush1.bf16.msra.mxu0 %v1797
        %1844 = vmatprep.subr.bf16.mxu0 0
        %1845 = vmatpush1.bf16.msra.mxu0 %v1798
        %1846 = vmatprep.subr.bf16.mxu0 0
        %1847 = vmatpush1.bf16.msra.mxu0 %v1799
        %1848 = vmatprep.mubr.bf16.mxu0 %v1677
        %1849 = vmatmul.mubr.bf16.gmra.mrb[0].mxu0 %v1665
        %v1850 = vpop.f32.mrb[0].mxu0
        %v1851 = vadd.f32 0.0, %v1850
        %v1852 = vpop.f32.mrb[0].mxu0
        %v1853 = vpop.f32.mrb[0].mxu0
        %v1854 = vadd.f32 0.0, %v1853
        %v1855 = vpop.f32.mrb[0].mxu0
        %1856 = vmatprep.mubr.bf16.mxu0 %v1685
        %1857 = vmatmul.mubr.bf16.gmra.mrb[0].mxu0 %v1681
        %v1858 = vpop.f32.mrb[0].mxu0
        %v1859 = vadd.f32 0.0, %v1858
        %v1860 = vpop.f32.mrb[0].mxu0
        %v1861 = vpop.f32.mrb[0].mxu0
        %v1862 = vadd.f32 0.0, %v1861
        %v1863 = vpop.f32.mrb[0].mxu0
        %1864 = vmatprep.mubr.bf16.mxu0 %v1698
        %1865 = vmatmul.mubr.bf16.gmra.mrb[0].mxu0 %v1689
        %v1866 = vpop.f32.mrb[0].mxu0
        %v1867 = vadd.f32 0.0, %v1866
        %v1868 = vpop.f32.mrb[0].mxu0
        %v1869 = vpop.f32.mrb[0].mxu0
        %v1870 = vadd.f32 0.0, %v1869
        %v1871 = vpop.f32.mrb[0].mxu0
        %1872 = vmatprep.mubr.bf16.mxu0 %v1711
        %1873 = vmatmul.mubr.bf16.gmra.mrb[0].mxu0 %v1702
        %v1874 = vpop.f32.mrb[0].mxu0
        %v1875 = vadd.f32 0.0, %v1874
        %v1876 = vpop.f32.mrb[0].mxu0
        %v1877 = vpop.f32.mrb[0].mxu0
        %v1878 = vadd.f32 0.0, %v1877
        %v1879 = vpop.f32.mrb[0].mxu0
        %1880 = vdwg.mxu0
        %v1881 = vadd.f32 %v1599, %v1851
        %v1882 = vadd.f32 %v1600, %v1854
        %v1883 = vadd.f32 %v1601, %v1859
        %v1884 = vadd.f32 %v1602, %v1862
        %v1885 = vadd.f32 %v1603, %v1867
        %v1886 = vadd.f32 %v1604, %v1870
        %v1887 = vadd.f32 %v1605, %v1875
        %v1888 = vadd.f32 %v1606, %v1878
        %v1889 = vld [vmem:[#allocation2 + $0x28] sm:$0x7]
        %v1890 = vld [vmem:[#allocation2 + $0x8] sm:$0xf8]
        %v1892 = vshrl.u32 %v1890, 16
        %v1894 = vshll.u32 %v1890, 16
        %v1896 = vrot.slane %v1894, 1
        %v1897 = vor.u32 %v1892, %v1896
        %v1898 = vsel %vm450, %v1897, %v1325
        %v1900 = vshll.u32 %v1889, 16
        %v1902 = vrot.slane %v1900, 1
        %v1903 = vsel %vm450, %v1345, %v1902
        %v1904 = vshrl.u32 %v1889, 16
        %v1906 = vor.u32 %v1904, %v1902
        %s1907 = scalar_lea.vmem [#allocation6], 640
        %v1908 = vld [vmem:[%s1907] sm:$0xf]
        %v1909 = vld [vmem:[%s1907 + $0x4] sm:$0xf]
        %v1910 = vld [vmem:[%s1907 + $0x8] sm:$0xf]
        %v1911 = vld [vmem:[%s1907 + $0xc] sm:$0xf]
        %v1912 = vld [vmem:[%s1907 + $0x10] sm:$0xf]
        %v1913 = vld [vmem:[%s1907 + $0x14] sm:$0xf]
        %v1914 = vld [vmem:[%s1907 + $0x18] sm:$0xf]
        %v1915 = vld [vmem:[%s1907 + $0x1c] sm:$0xf]
        %v1916 = vld [vmem:[%s1907 + $0x20] sm:$0xf]
        %v1917 = vld [vmem:[%s1907 + $0x24] sm:$0xf]
        %v1918 = vld [vmem:[%s1907 + $0x28] sm:$0xf]
        %v1919 = vld [vmem:[%s1907 + $0x2c] sm:$0xf]
        %v1920 = vld [vmem:[%s1907 + $0x30] sm:$0xf]
        %v1921 = vld [vmem:[%s1907 + $0x34] sm:$0xf]
        %v1922 = vld [vmem:[%s1907 + $0x38] sm:$0xf]
        %v1923 = vld [vmem:[%s1907 + $0x3c] sm:$0xf]
        %v1924 = vld [vmem:[%s1907 + $0x40] sm:$0xf]
        %v1925 = vld [vmem:[%s1907 + $0x44] sm:$0xf]
        %v1926 = vld [vmem:[%s1907 + $0x48] sm:$0xf]
        %v1927 = vld [vmem:[%s1907 + $0x4c] sm:$0xf]
        %v1928 = vld [vmem:[%s1907 + $0x50] sm:$0xf]
        %v1929 = vld [vmem:[%s1907 + $0x54] sm:$0xf]
        %v1930 = vld [vmem:[%s1907 + $0x58] sm:$0xf]
        %v1931 = vld [vmem:[%s1907 + $0x5c] sm:$0xf]
        %v1932 = vld [vmem:[%s1907 + $0x60] sm:$0xf]
        %v1933 = vld [vmem:[%s1907 + $0x64] sm:$0xf]
        %v1934 = vld [vmem:[%s1907 + $0x68] sm:$0xf]
        %v1935 = vld [vmem:[%s1907 + $0x6c] sm:$0xf]
        %v1936 = vld [vmem:[%s1907 + $0x70] sm:$0xf]
        %v1937 = vld [vmem:[%s1907 + $0x74] sm:$0xf]
        %v1938 = vld [vmem:[%s1907 + $0x78] sm:$0xf]
        %v1939 = vld [vmem:[%s1907 + $0x7c] sm:$0xf]
        %vm1940 = vsmask.f32 5376
        %v1941 = vrot.slane %v1610, 2
        %v1942 = vrot.slane %v1612, 3
        %v1943 = vor.u32 %v1941, %v1942
        %v1944 = vrot.slane %v1327, 2
        %v1945 = vrot.slane %v1323, 3
        %v1946 = vor.u32 %v1944, %v1945
        %v1947 = vsel %vm1940, %v1943, %v1946
        %v1949 = vshrl.u32 %v1898, 16
        %v1951 = vrot.slane %v1949, 2
        %v1952 = vshll.u32 %v1898, 16
        %v1954 = vrot.slane %v1952, 3
        %v1955 = vor.u32 %v1951, %v1954
        %v1956 = vrot.slane %v1406, 2
        %v1957 = vrot.slane %v1402, 3
        %v1958 = vor.u32 %v1956, %v1957
        %v1959 = vsel %vm1940, %v1955, %v1958
        %v1960 = vrot.slane %v1335, 2
        %v1961 = vrot.slane %v1331, 3
        %v1962 = vor.u32 %v1960, %v1961
        %v1963 = vsel %vm1940, %v1946, %v1962
        %v1964 = vrot.slane %v1414, 2
        %v1965 = vrot.slane %v1410, 3
        %v1966 = vor.u32 %v1964, %v1965
        %v1967 = vsel %vm1940, %v1958, %v1966
        %v1968 = vrot.slane %v1343, 2
        %v1969 = vrot.slane %v1339, 3
        %v1970 = vor.u32 %v1968, %v1969
        %v1971 = vsel %vm1940, %v1962, %v1970
        %v1973 = vshrl.u32 %v1903, 16
        %v1975 = vrot.slane %v1973, 2
        %v1976 = vshll.u32 %v1903, 16
        %v1978 = vrot.slane %v1976, 3
        %v1979 = vor.u32 %v1975, %v1978
        %v1980 = vsel %vm1940, %v1966, %v1979
        %v1981 = vrot.slane %v1904, 2
        %v1982 = vrot.slane %v1900, 3
        %v1983 = vor.u32 %v1981, %v1982
        %v1984 = vsel %vm1940, %v1970, %v1983
        %v1986 = vshrl.u32 %v1906, 16
        %v1988 = vrot.slane %v1986, 2
        %v1989 = vshll.u32 %v1906, 16
        %v1991 = vrot.slane %v1989, 3
        %v1992 = vor.u32 %v1988, %v1991
        %v1993 = vsel %vm1940, %v1979, %v1992
        %v2034 = vunpack.c.l.b16 %v1908
        %v2035 = vunpack.c.l.b16 %v1909
        %v2036 = vunpack.c.l.b16 %v1910
        %v2037 = vunpack.c.l.b16 %v1911
        %v2038 = vunpack.c.l.b16 %v1912
        %v2039 = vunpack.c.l.b16 %v1913
        %v2040 = vunpack.c.l.b16 %v1914
        %v2041 = vunpack.c.l.b16 %v1915
        %v2042 = vunpack.c.l.b16 %v1916
        %v2043 = vunpack.c.l.b16 %v1917
        %v2044 = vunpack.c.l.b16 %v1918
        %v2045 = vunpack.c.l.b16 %v1919
        %v2046 = vunpack.c.l.b16 %v1920
        %v2047 = vunpack.c.l.b16 %v1921
        %v2048 = vunpack.c.l.b16 %v1922
        %v2049 = vunpack.c.l.b16 %v1923
        %v2050 = vunpack.c.l.b16 %v1924
        %v2051 = vunpack.c.l.b16 %v1925
        %v2052 = vunpack.c.l.b16 %v1926
        %v2053 = vunpack.c.l.b16 %v1927
        %v2054 = vunpack.c.l.b16 %v1928
        %v2055 = vunpack.c.l.b16 %v1929
        %v2056 = vunpack.c.l.b16 %v1930
        %v2057 = vunpack.c.l.b16 %v1931
        %v2058 = vunpack.c.l.b16 %v1932
        %v2059 = vunpack.c.l.b16 %v1933
        %v2060 = vunpack.c.l.b16 %v1934
        %v2061 = vunpack.c.l.b16 %v1935
        %v2062 = vunpack.c.l.b16 %v1936
        %v2063 = vunpack.c.l.b16 %v1937
        %v2064 = vunpack.c.l.b16 %v1938
        %v2065 = vunpack.c.l.b16 %v1939
        %v2066 = vpack.c.b16 %v2035, %v2034
        %v2067 = vpack.c.b16 %v2037, %v2036
        %v2068 = vpack.c.b16 %v2039, %v2038
        %v2069 = vpack.c.b16 %v2041, %v2040
        %v2070 = vpack.c.b16 %v2043, %v2042
        %v2071 = vpack.c.b16 %v2045, %v2044
        %v2072 = vpack.c.b16 %v2047, %v2046
        %v2073 = vpack.c.b16 %v2049, %v2048
        %v2074 = vpack.c.b16 %v2051, %v2050
        %v2075 = vpack.c.b16 %v2053, %v2052
        %v2076 = vpack.c.b16 %v2055, %v2054
        %v2077 = vpack.c.b16 %v2057, %v2056
        %v2078 = vpack.c.b16 %v2059, %v2058
        %v2079 = vpack.c.b16 %v2061, %v2060
        %v2080 = vpack.c.b16 %v2063, %v2062
        %v2081 = vpack.c.b16 %v2065, %v2064
        %2098 = vmatprep.subr.bf16.mxu0 0
        %2099 = vmatpush1.bf16.msra.mxu0 %v2066
        %2100 = vmatprep.subr.bf16.mxu0 0
        %2101 = vmatpush1.bf16.msra.mxu0 %v2067
        %2102 = vmatprep.subr.bf16.mxu0 0
        %2103 = vmatpush1.bf16.msra.mxu0 %v2068
        %2104 = vmatprep.subr.bf16.mxu0 0
        %2105 = vmatpush1.bf16.msra.mxu0 %v2069
        %2106 = vmatprep.subr.bf16.mxu0 0
        %2107 = vmatpush1.bf16.msra.mxu0 %v2070
        %2108 = vmatprep.subr.bf16.mxu0 0
        %2109 = vmatpush1.bf16.msra.mxu0 %v2071
        %2110 = vmatprep.subr.bf16.mxu0 0
        %2111 = vmatpush1.bf16.msra.mxu0 %v2072
        %2112 = vmatprep.subr.bf16.mxu0 0
        %2113 = vmatpush1.bf16.msra.mxu0 %v2073
        %2114 = vmatprep.subr.bf16.mxu0 0
        %2115 = vmatpush1.bf16.msra.mxu0 %v2074
        %2116 = vmatprep.subr.bf16.mxu0 0
        %2117 = vmatpush1.bf16.msra.mxu0 %v2075
        %2118 = vmatprep.subr.bf16.mxu0 0
        %2119 = vmatpush1.bf16.msra.mxu0 %v2076
        %2120 = vmatprep.subr.bf16.mxu0 0
        %2121 = vmatpush1.bf16.msra.mxu0 %v2077
        %2122 = vmatprep.subr.bf16.mxu0 0
        %2123 = vmatpush1.bf16.msra.mxu0 %v2078
        %2124 = vmatprep.subr.bf16.mxu0 0
        %2125 = vmatpush1.bf16.msra.mxu0 %v2079
        %2126 = vmatprep.subr.bf16.mxu0 0
        %2127 = vmatpush1.bf16.msra.mxu0 %v2080
        %2128 = vmatprep.subr.bf16.mxu0 0
        %2129 = vmatpush1.bf16.msra.mxu0 %v2081
        %2130 = vmatprep.mubr.bf16.mxu0 %v1959
        %2131 = vmatmul.mubr.bf16.gmra.mrb[0].mxu0 %v1947
        %v2132 = vpop.f32.mrb[0].mxu0
        %v2133 = vadd.f32 0.0, %v2132
        %v2134 = vpop.f32.mrb[0].mxu0
        %v2135 = vpop.f32.mrb[0].mxu0
        %v2136 = vadd.f32 0.0, %v2135
        %v2137 = vpop.f32.mrb[0].mxu0
        %2138 = vmatprep.mubr.bf16.mxu0 %v1967
        %2139 = vmatmul.mubr.bf16.gmra.mrb[0].mxu0 %v1963
        %v2140 = vpop.f32.mrb[0].mxu0
        %v2141 = vadd.f32 0.0, %v2140
        %v2142 = vpop.f32.mrb[0].mxu0
        %v2143 = vpop.f32.mrb[0].mxu0
        %v2144 = vadd.f32 0.0, %v2143
        %v2145 = vpop.f32.mrb[0].mxu0
        %2146 = vmatprep.mubr.bf16.mxu0 %v1980
        %2147 = vmatmul.mubr.bf16.gmra.mrb[0].mxu0 %v1971
        %v2148 = vpop.f32.mrb[0].mxu0
        %v2149 = vadd.f32 0.0, %v2148
        %v2150 = vpop.f32.mrb[0].mxu0
        %v2151 = vpop.f32.mrb[0].mxu0
        %v2152 = vadd.f32 0.0, %v2151
        %v2153 = vpop.f32.mrb[0].mxu0
        %2154 = vmatprep.mubr.bf16.mxu0 %v1993
        %2155 = vmatmul.mubr.bf16.gmra.mrb[0].mxu0 %v1984
        %v2156 = vpop.f32.mrb[0].mxu0
        %v2157 = vadd.f32 0.0, %v2156
        %v2158 = vpop.f32.mrb[0].mxu0
        %v2159 = vpop.f32.mrb[0].mxu0
        %v2160 = vadd.f32 0.0, %v2159
        %v2161 = vpop.f32.mrb[0].mxu0
        %2162 = vdwg.mxu0
        %v2163 = vadd.f32 %v1881, %v2133
        %v2164 = vadd.f32 %v1882, %v2136
        %v2165 = vadd.f32 %v1883, %v2141
        %v2166 = vadd.f32 %v1884, %v2144
        %v2167 = vadd.f32 %v1885, %v2149
        %v2168 = vadd.f32 %v1886, %v2152
        %v2169 = vadd.f32 %v1887, %v2157
        %v2170 = vadd.f32 %v1888, %v2160
        %v2171 = vld [vmem:[%s5] sm:$0x1]
        %v2173 = vlaneseq
        %v2174 = vshrl.u32 %v2173, 7
        %v2175 = vsub.s32 0, %v2174
        %v2176 = vrot.slane %v2171, %v2175
        %v2178 = vmul.f32 %v2163, %v2176
        %v2179 = vmul.f32 %v2164, %v2176
        %v2180 = vmul.f32 %v2165, %v2176
        %v2181 = vmul.f32 %v2166, %v2176
        %v2182 = vmul.f32 %v2167, %v2176
        %v2183 = vmul.f32 %v2168, %v2176
        %v2184 = vmul.f32 %v2169, %v2176
        %v2185 = vmul.f32 %v2170, %v2176
        %v2186 = vld [vmem:[%s6] sm:$0x1]
        %v2188 = vlaneseq
        %v2189 = vshrl.u32 %v2188, 7
        %v2190 = vsub.s32 0, %v2189
        %v2191 = vrot.slane %v2186, %v2190
        %v2193 = vadd.f32 %v2178, %v2191
        %v2194 = vadd.f32 %v2179, %v2191
        %v2195 = vadd.f32 %v2180, %v2191
        %v2196 = vadd.f32 %v2181, %v2191
        %v2197 = vadd.f32 %v2182, %v2191
        %v2198 = vadd.f32 %v2183, %v2191
        %v2199 = vadd.f32 %v2184, %v2191
        %v2200 = vadd.f32 %v2185, %v2191
        %v2201 = vmax.f32 %v2193, 0.0
        %v2202 = vmax.f32 %v2194, 0.0
        %v2203 = vmax.f32 %v2195, 0.0
        %v2204 = vmax.f32 %v2196, 0.0
        %v2205 = vmax.f32 %v2197, 0.0
        %v2206 = vmax.f32 %v2198, 0.0
        %v2207 = vmax.f32 %v2199, 0.0
        %v2208 = vmax.f32 %v2200, 0.0
        %v2209 = vpack.c.bf16 %v2202, %v2201
        %v2210 = vpack.c.bf16 %v2204, %v2203
        %v2211 = vpack.c.bf16 %v2206, %v2205
        %v2212 = vpack.c.bf16 %v2208, %v2207
        %2213 = vst [vmem:[#allocation2 + $0x8] sm:$0xff] %v2209
        %2214 = vst [vmem:[#allocation2 + $0x10] sm:$0xff] %v2210
        %2215 = vst [vmem:[#allocation2 + $0x18] sm:$0xff] %v2211
        %2216 = vst [vmem:[#allocation2 + $0x20] sm:$0xff] %v2212
        %v2217 = vld [vmem:[%s8] sm:$0x1]
        %v2219 = vlaneseq
        %v2220 = vshrl.u32 %v2219, 7
        %v2221 = vsub.s32 0, %v2220
        %v2222 = vrot.slane %v2217, %v2221
        %v2224 = vld [vmem:[#allocation2] sm:$0xe0]
        %v2225 = vld [vmem:[#allocation2 + $0x8] sm:$0xff]
        %v2226 = vld [vmem:[#allocation2 + $0x10] sm:$0xff]
        %v2227 = vld [vmem:[#allocation2 + $0x18] sm:$0xff]
        %v2228 = vld [vmem:[#allocation2 + $0x20] sm:$0x3f]
        %v2229 = vld [vmem:[#allocation2] sm:$0xc0]
        %v2231 = vshrl.u32 %v2229, 16
        %v2233 = vshll.u32 %v2229, 16
        %v2235 = vrot.slane %v2233, 1
        %v2236 = vor.u32 %v2231, %v2235
        %v2238 = vshll.u32 %v2225, 16
        %v2240 = vrot.slane %v2238, 1
        %v2241 = vsel %vm450, %v2236, %v2240
        %v2242 = vshrl.u32 %v2225, 16
        %v2244 = vor.u32 %v2242, %v2240
        %v2246 = vshll.u32 %v2226, 16
        %v2248 = vrot.slane %v2246, 1
        %v2249 = vsel %vm450, %v2244, %v2248
        %v2250 = vshrl.u32 %v2226, 16
        %v2252 = vor.u32 %v2250, %v2248
        %v2254 = vshll.u32 %v2227, 16
        %v2256 = vrot.slane %v2254, 1
        %v2257 = vsel %vm450, %v2252, %v2256
        %v2258 = vshrl.u32 %v2227, 16
        %v2260 = vor.u32 %v2258, %v2256
        %v2262 = vshll.u32 %v2228, 16
        %v2264 = vrot.slane %v2262, 1
        %v2265 = vsel %vm450, %v2260, %v2264
        %v2266 = vshrl.u32 %v2228, 16
        %v2268 = vor.u32 %v2266, %v2264
        %v2269 = vld [vmem:[#allocation8] sm:$0xf]
        %v2270 = vld [vmem:[#allocation8 + $0x4] sm:$0xf]
        %v2271 = vld [vmem:[#allocation8 + $0x8] sm:$0xf]
        %v2272 = vld [vmem:[#allocation8 + $0xc] sm:$0xf]
        %v2273 = vld [vmem:[#allocation8 + $0x10] sm:$0xf]
        %v2274 = vld [vmem:[#allocation8 + $0x14] sm:$0xf]
        %v2275 = vld [vmem:[#allocation8 + $0x18] sm:$0xf]
        %v2276 = vld [vmem:[#allocation8 + $0x1c] sm:$0xf]
        %v2277 = vld [vmem:[#allocation8 + $0x20] sm:$0xf]
        %v2278 = vld [vmem:[#allocation8 + $0x24] sm:$0xf]
        %v2279 = vld [vmem:[#allocation8 + $0x28] sm:$0xf]
        %v2280 = vld [vmem:[#allocation8 + $0x2c] sm:$0xf]
        %v2281 = vld [vmem:[#allocation8 + $0x30] sm:$0xf]
        %v2282 = vld [vmem:[#allocation8 + $0x34] sm:$0xf]
        %v2283 = vld [vmem:[#allocation8 + $0x38] sm:$0xf]
        %v2284 = vld [vmem:[#allocation8 + $0x3c] sm:$0xf]
        %v2285 = vld [vmem:[#allocation8 + $0x40] sm:$0xf]
        %v2286 = vld [vmem:[#allocation8 + $0x44] sm:$0xf]
        %v2287 = vld [vmem:[#allocation8 + $0x48] sm:$0xf]
        %v2288 = vld [vmem:[#allocation8 + $0x4c] sm:$0xf]
        %v2289 = vld [vmem:[#allocation8 + $0x50] sm:$0xf]
        %v2290 = vld [vmem:[#allocation8 + $0x54] sm:$0xf]
        %v2291 = vld [vmem:[#allocation8 + $0x58] sm:$0xf]
        %v2292 = vld [vmem:[#allocation8 + $0x5c] sm:$0xf]
        %v2293 = vld [vmem:[#allocation8 + $0x60] sm:$0xf]
        %v2294 = vld [vmem:[#allocation8 + $0x64] sm:$0xf]
        %v2295 = vld [vmem:[#allocation8 + $0x68] sm:$0xf]
        %v2296 = vld [vmem:[#allocation8 + $0x6c] sm:$0xf]
        %v2297 = vld [vmem:[#allocation8 + $0x70] sm:$0xf]
        %v2298 = vld [vmem:[#allocation8 + $0x74] sm:$0xf]
        %v2299 = vld [vmem:[#allocation8 + $0x78] sm:$0xf]
        %v2300 = vld [vmem:[#allocation8 + $0x7c] sm:$0xf]
        %v2302 = vshrl.u32 %v2224, 16
        %v2304 = vrot.slane %v2302, 5
        %v2305 = vshll.u32 %v2224, 16
        %v2307 = vrot.slane %v2305, 6
        %v2308 = vor.u32 %v2304, %v2307
        %v2309 = vrot.slane %v2242, 5
        %v2310 = vrot.slane %v2238, 6
        %v2311 = vor.u32 %v2309, %v2310
        %v2312 = vsel %vm522, %v2308, %v2311
        %v2314 = vshrl.u32 %v2241, 16
        %v2316 = vrot.slane %v2314, 5
        %v2317 = vshll.u32 %v2241, 16
        %v2319 = vrot.slane %v2317, 6
        %v2320 = vor.u32 %v2316, %v2319
        %v2322 = vshrl.u32 %v2249, 16
        %v2324 = vrot.slane %v2322, 5
        %v2325 = vshll.u32 %v2249, 16
        %v2327 = vrot.slane %v2325, 6
        %v2328 = vor.u32 %v2324, %v2327
        %v2329 = vsel %vm522, %v2320, %v2328
        %v2330 = vrot.slane %v2250, 5
        %v2331 = vrot.slane %v2246, 6
        %v2332 = vor.u32 %v2330, %v2331
        %v2333 = vsel %vm522, %v2311, %v2332
        %v2335 = vshrl.u32 %v2257, 16
        %v2337 = vrot.slane %v2335, 5
        %v2338 = vshll.u32 %v2257, 16
        %v2340 = vrot.slane %v2338, 6
        %v2341 = vor.u32 %v2337, %v2340
        %v2342 = vsel %vm522, %v2328, %v2341
        %v2343 = vrot.slane %v2258, 5
        %v2344 = vrot.slane %v2254, 6
        %v2345 = vor.u32 %v2343, %v2344
        %v2346 = vsel %vm522, %v2332, %v2345
        %v2348 = vshrl.u32 %v2265, 16
        %v2350 = vrot.slane %v2348, 5
        %v2351 = vshll.u32 %v2265, 16
        %v2353 = vrot.slane %v2351, 6
        %v2354 = vor.u32 %v2350, %v2353
        %v2355 = vsel %vm522, %v2341, %v2354
        %v2356 = vrot.slane %v2266, 5
        %v2357 = vrot.slane %v2262, 6
        %v2358 = vor.u32 %v2356, %v2357
        %v2359 = vsel %vm522, %v2345, %v2358
        %v2361 = vshrl.u32 %v2268, 16
        %v2363 = vrot.slane %v2361, 5
        %v2364 = vshll.u32 %v2268, 16
        %v2366 = vrot.slane %v2364, 6
        %v2367 = vor.u32 %v2363, %v2366
        %v2368 = vsel %vm522, %v2354, %v2367
        %v2409 = vunpack.c.l.b16 %v2269
        %v2410 = vunpack.c.l.b16 %v2270
        %v2411 = vunpack.c.l.b16 %v2271
        %v2412 = vunpack.c.l.b16 %v2272
        %v2413 = vunpack.c.l.b16 %v2273
        %v2414 = vunpack.c.l.b16 %v2274
        %v2415 = vunpack.c.l.b16 %v2275
        %v2416 = vunpack.c.l.b16 %v2276
        %v2417 = vunpack.c.l.b16 %v2277
        %v2418 = vunpack.c.l.b16 %v2278
        %v2419 = vunpack.c.l.b16 %v2279
        %v2420 = vunpack.c.l.b16 %v2280
        %v2421 = vunpack.c.l.b16 %v2281
        %v2422 = vunpack.c.l.b16 %v2282
        %v2423 = vunpack.c.l.b16 %v2283
        %v2424 = vunpack.c.l.b16 %v2284
        %v2425 = vunpack.c.l.b16 %v2285
        %v2426 = vunpack.c.l.b16 %v2286
        %v2427 = vunpack.c.l.b16 %v2287
        %v2428 = vunpack.c.l.b16 %v2288
        %v2429 = vunpack.c.l.b16 %v2289
        %v2430 = vunpack.c.l.b16 %v2290
        %v2431 = vunpack.c.l.b16 %v2291
        %v2432 = vunpack.c.l.b16 %v2292
        %v2433 = vunpack.c.l.b16 %v2293
        %v2434 = vunpack.c.l.b16 %v2294
        %v2435 = vunpack.c.l.b16 %v2295
        %v2436 = vunpack.c.l.b16 %v2296
        %v2437 = vunpack.c.l.b16 %v2297
        %v2438 = vunpack.c.l.b16 %v2298
        %v2439 = vunpack.c.l.b16 %v2299
        %v2440 = vunpack.c.l.b16 %v2300
        %v2441 = vpack.c.b16 %v2410, %v2409
        %v2442 = vpack.c.b16 %v2412, %v2411
        %v2443 = vpack.c.b16 %v2414, %v2413
        %v2444 = vpack.c.b16 %v2416, %v2415
        %v2445 = vpack.c.b16 %v2418, %v2417
        %v2446 = vpack.c.b16 %v2420, %v2419
        %v2447 = vpack.c.b16 %v2422, %v2421
        %v2448 = vpack.c.b16 %v2424, %v2423
        %v2449 = vpack.c.b16 %v2426, %v2425
        %v2450 = vpack.c.b16 %v2428, %v2427
        %v2451 = vpack.c.b16 %v2430, %v2429
        %v2452 = vpack.c.b16 %v2432, %v2431
        %v2453 = vpack.c.b16 %v2434, %v2433
        %v2454 = vpack.c.b16 %v2436, %v2435
        %v2455 = vpack.c.b16 %v2438, %v2437
        %v2456 = vpack.c.b16 %v2440, %v2439
        %2473 = vmatprep.subr.bf16.mxu0 0
        %2474 = vmatpush1.bf16.msra.mxu0 %v2441
        %2475 = vmatprep.subr.bf16.mxu0 0
        %2476 = vmatpush1.bf16.msra.mxu0 %v2442
        %2477 = vmatprep.subr.bf16.mxu0 0
        %2478 = vmatpush1.bf16.msra.mxu0 %v2443
        %2479 = vmatprep.subr.bf16.mxu0 0
        %2480 = vmatpush1.bf16.msra.mxu0 %v2444
        %2481 = vmatprep.subr.bf16.mxu0 0
        %2482 = vmatpush1.bf16.msra.mxu0 %v2445
        %2483 = vmatprep.subr.bf16.mxu0 0
        %2484 = vmatpush1.bf16.msra.mxu0 %v2446
        %2485 = vmatprep.subr.bf16.mxu0 0
        %2486 = vmatpush1.bf16.msra.mxu0 %v2447
        %2487 = vmatprep.subr.bf16.mxu0 0
        %2488 = vmatpush1.bf16.msra.mxu0 %v2448
        %2489 = vmatprep.subr.bf16.mxu0 0
        %2490 = vmatpush1.bf16.msra.mxu0 %v2449
        %2491 = vmatprep.subr.bf16.mxu0 0
        %2492 = vmatpush1.bf16.msra.mxu0 %v2450
        %2493 = vmatprep.subr.bf16.mxu0 0
        %2494 = vmatpush1.bf16.msra.mxu0 %v2451
        %2495 = vmatprep.subr.bf16.mxu0 0
        %2496 = vmatpush1.bf16.msra.mxu0 %v2452
        %2497 = vmatprep.subr.bf16.mxu0 0
        %2498 = vmatpush1.bf16.msra.mxu0 %v2453
        %2499 = vmatprep.subr.bf16.mxu0 0
        %2500 = vmatpush1.bf16.msra.mxu0 %v2454
        %2501 = vmatprep.subr.bf16.mxu0 0
        %2502 = vmatpush1.bf16.msra.mxu0 %v2455
        %2503 = vmatprep.subr.bf16.mxu0 0
        %2504 = vmatpush1.bf16.msra.mxu0 %v2456
        %2505 = vmatprep.mubr.bf16.mxu0 %v2329
        %2506 = vmatmul.mubr.bf16.gmra.mrb[0].mxu0 %v2312
        %v2507 = vpop.f32.mrb[0].mxu0
        %v2508 = vadd.f32 0.0, %v2507
        %v2509 = vpop.f32.mrb[0].mxu0
        %v2510 = vpop.f32.mrb[0].mxu0
        %v2511 = vadd.f32 0.0, %v2510
        %v2512 = vpop.f32.mrb[0].mxu0
        %2513 = vmatprep.mubr.bf16.mxu0 %v2342
        %2514 = vmatmul.mubr.bf16.gmra.mrb[0].mxu0 %v2333
        %v2515 = vpop.f32.mrb[0].mxu0
        %v2516 = vadd.f32 0.0, %v2515
        %v2517 = vpop.f32.mrb[0].mxu0
        %v2518 = vpop.f32.mrb[0].mxu0
        %v2519 = vadd.f32 0.0, %v2518
        %v2520 = vpop.f32.mrb[0].mxu0
        %2521 = vmatprep.mubr.bf16.mxu0 %v2355
        %2522 = vmatmul.mubr.bf16.gmra.mrb[0].mxu0 %v2346
        %v2523 = vpop.f32.mrb[0].mxu0
        %v2524 = vadd.f32 0.0, %v2523
        %v2525 = vpop.f32.mrb[0].mxu0
        %v2526 = vpop.f32.mrb[0].mxu0
        %v2527 = vadd.f32 0.0, %v2526
        %v2528 = vpop.f32.mrb[0].mxu0
        %2529 = vmatprep.mubr.bf16.mxu0 %v2368
        %2530 = vmatmul.mubr.bf16.gmra.mrb[0].mxu0 %v2359
        %v2531 = vpop.f32.mrb[0].mxu0
        %v2532 = vadd.f32 0.0, %v2531
        %v2533 = vpop.f32.mrb[0].mxu0
        %v2534 = vpop.f32.mrb[0].mxu0
        %v2535 = vadd.f32 0.0, %v2534
        %v2536 = vpop.f32.mrb[0].mxu0
        %2537 = vdwg.mxu0
        %v2538 = vadd.f32 %v2222, %v2508
        %v2539 = vadd.f32 %v2222, %v2511
        %v2540 = vadd.f32 %v2222, %v2516
        %v2541 = vadd.f32 %v2222, %v2519
        %v2542 = vadd.f32 %v2222, %v2524
        %v2543 = vadd.f32 %v2222, %v2527
        %v2544 = vadd.f32 %v2222, %v2532
        %v2545 = vadd.f32 %v2222, %v2535
        %v2546 = vld [vmem:[#allocation2 + $0x20] sm:$0x7f]
        %v2547 = vld [vmem:[#allocation2] sm:$0x80]
        %v2549 = vshrl.u32 %v2547, 16
        %v2551 = vshll.u32 %v2547, 16
        %v2553 = vrot.slane %v2551, 1
        %v2554 = vor.u32 %v2549, %v2553
        %v2555 = vsel %vm450, %v2554, %v2240
        %v2557 = vshll.u32 %v2546, 16
        %v2559 = vrot.slane %v2557, 1
        %v2560 = vsel %vm450, %v2260, %v2559
        %v2561 = vshrl.u32 %v2546, 16
        %v2563 = vor.u32 %v2561, %v2559
        %s2564 = scalar_lea.vmem [#allocation8], 128
        %v2565 = vld [vmem:[%s2564] sm:$0xf]
        %v2566 = vld [vmem:[%s2564 + $0x4] sm:$0xf]
        %v2567 = vld [vmem:[%s2564 + $0x8] sm:$0xf]
        %v2568 = vld [vmem:[%s2564 + $0xc] sm:$0xf]
        %v2569 = vld [vmem:[%s2564 + $0x10] sm:$0xf]
        %v2570 = vld [vmem:[%s2564 + $0x14] sm:$0xf]
        %v2571 = vld [vmem:[%s2564 + $0x18] sm:$0xf]
        %v2572 = vld [vmem:[%s2564 + $0x1c] sm:$0xf]
        %v2573 = vld [vmem:[%s2564 + $0x20] sm:$0xf]
        %v2574 = vld [vmem:[%s2564 + $0x24] sm:$0xf]
        %v2575 = vld [vmem:[%s2564 + $0x28] sm:$0xf]
        %v2576 = vld [vmem:[%s2564 + $0x2c] sm:$0xf]
        %v2577 = vld [vmem:[%s2564 + $0x30] sm:$0xf]
        %v2578 = vld [vmem:[%s2564 + $0x34] sm:$0xf]
        %v2579 = vld [vmem:[%s2564 + $0x38] sm:$0xf]
        %v2580 = vld [vmem:[%s2564 + $0x3c] sm:$0xf]
        %v2581 = vld [vmem:[%s2564 + $0x40] sm:$0xf]
        %v2582 = vld [vmem:[%s2564 + $0x44] sm:$0xf]
        %v2583 = vld [vmem:[%s2564 + $0x48] sm:$0xf]
        %v2584 = vld [vmem:[%s2564 + $0x4c] sm:$0xf]
        %v2585 = vld [vmem:[%s2564 + $0x50] sm:$0xf]
        %v2586 = vld [vmem:[%s2564 + $0x54] sm:$0xf]
        %v2587 = vld [vmem:[%s2564 + $0x58] sm:$0xf]
        %v2588 = vld [vmem:[%s2564 + $0x5c] sm:$0xf]
        %v2589 = vld [vmem:[%s2564 + $0x60] sm:$0xf]
        %v2590 = vld [vmem:[%s2564 + $0x64] sm:$0xf]
        %v2591 = vld [vmem:[%s2564 + $0x68] sm:$0xf]
        %v2592 = vld [vmem:[%s2564 + $0x6c] sm:$0xf]
        %v2593 = vld [vmem:[%s2564 + $0x70] sm:$0xf]
        %v2594 = vld [vmem:[%s2564 + $0x74] sm:$0xf]
        %v2595 = vld [vmem:[%s2564 + $0x78] sm:$0xf]
        %v2596 = vld [vmem:[%s2564 + $0x7c] sm:$0xf]
        %v2597 = vrot.slane %v2231, 6
        %v2598 = vrot.slane %v2233, 7
        %v2599 = vor.u32 %v2597, %v2598
        %v2600 = vrot.slane %v2242, 6
        %v2601 = vrot.slane %v2238, 7
        %v2602 = vor.u32 %v2600, %v2601
        %v2603 = vsel %vm819, %v2599, %v2602
        %v2605 = vshrl.u32 %v2555, 16
        %v2607 = vrot.slane %v2605, 6
        %v2608 = vshll.u32 %v2555, 16
        %v2610 = vrot.slane %v2608, 7
        %v2611 = vor.u32 %v2607, %v2610
        %v2612 = vrot.slane %v2322, 6
        %v2613 = vrot.slane %v2325, 7
        %v2614 = vor.u32 %v2612, %v2613
        %v2615 = vsel %vm819, %v2611, %v2614
        %v2616 = vrot.slane %v2250, 6
        %v2617 = vrot.slane %v2246, 7
        %v2618 = vor.u32 %v2616, %v2617
        %v2619 = vsel %vm819, %v2602, %v2618
        %v2620 = vrot.slane %v2335, 6
        %v2621 = vrot.slane %v2338, 7
        %v2622 = vor.u32 %v2620, %v2621
        %v2623 = vsel %vm819, %v2614, %v2622
        %v2624 = vrot.slane %v2258, 6
        %v2625 = vrot.slane %v2254, 7
        %v2626 = vor.u32 %v2624, %v2625
        %v2627 = vsel %vm819, %v2618, %v2626
        %v2629 = vshrl.u32 %v2560, 16
        %v2631 = vrot.slane %v2629, 6
        %v2632 = vshll.u32 %v2560, 16
        %v2634 = vrot.slane %v2632, 7
        %v2635 = vor.u32 %v2631, %v2634
        %v2636 = vsel %vm819, %v2622, %v2635
        %v2637 = vrot.slane %v2561, 6
        %v2638 = vrot.slane %v2557, 7
        %v2639 = vor.u32 %v2637, %v2638
        %v2640 = vsel %vm819, %v2626, %v2639
        %v2642 = vshrl.u32 %v2563, 16
        %v2644 = vrot.slane %v2642, 6
        %v2645 = vshll.u32 %v2563, 16
        %v2647 = vrot.slane %v2645, 7
        %v2648 = vor.u32 %v2644, %v2647
        %v2649 = vsel %vm819, %v2635, %v2648
        %v2690 = vunpack.c.l.b16 %v2565
        %v2691 = vunpack.c.l.b16 %v2566
        %v2692 = vunpack.c.l.b16 %v2567
        %v2693 = vunpack.c.l.b16 %v2568
        %v2694 = vunpack.c.l.b16 %v2569
        %v2695 = vunpack.c.l.b16 %v2570
        %v2696 = vunpack.c.l.b16 %v2571
        %v2697 = vunpack.c.l.b16 %v2572
        %v2698 = vunpack.c.l.b16 %v2573
        %v2699 = vunpack.c.l.b16 %v2574
        %v2700 = vunpack.c.l.b16 %v2575
        %v2701 = vunpack.c.l.b16 %v2576
        %v2702 = vunpack.c.l.b16 %v2577
        %v2703 = vunpack.c.l.b16 %v2578
        %v2704 = vunpack.c.l.b16 %v2579
        %v2705 = vunpack.c.l.b16 %v2580
        %v2706 = vunpack.c.l.b16 %v2581
        %v2707 = vunpack.c.l.b16 %v2582
        %v2708 = vunpack.c.l.b16 %v2583
        %v2709 = vunpack.c.l.b16 %v2584
        %v2710 = vunpack.c.l.b16 %v2585
        %v2711 = vunpack.c.l.b16 %v2586
        %v2712 = vunpack.c.l.b16 %v2587
        %v2713 = vunpack.c.l.b16 %v2588
        %v2714 = vunpack.c.l.b16 %v2589
        %v2715 = vunpack.c.l.b16 %v2590
        %v2716 = vunpack.c.l.b16 %v2591
        %v2717 = vunpack.c.l.b16 %v2592
        %v2718 = vunpack.c.l.b16 %v2593
        %v2719 = vunpack.c.l.b16 %v2594
        %v2720 = vunpack.c.l.b16 %v2595
        %v2721 = vunpack.c.l.b16 %v2596
        %v2722 = vpack.c.b16 %v2691, %v2690
        %v2723 = vpack.c.b16 %v2693, %v2692
        %v2724 = vpack.c.b16 %v2695, %v2694
        %v2725 = vpack.c.b16 %v2697, %v2696
        %v2726 = vpack.c.b16 %v2699, %v2698
        %v2727 = vpack.c.b16 %v2701, %v2700
        %v2728 = vpack.c.b16 %v2703, %v2702
        %v2729 = vpack.c.b16 %v2705, %v2704
        %v2730 = vpack.c.b16 %v2707, %v2706
        %v2731 = vpack.c.b16 %v2709, %v2708
        %v2732 = vpack.c.b16 %v2711, %v2710
        %v2733 = vpack.c.b16 %v2713, %v2712
        %v2734 = vpack.c.b16 %v2715, %v2714
        %v2735 = vpack.c.b16 %v2717, %v2716
        %v2736 = vpack.c.b16 %v2719, %v2718
        %v2737 = vpack.c.b16 %v2721, %v2720
        %2754 = vmatprep.subr.bf16.mxu0 0
        %2755 = vmatpush1.bf16.msra.mxu0 %v2722
        %2756 = vmatprep.subr.bf16.mxu0 0
        %2757 = vmatpush1.bf16.msra.mxu0 %v2723
        %2758 = vmatprep.subr.bf16.mxu0 0
        %2759 = vmatpush1.bf16.msra.mxu0 %v2724
        %2760 = vmatprep.subr.bf16.mxu0 0
        %2761 = vmatpush1.bf16.msra.mxu0 %v2725
        %2762 = vmatprep.subr.bf16.mxu0 0
        %2763 = vmatpush1.bf16.msra.mxu0 %v2726
        %2764 = vmatprep.subr.bf16.mxu0 0
        %2765 = vmatpush1.bf16.msra.mxu0 %v2727
        %2766 = vmatprep.subr.bf16.mxu0 0
        %2767 = vmatpush1.bf16.msra.mxu0 %v2728
        %2768 = vmatprep.subr.bf16.mxu0 0
        %2769 = vmatpush1.bf16.msra.mxu0 %v2729
        %2770 = vmatprep.subr.bf16.mxu0 0
        %2771 = vmatpush1.bf16.msra.mxu0 %v2730
        %2772 = vmatprep.subr.bf16.mxu0 0
        %2773 = vmatpush1.bf16.msra.mxu0 %v2731
        %2774 = vmatprep.subr.bf16.mxu0 0
        %2775 = vmatpush1.bf16.msra.mxu0 %v2732
        %2776 = vmatprep.subr.bf16.mxu0 0
        %2777 = vmatpush1.bf16.msra.mxu0 %v2733
        %2778 = vmatprep.subr.bf16.mxu0 0
        %2779 = vmatpush1.bf16.msra.mxu0 %v2734
        %2780 = vmatprep.subr.bf16.mxu0 0
        %2781 = vmatpush1.bf16.msra.mxu0 %v2735
        %2782 = vmatprep.subr.bf16.mxu0 0
        %2783 = vmatpush1.bf16.msra.mxu0 %v2736
        %2784 = vmatprep.subr.bf16.mxu0 0
        %2785 = vmatpush1.bf16.msra.mxu0 %v2737
        %2786 = vmatprep.mubr.bf16.mxu0 %v2615
        %2787 = vmatmul.mubr.bf16.gmra.mrb[0].mxu0 %v2603
        %v2788 = vpop.f32.mrb[0].mxu0
        %v2789 = vadd.f32 0.0, %v2788
        %v2790 = vpop.f32.mrb[0].mxu0
        %v2791 = vpop.f32.mrb[0].mxu0
        %v2792 = vadd.f32 0.0, %v2791
        %v2793 = vpop.f32.mrb[0].mxu0
        %2794 = vmatprep.mubr.bf16.mxu0 %v2623
        %2795 = vmatmul.mubr.bf16.gmra.mrb[0].mxu0 %v2619
        %v2796 = vpop.f32.mrb[0].mxu0
        %v2797 = vadd.f32 0.0, %v2796
        %v2798 = vpop.f32.mrb[0].mxu0
        %v2799 = vpop.f32.mrb[0].mxu0
        %v2800 = vadd.f32 0.0, %v2799
        %v2801 = vpop.f32.mrb[0].mxu0
        %2802 = vmatprep.mubr.bf16.mxu0 %v2636
        %2803 = vmatmul.mubr.bf16.gmra.mrb[0].mxu0 %v2627
        %v2804 = vpop.f32.mrb[0].mxu0
        %v2805 = vadd.f32 0.0, %v2804
        %v2806 = vpop.f32.mrb[0].mxu0
        %v2807 = vpop.f32.mrb[0].mxu0
        %v2808 = vadd.f32 0.0, %v2807
        %v2809 = vpop.f32.mrb[0].mxu0
        %2810 = vmatprep.mubr.bf16.mxu0 %v2649
        %2811 = vmatmul.mubr.bf16.gmra.mrb[0].mxu0 %v2640
        %v2812 = vpop.f32.mrb[0].mxu0
        %v2813 = vadd.f32 0.0, %v2812
        %v2814 = vpop.f32.mrb[0].mxu0
        %v2815 = vpop.f32.mrb[0].mxu0
        %v2816 = vadd.f32 0.0, %v2815
        %v2817 = vpop.f32.mrb[0].mxu0
        %2818 = vdwg.mxu0
        %v2819 = vadd.f32 %v2538, %v2789
        %v2820 = vadd.f32 %v2539, %v2792
        %v2821 = vadd.f32 %v2540, %v2797
        %v2822 = vadd.f32 %v2541, %v2800
        %v2823 = vadd.f32 %v2542, %v2805
        %v2824 = vadd.f32 %v2543, %v2808
        %v2825 = vadd.f32 %v2544, %v2813
        %v2826 = vadd.f32 %v2545, %v2816
        %v2827 = vld [vmem:[#allocation2 + $0x20] sm:$0xff]
        %v2829 = vshll.u32 %v2827, 16
        %v2831 = vrot.slane %v2829, 1
        %v2832 = vsel %vm450, %v2260, %v2831
        %v2833 = vshrl.u32 %v2827, 16
        %v2835 = vor.u32 %v2833, %v2831
        %s2836 = scalar_lea.vmem [#allocation8], 256
        %v2837 = vld [vmem:[%s2836] sm:$0xf]
        %v2838 = vld [vmem:[%s2836 + $0x4] sm:$0xf]
        %v2839 = vld [vmem:[%s2836 + $0x8] sm:$0xf]
        %v2840 = vld [vmem:[%s2836 + $0xc] sm:$0xf]
        %v2841 = vld [vmem:[%s2836 + $0x10] sm:$0xf]
        %v2842 = vld [vmem:[%s2836 + $0x14] sm:$0xf]
        %v2843 = vld [vmem:[%s2836 + $0x18] sm:$0xf]
        %v2844 = vld [vmem:[%s2836 + $0x1c] sm:$0xf]
        %v2845 = vld [vmem:[%s2836 + $0x20] sm:$0xf]
        %v2846 = vld [vmem:[%s2836 + $0x24] sm:$0xf]
        %v2847 = vld [vmem:[%s2836 + $0x28] sm:$0xf]
        %v2848 = vld [vmem:[%s2836 + $0x2c] sm:$0xf]
        %v2849 = vld [vmem:[%s2836 + $0x30] sm:$0xf]
        %v2850 = vld [vmem:[%s2836 + $0x34] sm:$0xf]
        %v2851 = vld [vmem:[%s2836 + $0x38] sm:$0xf]
        %v2852 = vld [vmem:[%s2836 + $0x3c] sm:$0xf]
        %v2853 = vld [vmem:[%s2836 + $0x40] sm:$0xf]
        %v2854 = vld [vmem:[%s2836 + $0x44] sm:$0xf]
        %v2855 = vld [vmem:[%s2836 + $0x48] sm:$0xf]
        %v2856 = vld [vmem:[%s2836 + $0x4c] sm:$0xf]
        %v2857 = vld [vmem:[%s2836 + $0x50] sm:$0xf]
        %v2858 = vld [vmem:[%s2836 + $0x54] sm:$0xf]
        %v2859 = vld [vmem:[%s2836 + $0x58] sm:$0xf]
        %v2860 = vld [vmem:[%s2836 + $0x5c] sm:$0xf]
        %v2861 = vld [vmem:[%s2836 + $0x60] sm:$0xf]
        %v2862 = vld [vmem:[%s2836 + $0x64] sm:$0xf]
        %v2863 = vld [vmem:[%s2836 + $0x68] sm:$0xf]
        %v2864 = vld [vmem:[%s2836 + $0x6c] sm:$0xf]
        %v2865 = vld [vmem:[%s2836 + $0x70] sm:$0xf]
        %v2866 = vld [vmem:[%s2836 + $0x74] sm:$0xf]
        %v2867 = vld [vmem:[%s2836 + $0x78] sm:$0xf]
        %v2868 = vld [vmem:[%s2836 + $0x7c] sm:$0xf]
        %v2869 = vrot.slane %v2549, 7
        %v2870 = vrot.slane %v2242, 7
        %v2871 = vor.u32 %v2870, %v2238
        %v2872 = vsel %vm1092, %v2869, %v2871
        %v2874 = vshrl.u32 %v2240, 16
        %v2876 = vrot.slane %v2874, 7
        %v2877 = vrot.slane %v2322, 7
        %v2878 = vor.u32 %v2877, %v2325
        %v2879 = vsel %vm1092, %v2876, %v2878
        %v2880 = vrot.slane %v2250, 7
        %v2881 = vor.u32 %v2880, %v2246
        %v2882 = vsel %vm1092, %v2870, %v2881
        %v2883 = vrot.slane %v2335, 7
        %v2884 = vor.u32 %v2883, %v2338
        %v2885 = vsel %vm1092, %v2877, %v2884
        %v2886 = vrot.slane %v2258, 7
        %v2887 = vor.u32 %v2886, %v2254
        %v2888 = vsel %vm1092, %v2880, %v2887
        %v2890 = vshrl.u32 %v2832, 16
        %v2892 = vrot.slane %v2890, 7
        %v2893 = vshll.u32 %v2832, 16
        %v2895 = vor.u32 %v2892, %v2893
        %v2896 = vsel %vm1092, %v2883, %v2895
        %v2897 = vrot.slane %v2833, 7
        %v2898 = vor.u32 %v2897, %v2829
        %v2899 = vsel %vm1092, %v2886, %v2898
        %v2901 = vshrl.u32 %v2835, 16
        %v2903 = vrot.slane %v2901, 7
        %v2904 = vshll.u32 %v2835, 16
        %v2906 = vor.u32 %v2903, %v2904
        %v2907 = vsel %vm1092, %v2892, %v2906
        %v2948 = vunpack.c.l.b16 %v2837
        %v2949 = vunpack.c.l.b16 %v2838
        %v2950 = vunpack.c.l.b16 %v2839
        %v2951 = vunpack.c.l.b16 %v2840
        %v2952 = vunpack.c.l.b16 %v2841
        %v2953 = vunpack.c.l.b16 %v2842
        %v2954 = vunpack.c.l.b16 %v2843
        %v2955 = vunpack.c.l.b16 %v2844
        %v2956 = vunpack.c.l.b16 %v2845
        %v2957 = vunpack.c.l.b16 %v2846
        %v2958 = vunpack.c.l.b16 %v2847
        %v2959 = vunpack.c.l.b16 %v2848
        %v2960 = vunpack.c.l.b16 %v2849
        %v2961 = vunpack.c.l.b16 %v2850
        %v2962 = vunpack.c.l.b16 %v2851
        %v2963 = vunpack.c.l.b16 %v2852
        %v2964 = vunpack.c.l.b16 %v2853
        %v2965 = vunpack.c.l.b16 %v2854
        %v2966 = vunpack.c.l.b16 %v2855
        %v2967 = vunpack.c.l.b16 %v2856
        %v2968 = vunpack.c.l.b16 %v2857
        %v2969 = vunpack.c.l.b16 %v2858
        %v2970 = vunpack.c.l.b16 %v2859
        %v2971 = vunpack.c.l.b16 %v2860
        %v2972 = vunpack.c.l.b16 %v2861
        %v2973 = vunpack.c.l.b16 %v2862
        %v2974 = vunpack.c.l.b16 %v2863
        %v2975 = vunpack.c.l.b16 %v2864
        %v2976 = vunpack.c.l.b16 %v2865
        %v2977 = vunpack.c.l.b16 %v2866
        %v2978 = vunpack.c.l.b16 %v2867
        %v2979 = vunpack.c.l.b16 %v2868
        %v2980 = vpack.c.b16 %v2949, %v2948
        %v2981 = vpack.c.b16 %v2951, %v2950
        %v2982 = vpack.c.b16 %v2953, %v2952
        %v2983 = vpack.c.b16 %v2955, %v2954
        %v2984 = vpack.c.b16 %v2957, %v2956
        %v2985 = vpack.c.b16 %v2959, %v2958
        %v2986 = vpack.c.b16 %v2961, %v2960
        %v2987 = vpack.c.b16 %v2963, %v2962
        %v2988 = vpack.c.b16 %v2965, %v2964
        %v2989 = vpack.c.b16 %v2967, %v2966
        %v2990 = vpack.c.b16 %v2969, %v2968
        %v2991 = vpack.c.b16 %v2971, %v2970
        %v2992 = vpack.c.b16 %v2973, %v2972
        %v2993 = vpack.c.b16 %v2975, %v2974
        %v2994 = vpack.c.b16 %v2977, %v2976
        %v2995 = vpack.c.b16 %v2979, %v2978
        %3012 = vmatprep.subr.bf16.mxu0 0
        %3013 = vmatpush1.bf16.msra.mxu0 %v2980
        %3014 = vmatprep.subr.bf16.mxu0 0
        %3015 = vmatpush1.bf16.msra.mxu0 %v2981
        %3016 = vmatprep.subr.bf16.mxu0 0
        %3017 = vmatpush1.bf16.msra.mxu0 %v2982
        %3018 = vmatprep.subr.bf16.mxu0 0
        %3019 = vmatpush1.bf16.msra.mxu0 %v2983
        %3020 = vmatprep.subr.bf16.mxu0 0
        %3021 = vmatpush1.bf16.msra.mxu0 %v2984
        %3022 = vmatprep.subr.bf16.mxu0 0
        %3023 = vmatpush1.bf16.msra.mxu0 %v2985
        %3024 = vmatprep.subr.bf16.mxu0 0
        %3025 = vmatpush1.bf16.msra.mxu0 %v2986
        %3026 = vmatprep.subr.bf16.mxu0 0
        %3027 = vmatpush1.bf16.msra.mxu0 %v2987
        %3028 = vmatprep.subr.bf16.mxu0 0
        %3029 = vmatpush1.bf16.msra.mxu0 %v2988
        %3030 = vmatprep.subr.bf16.mxu0 0
        %3031 = vmatpush1.bf16.msra.mxu0 %v2989
        %3032 = vmatprep.subr.bf16.mxu0 0
        %3033 = vmatpush1.bf16.msra.mxu0 %v2990
        %3034 = vmatprep.subr.bf16.mxu0 0
        %3035 = vmatpush1.bf16.msra.mxu0 %v2991
        %3036 = vmatprep.subr.bf16.mxu0 0
        %3037 = vmatpush1.bf16.msra.mxu0 %v2992
        %3038 = vmatprep.subr.bf16.mxu0 0
        %3039 = vmatpush1.bf16.msra.mxu0 %v2993
        %3040 = vmatprep.subr.bf16.mxu0 0
        %3041 = vmatpush1.bf16.msra.mxu0 %v2994
        %3042 = vmatprep.subr.bf16.mxu0 0
        %3043 = vmatpush1.bf16.msra.mxu0 %v2995
        %3044 = vmatprep.mubr.bf16.mxu0 %v2879
        %3045 = vmatmul.mubr.bf16.gmra.mrb[0].mxu0 %v2872
        %v3046 = vpop.f32.mrb[0].mxu0
        %v3047 = vadd.f32 0.0, %v3046
        %v3048 = vpop.f32.mrb[0].mxu0
        %v3049 = vpop.f32.mrb[0].mxu0
        %v3050 = vadd.f32 0.0, %v3049
        %v3051 = vpop.f32.mrb[0].mxu0
        %3052 = vmatprep.mubr.bf16.mxu0 %v2885
        %3053 = vmatmul.mubr.bf16.gmra.mrb[0].mxu0 %v2882
        %v3054 = vpop.f32.mrb[0].mxu0
        %v3055 = vadd.f32 0.0, %v3054
        %v3056 = vpop.f32.mrb[0].mxu0
        %v3057 = vpop.f32.mrb[0].mxu0
        %v3058 = vadd.f32 0.0, %v3057
        %v3059 = vpop.f32.mrb[0].mxu0
        %3060 = vmatprep.mubr.bf16.mxu0 %v2896
        %3061 = vmatmul.mubr.bf16.gmra.mrb[0].mxu0 %v2888
        %v3062 = vpop.f32.mrb[0].mxu0
        %v3063 = vadd.f32 0.0, %v3062
        %v3064 = vpop.f32.mrb[0].mxu0
        %v3065 = vpop.f32.mrb[0].mxu0
        %v3066 = vadd.f32 0.0, %v3065
        %v3067 = vpop.f32.mrb[0].mxu0
        %3068 = vmatprep.mubr.bf16.mxu0 %v2907
        %3069 = vmatmul.mubr.bf16.gmra.mrb[0].mxu0 %v2899
        %v3070 = vpop.f32.mrb[0].mxu0
        %v3071 = vadd.f32 0.0, %v3070
        %v3072 = vpop.f32.mrb[0].mxu0
        %v3073 = vpop.f32.mrb[0].mxu0
        %v3074 = vadd.f32 0.0, %v3073
        %v3075 = vpop.f32.mrb[0].mxu0
        %3076 = vdwg.mxu0
        %v3077 = vadd.f32 %v2819, %v3047
        %v3078 = vadd.f32 %v2820, %v3050
        %v3079 = vadd.f32 %v2821, %v3055
        %v3080 = vadd.f32 %v2822, %v3058
        %v3081 = vadd.f32 %v2823, %v3063
        %v3082 = vadd.f32 %v2824, %v3066
        %v3083 = vadd.f32 %v2825, %v3071
        %v3084 = vadd.f32 %v2826, %v3074
        %v3085 = vld [vmem:[#allocation2 + $0x8] sm:$0xff]
        %v3086 = vld [vmem:[#allocation2 + $0x10] sm:$0xff]
        %v3087 = vld [vmem:[#allocation2 + $0x18] sm:$0xff]
        %v3088 = vld [vmem:[#allocation2 + $0x20] sm:$0xff]
        %v3089 = vld [vmem:[#allocation2 + $0x28] sm:$0x1]
        %v3090 = vld [vmem:[#allocation2 + $0x8] sm:$0xfe]
        %v3092 = vshrl.u32 %v3090, 16
        %v3094 = vshll.u32 %v3090, 16
        %v3096 = vrot.slane %v3094, 1
        %v3097 = vor.u32 %v3092, %v3096
        %v3099 = vshll.u32 %v3086, 16
        %v3101 = vrot.slane %v3099, 1
        %v3102 = vsel %vm450, %v3097, %v3101
        %v3103 = vshrl.u32 %v3086, 16
        %v3105 = vor.u32 %v3103, %v3101
        %v3107 = vshll.u32 %v3087, 16
        %v3109 = vrot.slane %v3107, 1
        %v3110 = vsel %vm450, %v3105, %v3109
        %v3111 = vshrl.u32 %v3087, 16
        %v3113 = vor.u32 %v3111, %v3109
        %v3115 = vshll.u32 %v3088, 16
        %v3117 = vrot.slane %v3115, 1
        %v3118 = vsel %vm450, %v3113, %v3117
        %v3119 = vshrl.u32 %v3088, 16
        %v3121 = vor.u32 %v3119, %v3117
        %v3123 = vshll.u32 %v3089, 16
        %v3125 = vrot.slane %v3123, 1
        %v3126 = vsel %vm450, %v3121, %v3125
        %v3127 = vshrl.u32 %v3089, 16
        %s3129 = scalar_lea.vmem [#allocation8], 384
        %v3130 = vld [vmem:[%s3129] sm:$0xf]
        %v3131 = vld [vmem:[%s3129 + $0x4] sm:$0xf]
        %v3132 = vld [vmem:[%s3129 + $0x8] sm:$0xf]
        %v3133 = vld [vmem:[%s3129 + $0xc] sm:$0xf]
        %v3134 = vld [vmem:[%s3129 + $0x10] sm:$0xf]
        %v3135 = vld [vmem:[%s3129 + $0x14] sm:$0xf]
        %v3136 = vld [vmem:[%s3129 + $0x18] sm:$0xf]
        %v3137 = vld [vmem:[%s3129 + $0x1c] sm:$0xf]
        %v3138 = vld [vmem:[%s3129 + $0x20] sm:$0xf]
        %v3139 = vld [vmem:[%s3129 + $0x24] sm:$0xf]
        %v3140 = vld [vmem:[%s3129 + $0x28] sm:$0xf]
        %v3141 = vld [vmem:[%s3129 + $0x2c] sm:$0xf]
        %v3142 = vld [vmem:[%s3129 + $0x30] sm:$0xf]
        %v3143 = vld [vmem:[%s3129 + $0x34] sm:$0xf]
        %v3144 = vld [vmem:[%s3129 + $0x38] sm:$0xf]
        %v3145 = vld [vmem:[%s3129 + $0x3c] sm:$0xf]
        %v3146 = vld [vmem:[%s3129 + $0x40] sm:$0xf]
        %v3147 = vld [vmem:[%s3129 + $0x44] sm:$0xf]
        %v3148 = vld [vmem:[%s3129 + $0x48] sm:$0xf]
        %v3149 = vld [vmem:[%s3129 + $0x4c] sm:$0xf]
        %v3150 = vld [vmem:[%s3129 + $0x50] sm:$0xf]
        %v3151 = vld [vmem:[%s3129 + $0x54] sm:$0xf]
        %v3152 = vld [vmem:[%s3129 + $0x58] sm:$0xf]
        %v3153 = vld [vmem:[%s3129 + $0x5c] sm:$0xf]
        %v3154 = vld [vmem:[%s3129 + $0x60] sm:$0xf]
        %v3155 = vld [vmem:[%s3129 + $0x64] sm:$0xf]
        %v3156 = vld [vmem:[%s3129 + $0x68] sm:$0xf]
        %v3157 = vld [vmem:[%s3129 + $0x6c] sm:$0xf]
        %v3158 = vld [vmem:[%s3129 + $0x70] sm:$0xf]
        %v3159 = vld [vmem:[%s3129 + $0x74] sm:$0xf]
        %v3160 = vld [vmem:[%s3129 + $0x78] sm:$0xf]
        %v3161 = vld [vmem:[%s3129 + $0x7c] sm:$0xf]
        %v3163 = vshrl.u32 %v3085, 16
        %v3165 = vshll.u32 %v3085, 16
        %v3167 = vrot.slane %v3165, 1
        %v3168 = vor.u32 %v3163, %v3167
        %v3169 = vsel %vm450, %v3168, %v3101
        %v3171 = vshrl.u32 %v3102, 16
        %v3173 = vshll.u32 %v3102, 16
        %v3175 = vrot.slane %v3173, 1
        %v3176 = vor.u32 %v3171, %v3175
        %v3178 = vshll.u32 %v3110, 16
        %v3180 = vrot.slane %v3178, 1
        %v3181 = vsel %vm450, %v3176, %v3180
        %v3182 = vshrl.u32 %v3110, 16
        %v3184 = vor.u32 %v3182, %v3180
        %v3186 = vshll.u32 %v3118, 16
        %v3188 = vrot.slane %v3186, 1
        %v3189 = vsel %vm450, %v3184, %v3188
        %v3190 = vshrl.u32 %v3118, 16
        %v3192 = vor.u32 %v3190, %v3188
        %v3194 = vshll.u32 %v3126, 16
        %v3196 = vrot.slane %v3194, 1
        %v3197 = vsel %vm450, %v3192, %v3196
        %v3198 = vshrl.u32 %v3126, 16
        %v3200 = vor.u32 %v3198, %v3196
        %v3202 = vshll.u32 %v3127, 16
        %v3204 = vrot.slane %v3202, 1
        %v3205 = vsel %vm450, %v3200, %v3204
        %v3246 = vunpack.c.l.b16 %v3130
        %v3247 = vunpack.c.l.b16 %v3131
        %v3248 = vunpack.c.l.b16 %v3132
        %v3249 = vunpack.c.l.b16 %v3133
        %v3250 = vunpack.c.l.b16 %v3134
        %v3251 = vunpack.c.l.b16 %v3135
        %v3252 = vunpack.c.l.b16 %v3136
        %v3253 = vunpack.c.l.b16 %v3137
        %v3254 = vunpack.c.l.b16 %v3138
        %v3255 = vunpack.c.l.b16 %v3139
        %v3256 = vunpack.c.l.b16 %v3140
        %v3257 = vunpack.c.l.b16 %v3141
        %v3258 = vunpack.c.l.b16 %v3142
        %v3259 = vunpack.c.l.b16 %v3143
        %v3260 = vunpack.c.l.b16 %v3144
        %v3261 = vunpack.c.l.b16 %v3145
        %v3262 = vunpack.c.l.b16 %v3146
        %v3263 = vunpack.c.l.b16 %v3147
        %v3264 = vunpack.c.l.b16 %v3148
        %v3265 = vunpack.c.l.b16 %v3149
        %v3266 = vunpack.c.l.b16 %v3150
        %v3267 = vunpack.c.l.b16 %v3151
        %v3268 = vunpack.c.l.b16 %v3152
        %v3269 = vunpack.c.l.b16 %v3153
        %v3270 = vunpack.c.l.b16 %v3154
        %v3271 = vunpack.c.l.b16 %v3155
        %v3272 = vunpack.c.l.b16 %v3156
        %v3273 = vunpack.c.l.b16 %v3157
        %v3274 = vunpack.c.l.b16 %v3158
        %v3275 = vunpack.c.l.b16 %v3159
        %v3276 = vunpack.c.l.b16 %v3160
        %v3277 = vunpack.c.l.b16 %v3161
        %v3278 = vpack.c.b16 %v3247, %v3246
        %v3279 = vpack.c.b16 %v3249, %v3248
        %v3280 = vpack.c.b16 %v3251, %v3250
        %v3281 = vpack.c.b16 %v3253, %v3252
        %v3282 = vpack.c.b16 %v3255, %v3254
        %v3283 = vpack.c.b16 %v3257, %v3256
        %v3284 = vpack.c.b16 %v3259, %v3258
        %v3285 = vpack.c.b16 %v3261, %v3260
        %v3286 = vpack.c.b16 %v3263, %v3262
        %v3287 = vpack.c.b16 %v3265, %v3264
        %v3288 = vpack.c.b16 %v3267, %v3266
        %v3289 = vpack.c.b16 %v3269, %v3268
        %v3290 = vpack.c.b16 %v3271, %v3270
        %v3291 = vpack.c.b16 %v3273, %v3272
        %v3292 = vpack.c.b16 %v3275, %v3274
        %v3293 = vpack.c.b16 %v3277, %v3276
        %3310 = vmatprep.subr.bf16.mxu0 0
        %3311 = vmatpush1.bf16.msra.mxu0 %v3278
        %3312 = vmatprep.subr.bf16.mxu0 0
        %3313 = vmatpush1.bf16.msra.mxu0 %v3279
        %3314 = vmatprep.subr.bf16.mxu0 0
        %3315 = vmatpush1.bf16.msra.mxu0 %v3280
        %3316 = vmatprep.subr.bf16.mxu0 0
        %3317 = vmatpush1.bf16.msra.mxu0 %v3281
        %3318 = vmatprep.subr.bf16.mxu0 0
        %3319 = vmatpush1.bf16.msra.mxu0 %v3282
        %3320 = vmatprep.subr.bf16.mxu0 0
        %3321 = vmatpush1.bf16.msra.mxu0 %v3283
        %3322 = vmatprep.subr.bf16.mxu0 0
        %3323 = vmatpush1.bf16.msra.mxu0 %v3284
        %3324 = vmatprep.subr.bf16.mxu0 0
        %3325 = vmatpush1.bf16.msra.mxu0 %v3285
        %3326 = vmatprep.subr.bf16.mxu0 0
        %3327 = vmatpush1.bf16.msra.mxu0 %v3286
        %3328 = vmatprep.subr.bf16.mxu0 0
        %3329 = vmatpush1.bf16.msra.mxu0 %v3287
        %3330 = vmatprep.subr.bf16.mxu0 0
        %3331 = vmatpush1.bf16.msra.mxu0 %v3288
        %3332 = vmatprep.subr.bf16.mxu0 0
        %3333 = vmatpush1.bf16.msra.mxu0 %v3289
        %3334 = vmatprep.subr.bf16.mxu0 0
        %3335 = vmatpush1.bf16.msra.mxu0 %v3290
        %3336 = vmatprep.subr.bf16.mxu0 0
        %3337 = vmatpush1.bf16.msra.mxu0 %v3291
        %3338 = vmatprep.subr.bf16.mxu0 0
        %3339 = vmatpush1.bf16.msra.mxu0 %v3292
        %3340 = vmatprep.subr.bf16.mxu0 0
        %3341 = vmatpush1.bf16.msra.mxu0 %v3293
        %3342 = vmatprep.mubr.bf16.mxu0 %v3181
        %3343 = vmatmul.mubr.bf16.gmra.mrb[0].mxu0 %v3169
        %v3344 = vpop.f32.mrb[0].mxu0
        %v3345 = vadd.f32 0.0, %v3344
        %v3346 = vpop.f32.mrb[0].mxu0
        %v3347 = vpop.f32.mrb[0].mxu0
        %v3348 = vadd.f32 0.0, %v3347
        %v3349 = vpop.f32.mrb[0].mxu0
        %3350 = vmatprep.mubr.bf16.mxu0 %v3189
        %3351 = vmatmul.mubr.bf16.gmra.mrb[0].mxu0 %v3110
        %v3352 = vpop.f32.mrb[0].mxu0
        %v3353 = vadd.f32 0.0, %v3352
        %v3354 = vpop.f32.mrb[0].mxu0
        %v3355 = vpop.f32.mrb[0].mxu0
        %v3356 = vadd.f32 0.0, %v3355
        %v3357 = vpop.f32.mrb[0].mxu0
        %3358 = vmatprep.mubr.bf16.mxu0 %v3197
        %3359 = vmatmul.mubr.bf16.gmra.mrb[0].mxu0 %v3118
        %v3360 = vpop.f32.mrb[0].mxu0
        %v3361 = vadd.f32 0.0, %v3360
        %v3362 = vpop.f32.mrb[0].mxu0
        %v3363 = vpop.f32.mrb[0].mxu0
        %v3364 = vadd.f32 0.0, %v3363
        %v3365 = vpop.f32.mrb[0].mxu0
        %3366 = vmatprep.mubr.bf16.mxu0 %v3205
        %3367 = vmatmul.mubr.bf16.gmra.mrb[0].mxu0 %v3126
        %v3368 = vpop.f32.mrb[0].mxu0
        %v3369 = vadd.f32 0.0, %v3368
        %v3370 = vpop.f32.mrb[0].mxu0
        %v3371 = vpop.f32.mrb[0].mxu0
        %v3372 = vadd.f32 0.0, %v3371
        %v3373 = vpop.f32.mrb[0].mxu0
        %3374 = vdwg.mxu0
        %v3375 = vadd.f32 %v3077, %v3345
        %v3376 = vadd.f32 %v3078, %v3348
        %v3377 = vadd.f32 %v3079, %v3353
        %v3378 = vadd.f32 %v3080, %v3356
        %v3379 = vadd.f32 %v3081, %v3361
        %v3380 = vadd.f32 %v3082, %v3364
        %v3381 = vadd.f32 %v3083, %v3369
        %v3382 = vadd.f32 %v3084, %v3372
        %v3383 = vld [vmem:[#allocation2 + $0x28] sm:$0x3]
        %v3384 = vld [vmem:[#allocation2 + $0x8] sm:$0xfc]
        %v3386 = vshrl.u32 %v3384, 16
        %v3388 = vshll.u32 %v3384, 16
        %v3390 = vrot.slane %v3388, 1
        %v3391 = vor.u32 %v3386, %v3390
        %v3392 = vsel %vm450, %v3391, %v3101
        %v3394 = vshll.u32 %v3383, 16
        %v3396 = vrot.slane %v3394, 1
        %v3397 = vsel %vm450, %v3121, %v3396
        %v3398 = vshrl.u32 %v3383, 16
        %v3400 = vor.u32 %v3398, %v3396
        %s3401 = scalar_lea.vmem [#allocation8], 512
        %v3402 = vld [vmem:[%s3401] sm:$0xf]
        %v3403 = vld [vmem:[%s3401 + $0x4] sm:$0xf]
        %v3404 = vld [vmem:[%s3401 + $0x8] sm:$0xf]
        %v3405 = vld [vmem:[%s3401 + $0xc] sm:$0xf]
        %v3406 = vld [vmem:[%s3401 + $0x10] sm:$0xf]
        %v3407 = vld [vmem:[%s3401 + $0x14] sm:$0xf]
        %v3408 = vld [vmem:[%s3401 + $0x18] sm:$0xf]
        %v3409 = vld [vmem:[%s3401 + $0x1c] sm:$0xf]
        %v3410 = vld [vmem:[%s3401 + $0x20] sm:$0xf]
        %v3411 = vld [vmem:[%s3401 + $0x24] sm:$0xf]
        %v3412 = vld [vmem:[%s3401 + $0x28] sm:$0xf]
        %v3413 = vld [vmem:[%s3401 + $0x2c] sm:$0xf]
        %v3414 = vld [vmem:[%s3401 + $0x30] sm:$0xf]
        %v3415 = vld [vmem:[%s3401 + $0x34] sm:$0xf]
        %v3416 = vld [vmem:[%s3401 + $0x38] sm:$0xf]
        %v3417 = vld [vmem:[%s3401 + $0x3c] sm:$0xf]
        %v3418 = vld [vmem:[%s3401 + $0x40] sm:$0xf]
        %v3419 = vld [vmem:[%s3401 + $0x44] sm:$0xf]
        %v3420 = vld [vmem:[%s3401 + $0x48] sm:$0xf]
        %v3421 = vld [vmem:[%s3401 + $0x4c] sm:$0xf]
        %v3422 = vld [vmem:[%s3401 + $0x50] sm:$0xf]
        %v3423 = vld [vmem:[%s3401 + $0x54] sm:$0xf]
        %v3424 = vld [vmem:[%s3401 + $0x58] sm:$0xf]
        %v3425 = vld [vmem:[%s3401 + $0x5c] sm:$0xf]
        %v3426 = vld [vmem:[%s3401 + $0x60] sm:$0xf]
        %v3427 = vld [vmem:[%s3401 + $0x64] sm:$0xf]
        %v3428 = vld [vmem:[%s3401 + $0x68] sm:$0xf]
        %v3429 = vld [vmem:[%s3401 + $0x6c] sm:$0xf]
        %v3430 = vld [vmem:[%s3401 + $0x70] sm:$0xf]
        %v3431 = vld [vmem:[%s3401 + $0x74] sm:$0xf]
        %v3432 = vld [vmem:[%s3401 + $0x78] sm:$0xf]
        %v3433 = vld [vmem:[%s3401 + $0x7c] sm:$0xf]
        %v3434 = vrot.slane %v3092, 1
        %v3435 = vrot.slane %v3094, 2
        %v3436 = vor.u32 %v3434, %v3435
        %v3437 = vrot.slane %v3103, 1
        %v3438 = vrot.slane %v3099, 2
        %v3439 = vor.u32 %v3437, %v3438
        %v3440 = vsel %vm1658, %v3436, %v3439
        %v3442 = vshrl.u32 %v3392, 16
        %v3444 = vrot.slane %v3442, 1
        %v3445 = vshll.u32 %v3392, 16
        %v3447 = vrot.slane %v3445, 2
        %v3448 = vor.u32 %v3444, %v3447
        %v3449 = vrot.slane %v3182, 1
        %v3450 = vrot.slane %v3178, 2
        %v3451 = vor.u32 %v3449, %v3450
        %v3452 = vsel %vm1658, %v3448, %v3451
        %v3453 = vrot.slane %v3111, 1
        %v3454 = vrot.slane %v3107, 2
        %v3455 = vor.u32 %v3453, %v3454
        %v3456 = vsel %vm1658, %v3439, %v3455
        %v3457 = vrot.slane %v3190, 1
        %v3458 = vrot.slane %v3186, 2
        %v3459 = vor.u32 %v3457, %v3458
        %v3460 = vsel %vm1658, %v3451, %v3459
        %v3461 = vrot.slane %v3119, 1
        %v3462 = vrot.slane %v3115, 2
        %v3463 = vor.u32 %v3461, %v3462
        %v3464 = vsel %vm1658, %v3455, %v3463
        %v3466 = vshrl.u32 %v3397, 16
        %v3468 = vrot.slane %v3466, 1
        %v3469 = vshll.u32 %v3397, 16
        %v3471 = vrot.slane %v3469, 2
        %v3472 = vor.u32 %v3468, %v3471
        %v3473 = vsel %vm1658, %v3459, %v3472
        %v3474 = vrot.slane %v3398, 1
        %v3475 = vrot.slane %v3394, 2
        %v3476 = vor.u32 %v3474, %v3475
        %v3477 = vsel %vm1658, %v3463, %v3476
        %v3479 = vshrl.u32 %v3400, 16
        %v3481 = vrot.slane %v3479, 1
        %v3482 = vshll.u32 %v3400, 16
        %v3484 = vrot.slane %v3482, 2
        %v3485 = vor.u32 %v3481, %v3484
        %v3486 = vsel %vm1658, %v3472, %v3485
        %v3527 = vunpack.c.l.b16 %v3402
        %v3528 = vunpack.c.l.b16 %v3403
        %v3529 = vunpack.c.l.b16 %v3404
        %v3530 = vunpack.c.l.b16 %v3405
        %v3531 = vunpack.c.l.b16 %v3406
        %v3532 = vunpack.c.l.b16 %v3407
        %v3533 = vunpack.c.l.b16 %v3408
        %v3534 = vunpack.c.l.b16 %v3409
        %v3535 = vunpack.c.l.b16 %v3410
        %v3536 = vunpack.c.l.b16 %v3411
        %v3537 = vunpack.c.l.b16 %v3412
        %v3538 = vunpack.c.l.b16 %v3413
        %v3539 = vunpack.c.l.b16 %v3414
        %v3540 = vunpack.c.l.b16 %v3415
        %v3541 = vunpack.c.l.b16 %v3416
        %v3542 = vunpack.c.l.b16 %v3417
        %v3543 = vunpack.c.l.b16 %v3418
        %v3544 = vunpack.c.l.b16 %v3419
        %v3545 = vunpack.c.l.b16 %v3420
        %v3546 = vunpack.c.l.b16 %v3421
        %v3547 = vunpack.c.l.b16 %v3422
        %v3548 = vunpack.c.l.b16 %v3423
        %v3549 = vunpack.c.l.b16 %v3424
        %v3550 = vunpack.c.l.b16 %v3425
        %v3551 = vunpack.c.l.b16 %v3426
        %v3552 = vunpack.c.l.b16 %v3427
        %v3553 = vunpack.c.l.b16 %v3428
        %v3554 = vunpack.c.l.b16 %v3429
        %v3555 = vunpack.c.l.b16 %v3430
        %v3556 = vunpack.c.l.b16 %v3431
        %v3557 = vunpack.c.l.b16 %v3432
        %v3558 = vunpack.c.l.b16 %v3433
        %v3559 = vpack.c.b16 %v3528, %v3527
        %v3560 = vpack.c.b16 %v3530, %v3529
        %v3561 = vpack.c.b16 %v3532, %v3531
        %v3562 = vpack.c.b16 %v3534, %v3533
        %v3563 = vpack.c.b16 %v3536, %v3535
        %v3564 = vpack.c.b16 %v3538, %v3537
        %v3565 = vpack.c.b16 %v3540, %v3539
        %v3566 = vpack.c.b16 %v3542, %v3541
        %v3567 = vpack.c.b16 %v3544, %v3543
        %v3568 = vpack.c.b16 %v3546, %v3545
        %v3569 = vpack.c.b16 %v3548, %v3547
        %v3570 = vpack.c.b16 %v3550, %v3549
        %v3571 = vpack.c.b16 %v3552, %v3551
        %v3572 = vpack.c.b16 %v3554, %v3553
        %v3573 = vpack.c.b16 %v3556, %v3555
        %v3574 = vpack.c.b16 %v3558, %v3557
        %3591 = vmatprep.subr.bf16.mxu0 0
        %3592 = vmatpush1.bf16.msra.mxu0 %v3559
        %3593 = vmatprep.subr.bf16.mxu0 0
        %3594 = vmatpush1.bf16.msra.mxu0 %v3560
        %3595 = vmatprep.subr.bf16.mxu0 0
        %3596 = vmatpush1.bf16.msra.mxu0 %v3561
        %3597 = vmatprep.subr.bf16.mxu0 0
        %3598 = vmatpush1.bf16.msra.mxu0 %v3562
        %3599 = vmatprep.subr.bf16.mxu0 0
        %3600 = vmatpush1.bf16.msra.mxu0 %v3563
        %3601 = vmatprep.subr.bf16.mxu0 0
        %3602 = vmatpush1.bf16.msra.mxu0 %v3564
        %3603 = vmatprep.subr.bf16.mxu0 0
        %3604 = vmatpush1.bf16.msra.mxu0 %v3565
        %3605 = vmatprep.subr.bf16.mxu0 0
        %3606 = vmatpush1.bf16.msra.mxu0 %v3566
        %3607 = vmatprep.subr.bf16.mxu0 0
        %3608 = vmatpush1.bf16.msra.mxu0 %v3567
        %3609 = vmatprep.subr.bf16.mxu0 0
        %3610 = vmatpush1.bf16.msra.mxu0 %v3568
        %3611 = vmatprep.subr.bf16.mxu0 0
        %3612 = vmatpush1.bf16.msra.mxu0 %v3569
        %3613 = vmatprep.subr.bf16.mxu0 0
        %3614 = vmatpush1.bf16.msra.mxu0 %v3570
        %3615 = vmatprep.subr.bf16.mxu0 0
        %3616 = vmatpush1.bf16.msra.mxu0 %v3571
        %3617 = vmatprep.subr.bf16.mxu0 0
        %3618 = vmatpush1.bf16.msra.mxu0 %v3572
        %3619 = vmatprep.subr.bf16.mxu0 0
        %3620 = vmatpush1.bf16.msra.mxu0 %v3573
        %3621 = vmatprep.subr.bf16.mxu0 0
        %3622 = vmatpush1.bf16.msra.mxu0 %v3574
        %3623 = vmatprep.mubr.bf16.mxu0 %v3452
        %3624 = vmatmul.mubr.bf16.gmra.mrb[0].mxu0 %v3440
        %v3625 = vpop.f32.mrb[0].mxu0
        %v3626 = vadd.f32 0.0, %v3625
        %v3627 = vpop.f32.mrb[0].mxu0
        %v3628 = vpop.f32.mrb[0].mxu0
        %v3629 = vadd.f32 0.0, %v3628
        %v3630 = vpop.f32.mrb[0].mxu0
        %3631 = vmatprep.mubr.bf16.mxu0 %v3460
        %3632 = vmatmul.mubr.bf16.gmra.mrb[0].mxu0 %v3456
        %v3633 = vpop.f32.mrb[0].mxu0
        %v3634 = vadd.f32 0.0, %v3633
        %v3635 = vpop.f32.mrb[0].mxu0
        %v3636 = vpop.f32.mrb[0].mxu0
        %v3637 = vadd.f32 0.0, %v3636
        %v3638 = vpop.f32.mrb[0].mxu0
        %3639 = vmatprep.mubr.bf16.mxu0 %v3473
        %3640 = vmatmul.mubr.bf16.gmra.mrb[0].mxu0 %v3464
        %v3641 = vpop.f32.mrb[0].mxu0
        %v3642 = vadd.f32 0.0, %v3641
        %v3643 = vpop.f32.mrb[0].mxu0
        %v3644 = vpop.f32.mrb[0].mxu0
        %v3645 = vadd.f32 0.0, %v3644
        %v3646 = vpop.f32.mrb[0].mxu0
        %3647 = vmatprep.mubr.bf16.mxu0 %v3486
        %3648 = vmatmul.mubr.bf16.gmra.mrb[0].mxu0 %v3477
        %v3649 = vpop.f32.mrb[0].mxu0
        %v3650 = vadd.f32 0.0, %v3649
        %v3651 = vpop.f32.mrb[0].mxu0
        %v3652 = vpop.f32.mrb[0].mxu0
        %v3653 = vadd.f32 0.0, %v3652
        %v3654 = vpop.f32.mrb[0].mxu0
        %3655 = vdwg.mxu0
        %v3656 = vadd.f32 %v3375, %v3626
        %v3657 = vadd.f32 %v3376, %v3629
        %v3658 = vadd.f32 %v3377, %v3634
        %v3659 = vadd.f32 %v3378, %v3637
        %v3660 = vadd.f32 %v3379, %v3642
        %v3661 = vadd.f32 %v3380, %v3645
        %v3662 = vadd.f32 %v3381, %v3650
        %v3663 = vadd.f32 %v3382, %v3653
        %v3664 = vld [vmem:[#allocation2 + $0x28] sm:$0x7]
        %v3665 = vld [vmem:[#allocation2 + $0x8] sm:$0xf8]
        %v3667 = vshrl.u32 %v3665, 16
        %v3669 = vshll.u32 %v3665, 16
        %v3671 = vrot.slane %v3669, 1
        %v3672 = vor.u32 %v3667, %v3671
        %v3673 = vsel %vm450, %v3672, %v3101
        %v3675 = vshll.u32 %v3664, 16
        %v3677 = vrot.slane %v3675, 1
        %v3678 = vsel %vm450, %v3121, %v3677
        %v3679 = vshrl.u32 %v3664, 16
        %v3681 = vor.u32 %v3679, %v3677
        %s3682 = scalar_lea.vmem [#allocation8], 640
        %v3683 = vld [vmem:[%s3682] sm:$0xf]
        %v3684 = vld [vmem:[%s3682 + $0x4] sm:$0xf]
        %v3685 = vld [vmem:[%s3682 + $0x8] sm:$0xf]
        %v3686 = vld [vmem:[%s3682 + $0xc] sm:$0xf]
        %v3687 = vld [vmem:[%s3682 + $0x10] sm:$0xf]
        %v3688 = vld [vmem:[%s3682 + $0x14] sm:$0xf]
        %v3689 = vld [vmem:[%s3682 + $0x18] sm:$0xf]
        %v3690 = vld [vmem:[%s3682 + $0x1c] sm:$0xf]
        %v3691 = vld [vmem:[%s3682 + $0x20] sm:$0xf]
        %v3692 = vld [vmem:[%s3682 + $0x24] sm:$0xf]
        %v3693 = vld [vmem:[%s3682 + $0x28] sm:$0xf]
        %v3694 = vld [vmem:[%s3682 + $0x2c] sm:$0xf]
        %v3695 = vld [vmem:[%s3682 + $0x30] sm:$0xf]
        %v3696 = vld [vmem:[%s3682 + $0x34] sm:$0xf]
        %v3697 = vld [vmem:[%s3682 + $0x38] sm:$0xf]
        %v3698 = vld [vmem:[%s3682 + $0x3c] sm:$0xf]
        %v3699 = vld [vmem:[%s3682 + $0x40] sm:$0xf]
        %v3700 = vld [vmem:[%s3682 + $0x44] sm:$0xf]
        %v3701 = vld [vmem:[%s3682 + $0x48] sm:$0xf]
        %v3702 = vld [vmem:[%s3682 + $0x4c] sm:$0xf]
        %v3703 = vld [vmem:[%s3682 + $0x50] sm:$0xf]
        %v3704 = vld [vmem:[%s3682 + $0x54] sm:$0xf]
        %v3705 = vld [vmem:[%s3682 + $0x58] sm:$0xf]
        %v3706 = vld [vmem:[%s3682 + $0x5c] sm:$0xf]
        %v3707 = vld [vmem:[%s3682 + $0x60] sm:$0xf]
        %v3708 = vld [vmem:[%s3682 + $0x64] sm:$0xf]
        %v3709 = vld [vmem:[%s3682 + $0x68] sm:$0xf]
        %v3710 = vld [vmem:[%s3682 + $0x6c] sm:$0xf]
        %v3711 = vld [vmem:[%s3682 + $0x70] sm:$0xf]
        %v3712 = vld [vmem:[%s3682 + $0x74] sm:$0xf]
        %v3713 = vld [vmem:[%s3682 + $0x78] sm:$0xf]
        %v3714 = vld [vmem:[%s3682 + $0x7c] sm:$0xf]
        %v3715 = vrot.slane %v3386, 2
        %v3716 = vrot.slane %v3388, 3
        %v3717 = vor.u32 %v3715, %v3716
        %v3718 = vrot.slane %v3103, 2
        %v3719 = vrot.slane %v3099, 3
        %v3720 = vor.u32 %v3718, %v3719
        %v3721 = vsel %vm1940, %v3717, %v3720
        %v3723 = vshrl.u32 %v3673, 16
        %v3725 = vrot.slane %v3723, 2
        %v3726 = vshll.u32 %v3673, 16
        %v3728 = vrot.slane %v3726, 3
        %v3729 = vor.u32 %v3725, %v3728
        %v3730 = vrot.slane %v3182, 2
        %v3731 = vrot.slane %v3178, 3
        %v3732 = vor.u32 %v3730, %v3731
        %v3733 = vsel %vm1940, %v3729, %v3732
        %v3734 = vrot.slane %v3111, 2
        %v3735 = vrot.slane %v3107, 3
        %v3736 = vor.u32 %v3734, %v3735
        %v3737 = vsel %vm1940, %v3720, %v3736
        %v3738 = vrot.slane %v3190, 2
        %v3739 = vrot.slane %v3186, 3
        %v3740 = vor.u32 %v3738, %v3739
        %v3741 = vsel %vm1940, %v3732, %v3740
        %v3742 = vrot.slane %v3119, 2
        %v3743 = vrot.slane %v3115, 3
        %v3744 = vor.u32 %v3742, %v3743
        %v3745 = vsel %vm1940, %v3736, %v3744
        %v3747 = vshrl.u32 %v3678, 16
        %v3749 = vrot.slane %v3747, 2
        %v3750 = vshll.u32 %v3678, 16
        %v3752 = vrot.slane %v3750, 3
        %v3753 = vor.u32 %v3749, %v3752
        %v3754 = vsel %vm1940, %v3740, %v3753
        %v3755 = vrot.slane %v3679, 2
        %v3756 = vrot.slane %v3675, 3
        %v3757 = vor.u32 %v3755, %v3756
        %v3758 = vsel %vm1940, %v3744, %v3757
        %v3760 = vshrl.u32 %v3681, 16
        %v3762 = vrot.slane %v3760, 2
        %v3763 = vshll.u32 %v3681, 16
        %v3765 = vrot.slane %v3763, 3
        %v3766 = vor.u32 %v3762, %v3765
        %v3767 = vsel %vm1940, %v3753, %v3766
        %v3808 = vunpack.c.l.b16 %v3683
        %v3809 = vunpack.c.l.b16 %v3684
        %v3810 = vunpack.c.l.b16 %v3685
        %v3811 = vunpack.c.l.b16 %v3686
        %v3812 = vunpack.c.l.b16 %v3687
        %v3813 = vunpack.c.l.b16 %v3688
        %v3814 = vunpack.c.l.b16 %v3689
        %v3815 = vunpack.c.l.b16 %v3690
        %v3816 = vunpack.c.l.b16 %v3691
        %v3817 = vunpack.c.l.b16 %v3692
        %v3818 = vunpack.c.l.b16 %v3693
        %v3819 = vunpack.c.l.b16 %v3694
        %v3820 = vunpack.c.l.b16 %v3695
        %v3821 = vunpack.c.l.b16 %v3696
        %v3822 = vunpack.c.l.b16 %v3697
        %v3823 = vunpack.c.l.b16 %v3698
        %v3824 = vunpack.c.l.b16 %v3699
        %v3825 = vunpack.c.l.b16 %v3700
        %v3826 = vunpack.c.l.b16 %v3701
        %v3827 = vunpack.c.l.b16 %v3702
        %v3828 = vunpack.c.l.b16 %v3703
        %v3829 = vunpack.c.l.b16 %v3704
        %v3830 = vunpack.c.l.b16 %v3705
        %v3831 = vunpack.c.l.b16 %v3706
        %v3832 = vunpack.c.l.b16 %v3707
        %v3833 = vunpack.c.l.b16 %v3708
        %v3834 = vunpack.c.l.b16 %v3709
        %v3835 = vunpack.c.l.b16 %v3710
        %v3836 = vunpack.c.l.b16 %v3711
        %v3837 = vunpack.c.l.b16 %v3712
        %v3838 = vunpack.c.l.b16 %v3713
        %v3839 = vunpack.c.l.b16 %v3714
        %v3840 = vpack.c.b16 %v3809, %v3808
        %v3841 = vpack.c.b16 %v3811, %v3810
        %v3842 = vpack.c.b16 %v3813, %v3812
        %v3843 = vpack.c.b16 %v3815, %v3814
        %v3844 = vpack.c.b16 %v3817, %v3816
        %v3845 = vpack.c.b16 %v3819, %v3818
        %v3846 = vpack.c.b16 %v3821, %v3820
        %v3847 = vpack.c.b16 %v3823, %v3822
        %v3848 = vpack.c.b16 %v3825, %v3824
        %v3849 = vpack.c.b16 %v3827, %v3826
        %v3850 = vpack.c.b16 %v3829, %v3828
        %v3851 = vpack.c.b16 %v3831, %v3830
        %v3852 = vpack.c.b16 %v3833, %v3832
        %v3853 = vpack.c.b16 %v3835, %v3834
        %v3854 = vpack.c.b16 %v3837, %v3836
        %v3855 = vpack.c.b16 %v3839, %v3838
        %3872 = vmatprep.subr.bf16.mxu0 0
        %3873 = vmatpush1.bf16.msra.mxu0 %v3840
        %3874 = vmatprep.subr.bf16.mxu0 0
        %3875 = vmatpush1.bf16.msra.mxu0 %v3841
        %3876 = vmatprep.subr.bf16.mxu0 0
        %3877 = vmatpush1.bf16.msra.mxu0 %v3842
        %3878 = vmatprep.subr.bf16.mxu0 0
        %3879 = vmatpush1.bf16.msra.mxu0 %v3843
        %3880 = vmatprep.subr.bf16.mxu0 0
        %3881 = vmatpush1.bf16.msra.mxu0 %v3844
        %3882 = vmatprep.subr.bf16.mxu0 0
        %3883 = vmatpush1.bf16.msra.mxu0 %v3845
        %3884 = vmatprep.subr.bf16.mxu0 0
        %3885 = vmatpush1.bf16.msra.mxu0 %v3846
        %3886 = vmatprep.subr.bf16.mxu0 0
        %3887 = vmatpush1.bf16.msra.mxu0 %v3847
        %3888 = vmatprep.subr.bf16.mxu0 0
        %3889 = vmatpush1.bf16.msra.mxu0 %v3848
        %3890 = vmatprep.subr.bf16.mxu0 0
        %3891 = vmatpush1.bf16.msra.mxu0 %v3849
        %3892 = vmatprep.subr.bf16.mxu0 0
        %3893 = vmatpush1.bf16.msra.mxu0 %v3850
        %3894 = vmatprep.subr.bf16.mxu0 0
        %3895 = vmatpush1.bf16.msra.mxu0 %v3851
        %3896 = vmatprep.subr.bf16.mxu0 0
        %3897 = vmatpush1.bf16.msra.mxu0 %v3852
        %3898 = vmatprep.subr.bf16.mxu0 0
        %3899 = vmatpush1.bf16.msra.mxu0 %v3853
        %3900 = vmatprep.subr.bf16.mxu0 0
        %3901 = vmatpush1.bf16.msra.mxu0 %v3854
        %3902 = vmatprep.subr.bf16.mxu0 0
        %3903 = vmatpush1.bf16.msra.mxu0 %v3855
        %3904 = vmatprep.mubr.bf16.mxu0 %v3733
        %3905 = vmatmul.mubr.bf16.gmra.mrb[0].mxu0 %v3721
        %v3906 = vpop.f32.mrb[0].mxu0
        %v3907 = vadd.f32 0.0, %v3906
        %v3908 = vpop.f32.mrb[0].mxu0
        %v3909 = vpop.f32.mrb[0].mxu0
        %v3910 = vadd.f32 0.0, %v3909
        %v3911 = vpop.f32.mrb[0].mxu0
        %3912 = vmatprep.mubr.bf16.mxu0 %v3741
        %3913 = vmatmul.mubr.bf16.gmra.mrb[0].mxu0 %v3737
        %v3914 = vpop.f32.mrb[0].mxu0
        %v3915 = vadd.f32 0.0, %v3914
        %v3916 = vpop.f32.mrb[0].mxu0
        %v3917 = vpop.f32.mrb[0].mxu0
        %v3918 = vadd.f32 0.0, %v3917
        %v3919 = vpop.f32.mrb[0].mxu0
        %3920 = vmatprep.mubr.bf16.mxu0 %v3754
        %3921 = vmatmul.mubr.bf16.gmra.mrb[0].mxu0 %v3745
        %v3922 = vpop.f32.mrb[0].mxu0
        %v3923 = vadd.f32 0.0, %v3922
        %v3924 = vpop.f32.mrb[0].mxu0
        %v3925 = vpop.f32.mrb[0].mxu0
        %v3926 = vadd.f32 0.0, %v3925
        %v3927 = vpop.f32.mrb[0].mxu0
        %3928 = vmatprep.mubr.bf16.mxu0 %v3767
        %3929 = vmatmul.mubr.bf16.gmra.mrb[0].mxu0 %v3758
        %v3930 = vpop.f32.mrb[0].mxu0
        %v3931 = vadd.f32 0.0, %v3930
        %v3932 = vpop.f32.mrb[0].mxu0
        %v3933 = vpop.f32.mrb[0].mxu0
        %v3934 = vadd.f32 0.0, %v3933
        %v3935 = vpop.f32.mrb[0].mxu0
        %3936 = vdwg.mxu0
        %v3937 = vadd.f32 %v3656, %v3907
        %v3938 = vadd.f32 %v3657, %v3910
        %v3939 = vadd.f32 %v3658, %v3915
        %v3940 = vadd.f32 %v3659, %v3918
        %v3941 = vadd.f32 %v3660, %v3923
        %v3942 = vadd.f32 %v3661, %v3926
        %v3943 = vadd.f32 %v3662, %v3931
        %v3944 = vadd.f32 %v3663, %v3934
        %v3945 = vadd.f32 %v3937, %v381
        %v3946 = vadd.f32 %v3938, %v382
        %v3947 = vadd.f32 %v3939, %v383
        %v3948 = vadd.f32 %v3940, %v384
        %v3949 = vadd.f32 %v3941, %v385
        %v3950 = vadd.f32 %v3942, %v386
        %v3951 = vadd.f32 %v3943, %v387
        %v3952 = vadd.f32 %v3944, %v388
        %3953 = vst [vmem:[%s379] sm:$0xff] %v3945
        %3954 = vst [vmem:[%s379 + $0x8] sm:$0xff] %v3946
        %3955 = vst [vmem:[%s379 + $0x10] sm:$0xff] %v3947
        %3956 = vst [vmem:[%s379 + $0x18] sm:$0xff] %v3948
        %3957 = vst [vmem:[%s379 + $0x20] sm:$0xff] %v3949
        %3958 = vst [vmem:[%s379 + $0x28] sm:$0xff] %v3950
        %3959 = vst [vmem:[%s379 + $0x30] sm:$0xff] %v3951
        %3960 = vst [vmem:[%s379 + $0x38] sm:$0xff] %v3952
        %s3961 = sand.u32 %s229, 1
        %s3962 = scalar_lea.sflag [#allocation5], %s3961
        %s3963 = sand.u32 %s229, 1
        %s3964 = smul.addr %s3963, 64
        %s3965 = scalar_lea.vmem [#allocation9], %s3964
        // Predicated region
        $region69: #{tpu_custom_call.1} parent=55 // pred_check
          %p3966 = pneg %p239
        $region70: #{tpu_custom_call.1} parent=55 // pred_check_branch
          %3968 = sbr.rel (%p3966) target = $region72
        $region71: #{tpu_custom_call.1} parent=55 // pred_region
          %s3970 = ssub.s32 1024, 1024
          %3971 = vsyncadd %s3962, %s3970
          %s3972 = smul.addr %s27, 8
          %s3973 = smul.addr %s3972, 128
          %s3974 = scalar_lea.hbm %s9, %s3973
          %s3975 = sshll.u32 %s3965, 4
          %s3976 = int_to_ptr.vmem [resolvable:$true] %s3975
          %3981 = dma.vmem_to_hbm [thread:$0]  %s3976, 1024, %s3974, %s3962, 128, 128, 8
        $region72: #{tpu_custom_call.1} parent=55 // pred_fallthru
          _
      $region56: #{tpu_custom_call.1} parent=5 // pred_fallthru
        _
      %p3982 = scmp.le.s32.totalorder 2, %s22
      // Predicated region
      $region73: #{tpu_custom_call.1} parent=5 // pred_check
        %p3983 = pneg %p3982
      $region74: #{tpu_custom_call.1} parent=5 // pred_check_branch
        %3985 = sbr.rel (%p3983) target = $region76
      $region75: #{tpu_custom_call.1} parent=5 // pred_region
        %s3986 = ssub.s32 %s22, 2
        // Predicated region
        $region77: #{tpu_custom_call.1} parent=75 // pred_check
          %p3987 = pneg %p245
        $region78: #{tpu_custom_call.1} parent=75 // pred_check_branch
          %3989 = sbr.rel (%p3987) target = $region80
        $region79: #{tpu_custom_call.1} parent=75 // pred_region
          %s3990 = sand.u32 %s230, 1
          %s3991 = scalar_lea.sflag [#allocation5], %s3990
          %s3992 = sand.u32 %s230, 1
          %s3993 = smul.addr %s3992, 64
          %s3994 = scalar_lea.vmem [#allocation9], %s3993
          %3995 = dma.done %s3991, 1024
        $region80: #{tpu_custom_call.1} parent=75 // pred_fallthru
          _
      $region76: #{tpu_custom_call.1} parent=5 // pred_fallthru
        _
    $region6: #{tpu_custom_call.1} parent=1 // loop_footer
      %s26 = sadd.s32 1, %s22
    $region7: #{tpu_custom_call.1} parent=1 // loop_footer_branch
      %21 = sbr.rel target = $region3
    $region8: #{tpu_custom_call.1} parent=1 // loop_exit
      _
    %3996 = vsyncpa [#allocation4], 1
    %s3997 = scalar_lea.sflag [#allocation4], 1
    %3998 = vsyncpa %s3997, 1
    %3999 = vsyncpa [#allocation7], 1
    %4000 = vsyncpa [#allocation5], 1
    %s4001 = scalar_lea.sflag [#allocation5], 1
    %4002 = vsyncpa %s4001, 1

</llo_original>
